<compile_context>
chip_gen: v5e
topology: v5e:2x2
jax: 0.10.0
libtpu: 0.0.40
codegen_flags: <defaults>
</compile_context>

<pallas_src>
import functools

import numpy as np
import jax
import jax.numpy as jnp
from jax import lax
from jax.experimental import pallas as pl
from jax.experimental.pallas import tpu as pltpu


# ----------------------------- Pallas kernel ------------------------------- #

def _decoder_stack_kernel(x_ref, cross_ref,
                          sa_wqkv_ref, sa_bqkv_ref, sa_wo_ref, sa_bo_ref,
                          ca_wq_ref, ca_bq_ref, ca_wkv_ref, ca_bkv_ref,
                          ca_wo_ref, ca_bo_ref,
                          ff_w1_ref, ff_b1_ref, ff_w2_ref, ff_b2_ref,
                          ng_ref, nb_ref,
                          o_ref, x_state,
                          *, n_heads, batch, lq, lkv, apply_final_norm):
    """Grid axis = decoder layer.  The residual stream (B*Lq, D) lives in a
    VMEM scratch across all layers; per-layer weights stream in via the grid."""
    f32, bf16 = jnp.float32, jnp.bfloat16
    layer = pl.program_id(0)
    n_layers = pl.num_programs(0)
    D = x_ref.shape[-1]
    dh = D // n_heads
    n_rows = batch * lq

    @pl.when(layer == 0)
    def _():
        x_state[...] = x_ref[...].astype(f32)

    x = x_state[...]                        # (B*Lq, D) f32 residual stream
    cr = cross_ref[...]                     # (B*Lkv, D) bf16 (cast once on host)

    ng = ng_ref[0]                          # (4, D): norm1, norm2, norm3, final
    nb = nb_ref[0]

    def layernorm(v, idx):
        # single pass: var = E[v^2] - mu^2, clamped >= 0 against cancellation
        mu = jnp.mean(v, axis=-1, keepdims=True)
        ms = jnp.mean(v * v, axis=-1, keepdims=True)
        var = jnp.maximum(ms - mu * mu, 0.0)
        return (v - mu) * lax.rsqrt(var + 1e-5) * ng[idx] + nb[idx]

    def attention(q2, k2, v2, l_kv, wo, bo):
        # q2: (B*Lq, D) f32, k2/v2: (B*l_kv, D) f32.  1/sqrt(dh) is already
        # folded into Wq/bq.  One lane slice per head (no per-head stacks);
        # score / value matmuls use a single leading batch dim.
        q3 = q2.reshape(batch, lq, D)
        k3 = k2.reshape(batch, l_kv, D)
        v3 = v2.reshape(batch, l_kv, D)
        head_outs = []
        for h in range(n_heads):            # static unroll over heads
            cols = slice(h * dh, (h + 1) * dh)
            qh = q3[:, :, cols].astype(bf16)             # (B, Lq, dh)
            kh = k3[:, :, cols].astype(bf16)             # (B, Lkv, dh)
            vh = v3[:, :, cols].astype(bf16)
            s = lax.dot_general(qh, kh, (((2,), (2,)), ((0,), (0,))),
                                preferred_element_type=f32)   # (B, Lq, Lkv)
            s = s - jnp.max(s, axis=-1, keepdims=True)
            p = jnp.exp(s)
            p = p * pl.reciprocal(jnp.sum(p, axis=-1, keepdims=True),
                                  approx=True)
            oh = lax.dot_general(p.astype(bf16), vh,
                                 (((2,), (1,)), ((0,), (0,))),
                                 preferred_element_type=f32)  # (B, Lq, dh)
            head_outs.append(oh.astype(bf16))
        # concat heads once; the head-sum of the output projection then happens
        # inside the MXU as a full-depth (D = H*dh) contraction.
        o_cat = jnp.concatenate(head_outs, axis=-1).reshape(n_rows, D)
        return jnp.dot(o_cat, wo, preferred_element_type=f32) + bo

    # ---- self-attention (fused QKV, batch folded into rows) + norm1 ----
    qkv = jnp.dot(x.astype(bf16), sa_wqkv_ref[0],
                  preferred_element_type=f32) + sa_bqkv_ref[0]    # (B*Lq, 3D)
    sa = attention(qkv[:, :D], qkv[:, D:2 * D], qkv[:, 2 * D:], lq,
                   sa_wo_ref[0], sa_bo_ref[0])
    x = layernorm(x + sa, 0)

    # ---- cross-attention (fused KV) + norm2 ----
    q = jnp.dot(x.astype(bf16), ca_wq_ref[0],
                preferred_element_type=f32) + ca_bq_ref[0]        # (B*Lq, D)
    kv = jnp.dot(cr, ca_wkv_ref[0],
                 preferred_element_type=f32) + ca_bkv_ref[0]      # (B*Lkv, 2D)
    ca = attention(q, kv[:, :D], kv[:, D:], lkv, ca_wo_ref[0], ca_bo_ref[0])
    x = layernorm(x + ca, 1)

    # ---- position-wise FFN (Conv1d kernel_size=1 == matmul) + norm3 ----
    y = jnp.dot(x.astype(bf16), ff_w1_ref[0],
                preferred_element_type=f32) + ff_b1_ref[0]
    y = jnp.maximum(y, 0.0).astype(bf16)
    y = jnp.dot(y, ff_w2_ref[0], preferred_element_type=f32) + ff_b2_ref[0]
    x = layernorm(x + y, 2)

    x_state[...] = x                        # carry to next layer (stays in VMEM)

    @pl.when(layer == n_layers - 1)
    def _():
        xf = layernorm(x, 3) if apply_final_norm else x
        o_ref[...] = xf.astype(o_ref.dtype)


# ------------------------- parameter packing -------------------------------- #

def pack_decoder_params(layer_params, norm_params, n_heads,
                        mxu_dtype=jnp.bfloat16):
    """One-time pack (hoisted out of the forward path): fuse QKV / KV weights,
    fold 1/sqrt(dh) into Wq/bq, cast matmul weights to bf16 (biases/norms f32),
    and stack everything with a leading num_layers axis for the layer grid."""
    D = layer_params[0]["sa_w"].shape[-1]
    dh = D // n_heads
    scale = 1.0 / np.sqrt(dh)
    if norm_params is not None:
        fg = jnp.asarray(norm_params["g"], jnp.float32)
        fb = jnp.asarray(norm_params["b"], jnp.float32)
    else:
        fg = jnp.ones((D,), jnp.float32)
        fb = jnp.zeros((D,), jnp.float32)

    per_layer = []
    for p in layer_params:
        sa_w, sa_b = p["sa_w"], p["sa_b"]
        ca_w, ca_b = p["ca_w"], p["ca_b"]
        per_layer.append({
            "sa_wqkv": jnp.concatenate([sa_w[0] * scale, sa_w[1], sa_w[2]],
                                       axis=1).astype(mxu_dtype),
            "sa_bqkv": jnp.concatenate([sa_b[0] * scale, sa_b[1], sa_b[2]]
                                       ).reshape(1, 3 * D).astype(jnp.float32),
            "sa_wo": sa_w[3].astype(mxu_dtype),
            "sa_bo": sa_b[3].reshape(1, D).astype(jnp.float32),
            "ca_wq": (ca_w[0] * scale).astype(mxu_dtype),
            "ca_bq": (ca_b[0] * scale).reshape(1, D).astype(jnp.float32),
            "ca_wkv": jnp.concatenate([ca_w[1], ca_w[2]],
                                      axis=1).astype(mxu_dtype),
            "ca_bkv": jnp.concatenate([ca_b[1], ca_b[2]]
                                      ).reshape(1, 2 * D).astype(jnp.float32),
            "ca_wo": ca_w[3].astype(mxu_dtype),
            "ca_bo": ca_b[3].reshape(1, D).astype(jnp.float32),
            "ff_w1": p["ff_w1"].astype(mxu_dtype),
            "ff_b1": p["ff_b1"].reshape(1, -1).astype(jnp.float32),
            "ff_w2": p["ff_w2"].astype(mxu_dtype),
            "ff_b2": p["ff_b2"].reshape(1, -1).astype(jnp.float32),
            "ng": jnp.concatenate([p["ng"], fg.reshape(1, D)], axis=0),
            "nb": jnp.concatenate([p["nb"], fb.reshape(1, D)], axis=0),
        })
    return {k: jnp.stack([lp[k] for lp in per_layer], axis=0)
            for k in per_layer[0]}


# ------------------------------- wrapper ------------------------------------ #

def decoder_forward(x, cross, packed, n_heads, apply_final_norm=True,
                    x_mask=None, cross_mask=None):
    # Mirrors Decoder.forward: all layers + final LayerNorm in ONE pallas_call.
    # TODO(synk): x_mask / cross_mask are ignored (mask=None inference path).
    B, Lq, D = x.shape
    _, Lkv, _ = cross.shape
    n_layers = packed["sa_wqkv"].shape[0]
    d_ff = packed["ff_w1"].shape[-1]

    x2 = x.reshape(B * Lq, D)                         # fold batch into rows
    cr2 = cross.reshape(B * Lkv, D).astype(jnp.bfloat16)

    kernel = functools.partial(_decoder_stack_kernel, n_heads=n_heads,
                               batch=B, lq=Lq, lkv=Lkv,
                               apply_final_norm=apply_final_norm)

    io_map = lambda l: (0, 0)        # grid-invariant activations: DMA'd once
    w_map = lambda l: (l, 0, 0)      # per-layer weights: streamed (prefetched)

    out = pl.pallas_call(
        kernel,
        out_shape=jax.ShapeDtypeStruct((B * Lq, D), x.dtype),
        grid=(n_layers,),
        in_specs=[
            pl.BlockSpec((B * Lq, D), io_map),            # x (rows)
            pl.BlockSpec((B * Lkv, D), io_map),           # cross (rows, bf16)
            pl.BlockSpec((1, D, 3 * D), w_map),           # sa_wqkv
            pl.BlockSpec((1, 1, 3 * D), w_map),           # sa_bqkv
            pl.BlockSpec((1, D, D), w_map),               # sa_wo
            pl.BlockSpec((1, 1, D), w_map),               # sa_bo
            pl.BlockSpec((1, D, D), w_map),               # ca_wq
            pl.BlockSpec((1, 1, D), w_map),               # ca_bq
            pl.BlockSpec((1, D, 2 * D), w_map),           # ca_wkv
            pl.BlockSpec((1, 1, 2 * D), w_map),           # ca_bkv
            pl.BlockSpec((1, D, D), w_map),               # ca_wo
            pl.BlockSpec((1, 1, D), w_map),               # ca_bo
            pl.BlockSpec((1, D, d_ff), w_map),            # ff_w1
            pl.BlockSpec((1, 1, d_ff), w_map),            # ff_b1
            pl.BlockSpec((1, d_ff, D), w_map),            # ff_w2
            pl.BlockSpec((1, 1, D), w_map),               # ff_b2
            pl.BlockSpec((1, 4, D), w_map),               # norm gammas (1,2,3,final)
            pl.BlockSpec((1, 4, D), w_map),               # norm betas
        ],
        out_specs=pl.BlockSpec((B * Lq, D), io_map),
        scratch_shapes=[pltpu.VMEM((B * Lq, D), jnp.float32)],   # residual carry
        compiler_params=pltpu.CompilerParams(
            dimension_semantics=("arbitrary",),
            # 32 MiB: well under v7x's 64 MiB physical VMEM; actual footprint at
            # these shapes is ~1 MiB and <=~20 MiB at D=512 / d_ff=2048.
            vmem_limit_bytes=32 * 1024 * 1024),
    )(x2, cr2, packed["sa_wqkv"], packed["sa_bqkv"], packed["sa_wo"],
      packed["sa_bo"], packed["ca_wq"], packed["ca_bq"], packed["ca_wkv"],
      packed["ca_bkv"], packed["ca_wo"], packed["ca_bo"], packed["ff_w1"],
      packed["ff_b1"], packed["ff_w2"], packed["ff_b2"], packed["ng"],
      packed["nb"])
    return out.reshape(B, Lq, D)


# --------------------------- deterministic init ----------------------------- #

def init_decoder_params(key, num_layers, d_model, d_ff):
    layers = []
    for l in range(num_layers):
        ks = jax.random.split(jax.random.fold_in(key, l), 6)
        layers.append({
            "sa_w": 0.05 * jax.random.normal(ks[0], (4, d_model, d_model), jnp.float32),
            "sa_b": 0.01 * jax.random.normal(ks[1], (4, d_model), jnp.float32),
            "ca_w": 0.05 * jax.random.normal(ks[2], (4, d_model, d_model), jnp.float32),
            "ca_b": 0.01 * jax.random.normal(ks[3], (4, d_model), jnp.float32),
            "ff_w1": 0.05 * jax.random.normal(ks[4], (d_model, d_ff), jnp.float32),
            "ff_b1": jnp.zeros((1, d_ff), jnp.float32),
            "ff_w2": 0.05 * jax.random.normal(ks[5], (d_ff, d_model), jnp.float32),
            "ff_b2": jnp.zeros((1, d_model), jnp.float32),
            "ng": jnp.ones((3, d_model), jnp.float32),
            "nb": jnp.zeros((3, d_model), jnp.float32),
        })
    norm = {"g": jnp.ones((d_model,), jnp.float32),
            "b": jnp.zeros((d_model,), jnp.float32)}
    return layers, norm


# ------------------------------ JAX reference -------------------------------- #

def _ref_layer(x, cross, p, n_heads):
    def ln(v, g, b):
        mu = v.mean(-1, keepdims=True)
        var = ((v - mu) ** 2).mean(-1, keepdims=True)
        return (v - mu) / jnp.sqrt(var + 1e-5) * g + b

    def mha(q_in, kv_in, w, b):
        B, Lq, D = q_in.shape
        dh = D // n_heads
        Q = (q_in @ w[0] + b[0]).reshape(B, Lq, n_heads, dh)
        K = (kv_in @ w[1] + b[1]).reshape(B, -1, n_heads, dh)
        V = (kv_in @ w[2] + b[2]).reshape(B, -1, n_heads, dh)
        s = jnp.einsum("bqhd,bkhd->bhqk", Q, K) / np.sqrt(dh)
        a = jax.nn.softmax(s, axis=-1)
        o = jnp.einsum("bhqk,bkhd->bqhd", a, V).reshape(B, Lq, D)
        return o @ w[3] + b[3]

    x = ln(x + mha(x, x, p["sa_w"], p["sa_b"]), p["ng"][0], p["nb"][0])
    x = ln(x + mha(x, cross, p["ca_w"], p["ca_b"]), p["ng"][1], p["nb"][1])
    y = jax.nn.relu(x @ p["ff_w1"] + p["ff_b1"][0]) @ p["ff_w2"] + p["ff_b2"][0]
    return ln(x + y, p["ng"][2], p["nb"][2])


def _ref_decoder(x, cross, layer_params, norm_params, n_heads):
    for p in layer_params:
        x = _ref_layer(x, cross, p, n_heads)
    mu = x.mean(-1, keepdims=True)
    var = ((x - mu) ** 2).mean(-1, keepdims=True)
    return (x - mu) / jnp.sqrt(var + 1e-5) * norm_params["g"] + norm_params["b"]


# ----------------------------------- main ------------------------------------ #

if __name__ == "__main__":
    B, L_dec, L_enc = 2, 8, 16
    d_model, n_heads, d_ff, n_layers = 32, 4, 64, 2

    key = jax.random.PRNGKey(0)
    kx, kc, kp = jax.random.split(key, 3)
    x = jax.random.normal(kx, (B, L_dec, d_model), jnp.float32)
    cross = jax.random.normal(kc, (B, L_enc, d_model), jnp.float32)
    layer_params, norm_params = init_decoder_params(kp, n_layers, d_model, d_ff)

    # weight packing hoisted out of the forward path (done once at setup)
    packed = pack_decoder_params(layer_params, norm_params, n_heads)

    out = decoder_forward(x, cross, packed, n_heads)
    out = jax.block_until_ready(out)

    ref = _ref_decoder(x, cross, layer_params, norm_params, n_heads)
    assert out.shape == (B, L_dec, d_model)
    # Tolerance loosened vs f32 reference: kernel uses bf16 MXU operands and
    # pl.reciprocal(approx=True) for the softmax denominator.
    np.testing.assert_allclose(np.asarray(out), np.asarray(ref),
                               rtol=5e-2, atol=5e-2)
    print("KERNEL_OK")
</pallas_src>

<mosaic_0001>
module attributes {stable_mosaic.version = 11 : i64} {
  func.func @_decoder_stack_kernel(%arg0: i32, %arg1: memref<16x32xf32, #tpu.memory_space<vmem>>, %arg2: memref<32x32xbf16, #tpu.memory_space<vmem>>, %arg3: memref<1x32x96xbf16, #tpu.memory_space<vmem>>, %arg4: memref<1x1x96xf32, #tpu.memory_space<vmem>>, %arg5: memref<1x32x32xbf16, #tpu.memory_space<vmem>>, %arg6: memref<1x1x32xf32, #tpu.memory_space<vmem>>, %arg7: memref<1x32x32xbf16, #tpu.memory_space<vmem>>, %arg8: memref<1x1x32xf32, #tpu.memory_space<vmem>>, %arg9: memref<1x32x64xbf16, #tpu.memory_space<vmem>>, %arg10: memref<1x1x64xf32, #tpu.memory_space<vmem>>, %arg11: memref<1x32x32xbf16, #tpu.memory_space<vmem>>, %arg12: memref<1x1x32xf32, #tpu.memory_space<vmem>>, %arg13: memref<1x32x64xbf16, #tpu.memory_space<vmem>>, %arg14: memref<1x1x64xf32, #tpu.memory_space<vmem>>, %arg15: memref<1x64x32xbf16, #tpu.memory_space<vmem>>, %arg16: memref<1x1x32xf32, #tpu.memory_space<vmem>>, %arg17: memref<1x4x32xf32, #tpu.memory_space<vmem>>, %arg18: memref<1x4x32xf32, #tpu.memory_space<vmem>>, %arg19: memref<16x32xf32, #tpu.memory_space<vmem>>, %arg20: memref<16x32xf32, #tpu.memory_space<vmem>>) attributes {dimension_semantics = [#tpu.dimension_semantics<arbitrary>], iteration_bounds = array<i64: 2>, scalar_prefetch = 0 : i64, scratch_operands = 1 : i64, tpu.core_type = #tpu.core_type<tc>, window_params = [{pipeline_mode = #tpu.pipeline_mode<synchronous>, transform_indices = @transform_0, window_bounds = array<i64: 16, 32>}, {pipeline_mode = #tpu.pipeline_mode<synchronous>, transform_indices = @transform_1, window_bounds = array<i64: 32, 32>}, {transform_indices = @transform_2, window_bounds = array<i64: 1, 32, 96>}, {transform_indices = @transform_3, window_bounds = array<i64: 1, 1, 96>}, {transform_indices = @transform_4, window_bounds = array<i64: 1, 32, 32>}, {transform_indices = @transform_5, window_bounds = array<i64: 1, 1, 32>}, {transform_indices = @transform_6, window_bounds = array<i64: 1, 32, 32>}, {transform_indices = @transform_7, window_bounds = array<i64: 1, 1, 32>}, {transform_indices = @transform_8, window_bounds = array<i64: 1, 32, 64>}, {transform_indices = @transform_9, window_bounds = array<i64: 1, 1, 64>}, {transform_indices = @transform_10, window_bounds = array<i64: 1, 32, 32>}, {transform_indices = @transform_11, window_bounds = array<i64: 1, 1, 32>}, {transform_indices = @transform_12, window_bounds = array<i64: 1, 32, 64>}, {transform_indices = @transform_13, window_bounds = array<i64: 1, 1, 64>}, {transform_indices = @transform_14, window_bounds = array<i64: 1, 64, 32>}, {transform_indices = @transform_15, window_bounds = array<i64: 1, 1, 32>}, {transform_indices = @transform_16, window_bounds = array<i64: 1, 4, 32>}, {transform_indices = @transform_17, window_bounds = array<i64: 1, 4, 32>}, {pipeline_mode = #tpu.pipeline_mode<synchronous>, transform_indices = @transform_18, window_bounds = array<i64: 16, 32>}]} {
    %c0_i32 = arith.constant 0 : i32
    %0 = arith.cmpi eq, %arg0, %c0_i32 : i32
    %1 = arith.extui %0 : i1 to i32
    %c0_i32_0 = arith.constant 0 : i32
    %2 = arith.cmpi ne, %1, %c0_i32_0 : i32
    scf.if %2 {
      %c0_112 = arith.constant 0 : index
      %c0_113 = arith.constant 0 : index
      %336 = vector.load %arg1[%c0_112, %c0_113] : memref<16x32xf32, #tpu.memory_space<vmem>>, vector<16x32xf32>
      %c0_114 = arith.constant 0 : index
      %c0_115 = arith.constant 0 : index
      %337 = vector.load %arg20[%c0_114, %c0_115] : memref<16x32xf32, #tpu.memory_space<vmem>>, vector<16x32xf32>
      tpu.vector_store %arg20[%c0_114, %c0_115], %336 {strides = array<i32>} : memref<16x32xf32, #tpu.memory_space<vmem>>, vector<16x32xf32>,
    } else {
    }
    %c0 = arith.constant 0 : index
    %c0_1 = arith.constant 0 : index
    %3 = vector.load %arg20[%c0, %c0_1] : memref<16x32xf32, #tpu.memory_space<vmem>>, vector<16x32xf32>
    %c0_2 = arith.constant 0 : index
    %c0_3 = arith.constant 0 : index
    %4 = vector.load %arg2[%c0_2, %c0_3] : memref<32x32xbf16, #tpu.memory_space<vmem>>, vector<32x32xbf16>
    %c0_4 = arith.constant 0 : index
    %c0_5 = arith.constant 0 : index
    %c0_6 = arith.constant 0 : index
    %5 = vector.load %arg17[%c0_4, %c0_5, %c0_6] : memref<1x4x32xf32, #tpu.memory_space<vmem>>, vector<1x4x32xf32>
    %6 = vector.shape_cast %5 : vector<1x4x32xf32> to vector<4x32xf32>
    %c0_7 = arith.constant 0 : index
    %c0_8 = arith.constant 0 : index
    %c0_9 = arith.constant 0 : index
    %7 = vector.load %arg18[%c0_7, %c0_8, %c0_9] : memref<1x4x32xf32, #tpu.memory_space<vmem>>, vector<1x4x32xf32>
    %8 = vector.shape_cast %7 : vector<1x4x32xf32> to vector<4x32xf32>
    %9 = arith.truncf %3 : vector<16x32xf32> to vector<16x32xbf16>
    %c0_10 = arith.constant 0 : index
    %c0_11 = arith.constant 0 : index
    %c0_12 = arith.constant 0 : index
    %10 = vector.load %arg3[%c0_10, %c0_11, %c0_12] : memref<1x32x96xbf16, #tpu.memory_space<vmem>>, vector<1x32x96xbf16>
    %11 = vector.shape_cast %10 : vector<1x32x96xbf16> to vector<32x96xbf16>
    %cst = arith.constant dense<0.000000e+00> : vector<16x96xf32>
    %12 = tpu.matmul %9, %11, %cst {dimension_numbers = #tpu.dot_dimension_numbers<[1], [0], [0], [1], [0, 0, 1, 1], [], []>} : vector<16x32xbf16>, vector<32x96xbf16>, vector<16x96xf32> -> vector<16x96xf32>
    %c0_13 = arith.constant 0 : index
    %c0_14 = arith.constant 0 : index
    %c0_15 = arith.constant 0 : index
    %13 = vector.load %arg4[%c0_13, %c0_14, %c0_15] : memref<1x1x96xf32, #tpu.memory_space<vmem>>, vector<1x1x96xf32>
    %14 = vector.shape_cast %13 : vector<1x1x96xf32> to vector<1x96xf32>
    %15 = vector.broadcast %14 : vector<1x96xf32> to vector<16x96xf32>
    %16 = arith.addf %12, %15 : vector<16x96xf32>
    %17 = vector.extract_strided_slice %16 {offsets = [0, 0], sizes = [16, 32], strides = [1, 1]} : vector<16x96xf32> to vector<16x32xf32>
    %18 = vector.extract_strided_slice %16 {offsets = [0, 32], sizes = [16, 32], strides = [1, 1]} : vector<16x96xf32> to vector<16x32xf32>
    %19 = vector.extract_strided_slice %16 {offsets = [0, 64], sizes = [16, 32], strides = [1, 1]} : vector<16x96xf32> to vector<16x32xf32>
    %c0_16 = arith.constant 0 : index
    %c0_17 = arith.constant 0 : index
    %c0_18 = arith.constant 0 : index
    %20 = vector.load %arg5[%c0_16, %c0_17, %c0_18] : memref<1x32x32xbf16, #tpu.memory_space<vmem>>, vector<1x32x32xbf16>
    %21 = vector.shape_cast %20 : vector<1x32x32xbf16> to vector<32x32xbf16>
    %c0_19 = arith.constant 0 : index
    %c0_20 = arith.constant 0 : index
    %c0_21 = arith.constant 0 : index
    %22 = vector.load %arg6[%c0_19, %c0_20, %c0_21] : memref<1x1x32xf32, #tpu.memory_space<vmem>>, vector<1x1x32xf32>
    %23 = vector.shape_cast %22 : vector<1x1x32xf32> to vector<1x32xf32>
    %24 = vector.shape_cast %17 : vector<16x32xf32> to vector<2x8x32xf32>
    %25 = vector.shape_cast %18 : vector<16x32xf32> to vector<2x8x32xf32>
    %26 = vector.shape_cast %19 : vector<16x32xf32> to vector<2x8x32xf32>
    %27 = vector.extract_strided_slice %24 {offsets = [0, 0, 0], sizes = [2, 8, 8], strides = [1, 1, 1]} : vector<2x8x32xf32> to vector<2x8x8xf32>
    %28 = arith.truncf %27 : vector<2x8x8xf32> to vector<2x8x8xbf16>
    %29 = vector.extract_strided_slice %25 {offsets = [0, 0, 0], sizes = [2, 8, 8], strides = [1, 1, 1]} : vector<2x8x32xf32> to vector<2x8x8xf32>
    %30 = arith.truncf %29 : vector<2x8x8xf32> to vector<2x8x8xbf16>
    %31 = vector.extract_strided_slice %26 {offsets = [0, 0, 0], sizes = [2, 8, 8], strides = [1, 1, 1]} : vector<2x8x32xf32> to vector<2x8x8xf32>
    %32 = arith.truncf %31 : vector<2x8x8xf32> to vector<2x8x8xbf16>
    %cst_22 = arith.constant dense<0.000000e+00> : vector<2x8x8xf32>
    %33 = tpu.matmul %28, %30, %cst_22 {dimension_numbers = #tpu.dot_dimension_numbers<[2], [2], [1], [1], [0, 0, 0, 1, 1, 1], [0], [0]>} : vector<2x8x8xbf16>, vector<2x8x8xbf16>, vector<2x8x8xf32> -> vector<2x8x8xf32>
    %cst_23 = arith.constant dense<0xFF800000> : vector<2x8xf32>
    %34 = vector.multi_reduction <maximumf>, %33, %cst_23 [2] : vector<2x8x8xf32> to vector<2x8xf32>
    %35 = vector.shape_cast %34 : vector<2x8xf32> to vector<2x8x1xf32>
    %36 = vector.broadcast %35 : vector<2x8x1xf32> to vector<2x8x8xf32>
    %37 = arith.subf %33, %36 : vector<2x8x8xf32>
    %38 = math.exp %37 : vector<2x8x8xf32>
    %cst_24 = arith.constant dense<0.000000e+00> : vector<2x8xf32>
    %39 = vector.multi_reduction <add>, %38, %cst_24 [2] : vector<2x8x8xf32> to vector<2x8xf32>
    %40 = vector.shape_cast %39 : vector<2x8xf32> to vector<2x8x1xf32>
    %41 = tpu.reciprocal %40 {approx = true} : vector<2x8x1xf32> -> vector<2x8x1xf32>
    %42 = vector.broadcast %41 : vector<2x8x1xf32> to vector<2x8x8xf32>
    %43 = arith.mulf %38, %42 : vector<2x8x8xf32>
    %44 = arith.truncf %43 : vector<2x8x8xf32> to vector<2x8x8xbf16>
    %cst_25 = arith.constant dense<0.000000e+00> : vector<2x8x8xf32>
    %45 = tpu.matmul %44, %32, %cst_25 {dimension_numbers = #tpu.dot_dimension_numbers<[2], [1], [1], [2], [0, 0, 0, 1, 1, 2], [0], [0]>} : vector<2x8x8xbf16>, vector<2x8x8xbf16>, vector<2x8x8xf32> -> vector<2x8x8xf32>
    %46 = arith.truncf %45 : vector<2x8x8xf32> to vector<2x8x8xbf16>
    %47 = vector.extract_strided_slice %24 {offsets = [0, 0, 8], sizes = [2, 8, 8], strides = [1, 1, 1]} : vector<2x8x32xf32> to vector<2x8x8xf32>
    %48 = arith.truncf %47 : vector<2x8x8xf32> to vector<2x8x8xbf16>
    %49 = vector.extract_strided_slice %25 {offsets = [0, 0, 8], sizes = [2, 8, 8], strides = [1, 1, 1]} : vector<2x8x32xf32> to vector<2x8x8xf32>
    %50 = arith.truncf %49 : vector<2x8x8xf32> to vector<2x8x8xbf16>
    %51 = vector.extract_strided_slice %26 {offsets = [0, 0, 8], sizes = [2, 8, 8], strides = [1, 1, 1]} : vector<2x8x32xf32> to vector<2x8x8xf32>
    %52 = arith.truncf %51 : vector<2x8x8xf32> to vector<2x8x8xbf16>
    %cst_26 = arith.constant dense<0.000000e+00> : vector<2x8x8xf32>
    %53 = tpu.matmul %48, %50, %cst_26 {dimension_numbers = #tpu.dot_dimension_numbers<[2], [2], [1], [1], [0, 0, 0, 1, 1, 1], [0], [0]>} : vector<2x8x8xbf16>, vector<2x8x8xbf16>, vector<2x8x8xf32> -> vector<2x8x8xf32>
    %cst_27 = arith.constant dense<0xFF800000> : vector<2x8xf32>
    %54 = vector.multi_reduction <maximumf>, %53, %cst_27 [2] : vector<2x8x8xf32> to vector<2x8xf32>
    %55 = vector.shape_cast %54 : vector<2x8xf32> to vector<2x8x1xf32>
    %56 = vector.broadcast %55 : vector<2x8x1xf32> to vector<2x8x8xf32>
    %57 = arith.subf %53, %56 : vector<2x8x8xf32>
    %58 = math.exp %57 : vector<2x8x8xf32>
    %cst_28 = arith.constant dense<0.000000e+00> : vector<2x8xf32>
    %59 = vector.multi_reduction <add>, %58, %cst_28 [2] : vector<2x8x8xf32> to vector<2x8xf32>
    %60 = vector.shape_cast %59 : vector<2x8xf32> to vector<2x8x1xf32>
    %61 = tpu.reciprocal %60 {approx = true} : vector<2x8x1xf32> -> vector<2x8x1xf32>
    %62 = vector.broadcast %61 : vector<2x8x1xf32> to vector<2x8x8xf32>
    %63 = arith.mulf %58, %62 : vector<2x8x8xf32>
    %64 = arith.truncf %63 : vector<2x8x8xf32> to vector<2x8x8xbf16>
    %cst_29 = arith.constant dense<0.000000e+00> : vector<2x8x8xf32>
    %65 = tpu.matmul %64, %52, %cst_29 {dimension_numbers = #tpu.dot_dimension_numbers<[2], [1], [1], [2], [0, 0, 0, 1, 1, 2], [0], [0]>} : vector<2x8x8xbf16>, vector<2x8x8xbf16>, vector<2x8x8xf32> -> vector<2x8x8xf32>
    %66 = arith.truncf %65 : vector<2x8x8xf32> to vector<2x8x8xbf16>
    %67 = vector.extract_strided_slice %24 {offsets = [0, 0, 16], sizes = [2, 8, 8], strides = [1, 1, 1]} : vector<2x8x32xf32> to vector<2x8x8xf32>
    %68 = arith.truncf %67 : vector<2x8x8xf32> to vector<2x8x8xbf16>
    %69 = vector.extract_strided_slice %25 {offsets = [0, 0, 16], sizes = [2, 8, 8], strides = [1, 1, 1]} : vector<2x8x32xf32> to vector<2x8x8xf32>
    %70 = arith.truncf %69 : vector<2x8x8xf32> to vector<2x8x8xbf16>
    %71 = vector.extract_strided_slice %26 {offsets = [0, 0, 16], sizes = [2, 8, 8], strides = [1, 1, 1]} : vector<2x8x32xf32> to vector<2x8x8xf32>
    %72 = arith.truncf %71 : vector<2x8x8xf32> to vector<2x8x8xbf16>
    %cst_30 = arith.constant dense<0.000000e+00> : vector<2x8x8xf32>
    %73 = tpu.matmul %68, %70, %cst_30 {dimension_numbers = #tpu.dot_dimension_numbers<[2], [2], [1], [1], [0, 0, 0, 1, 1, 1], [0], [0]>} : vector<2x8x8xbf16>, vector<2x8x8xbf16>, vector<2x8x8xf32> -> vector<2x8x8xf32>
    %cst_31 = arith.constant dense<0xFF800000> : vector<2x8xf32>
    %74 = vector.multi_reduction <maximumf>, %73, %cst_31 [2] : vector<2x8x8xf32> to vector<2x8xf32>
    %75 = vector.shape_cast %74 : vector<2x8xf32> to vector<2x8x1xf32>
    %76 = vector.broadcast %75 : vector<2x8x1xf32> to vector<2x8x8xf32>
    %77 = arith.subf %73, %76 : vector<2x8x8xf32>
    %78 = math.exp %77 : vector<2x8x8xf32>
    %cst_32 = arith.constant dense<0.000000e+00> : vector<2x8xf32>
    %79 = vector.multi_reduction <add>, %78, %cst_32 [2] : vector<2x8x8xf32> to vector<2x8xf32>
    %80 = vector.shape_cast %79 : vector<2x8xf32> to vector<2x8x1xf32>
    %81 = tpu.reciprocal %80 {approx = true} : vector<2x8x1xf32> -> vector<2x8x1xf32>
    %82 = vector.broadcast %81 : vector<2x8x1xf32> to vector<2x8x8xf32>
    %83 = arith.mulf %78, %82 : vector<2x8x8xf32>
    %84 = arith.truncf %83 : vector<2x8x8xf32> to vector<2x8x8xbf16>
    %cst_33 = arith.constant dense<0.000000e+00> : vector<2x8x8xf32>
    %85 = tpu.matmul %84, %72, %cst_33 {dimension_numbers = #tpu.dot_dimension_numbers<[2], [1], [1], [2], [0, 0, 0, 1, 1, 2], [0], [0]>} : vector<2x8x8xbf16>, vector<2x8x8xbf16>, vector<2x8x8xf32> -> vector<2x8x8xf32>
    %86 = arith.truncf %85 : vector<2x8x8xf32> to vector<2x8x8xbf16>
    %87 = vector.extract_strided_slice %24 {offsets = [0, 0, 24], sizes = [2, 8, 8], strides = [1, 1, 1]} : vector<2x8x32xf32> to vector<2x8x8xf32>
    %88 = arith.truncf %87 : vector<2x8x8xf32> to vector<2x8x8xbf16>
    %89 = vector.extract_strided_slice %25 {offsets = [0, 0, 24], sizes = [2, 8, 8], strides = [1, 1, 1]} : vector<2x8x32xf32> to vector<2x8x8xf32>
    %90 = arith.truncf %89 : vector<2x8x8xf32> to vector<2x8x8xbf16>
    %91 = vector.extract_strided_slice %26 {offsets = [0, 0, 24], sizes = [2, 8, 8], strides = [1, 1, 1]} : vector<2x8x32xf32> to vector<2x8x8xf32>
    %92 = arith.truncf %91 : vector<2x8x8xf32> to vector<2x8x8xbf16>
    %cst_34 = arith.constant dense<0.000000e+00> : vector<2x8x8xf32>
    %93 = tpu.matmul %88, %90, %cst_34 {dimension_numbers = #tpu.dot_dimension_numbers<[2], [2], [1], [1], [0, 0, 0, 1, 1, 1], [0], [0]>} : vector<2x8x8xbf16>, vector<2x8x8xbf16>, vector<2x8x8xf32> -> vector<2x8x8xf32>
    %cst_35 = arith.constant dense<0xFF800000> : vector<2x8xf32>
    %94 = vector.multi_reduction <maximumf>, %93, %cst_35 [2] : vector<2x8x8xf32> to vector<2x8xf32>
    %95 = vector.shape_cast %94 : vector<2x8xf32> to vector<2x8x1xf32>
    %96 = vector.broadcast %95 : vector<2x8x1xf32> to vector<2x8x8xf32>
    %97 = arith.subf %93, %96 : vector<2x8x8xf32>
    %98 = math.exp %97 : vector<2x8x8xf32>
    %cst_36 = arith.constant dense<0.000000e+00> : vector<2x8xf32>
    %99 = vector.multi_reduction <add>, %98, %cst_36 [2] : vector<2x8x8xf32> to vector<2x8xf32>
    %100 = vector.shape_cast %99 : vector<2x8xf32> to vector<2x8x1xf32>
    %101 = tpu.reciprocal %100 {approx = true} : vector<2x8x1xf32> -> vector<2x8x1xf32>
    %102 = vector.broadcast %101 : vector<2x8x1xf32> to vector<2x8x8xf32>
    %103 = arith.mulf %98, %102 : vector<2x8x8xf32>
    %104 = arith.truncf %103 : vector<2x8x8xf32> to vector<2x8x8xbf16>
    %cst_37 = arith.constant dense<0.000000e+00> : vector<2x8x8xf32>
    %105 = tpu.matmul %104, %92, %cst_37 {dimension_numbers = #tpu.dot_dimension_numbers<[2], [1], [1], [2], [0, 0, 0, 1, 1, 2], [0], [0]>} : vector<2x8x8xbf16>, vector<2x8x8xbf16>, vector<2x8x8xf32> -> vector<2x8x8xf32>
    %106 = arith.truncf %105 : vector<2x8x8xf32> to vector<2x8x8xbf16>
    %107 = tpu.concatenate %46, %66, %86, %106 in 2 : vector<2x8x8xbf16>, vector<2x8x8xbf16>, vector<2x8x8xbf16>, vector<2x8x8xbf16> -> vector<2x8x32xbf16>
    %108 = vector.shape_cast %107 : vector<2x8x32xbf16> to vector<16x32xbf16>
    %cst_38 = arith.constant dense<0.000000e+00> : vector<16x32xf32>
    %109 = tpu.matmul %108, %21, %cst_38 {dimension_numbers = #tpu.dot_dimension_numbers<[1], [0], [0], [1], [0, 0, 1, 1], [], []>} : vector<16x32xbf16>, vector<32x32xbf16>, vector<16x32xf32> -> vector<16x32xf32>
    %110 = vector.broadcast %23 : vector<1x32xf32> to vector<16x32xf32>
    %111 = arith.addf %109, %110 : vector<16x32xf32>
    %112 = arith.addf %3, %111 : vector<16x32xf32>
    %cst_39 = arith.constant dense<0.000000e+00> : vector<16xf32>
    %113 = vector.multi_reduction <add>, %112, %cst_39 [1] : vector<16x32xf32> to vector<16xf32>
    %114 = vector.shape_cast %113 : vector<16xf32> to vector<16x1xf32>
    %cst_40 = arith.constant 3.200000e+01 : f32
    %115 = vector.broadcast %cst_40 : f32 to vector<16x1xf32>
    %116 = arith.divf %114, %115 : vector<16x1xf32>
    %117 = arith.mulf %112, %112 : vector<16x32xf32>
    %cst_41 = arith.constant dense<0.000000e+00> : vector<16xf32>
    %118 = vector.multi_reduction <add>, %117, %cst_41 [1] : vector<16x32xf32> to vector<16xf32>
    %119 = vector.shape_cast %118 : vector<16xf32> to vector<16x1xf32>
    %cst_42 = arith.constant 3.200000e+01 : f32
    %120 = vector.broadcast %cst_42 : f32 to vector<16x1xf32>
    %121 = arith.divf %119, %120 : vector<16x1xf32>
    %122 = arith.mulf %116, %116 : vector<16x1xf32>
    %123 = arith.subf %121, %122 : vector<16x1xf32>
    %cst_43 = arith.constant 0.000000e+00 : f32
    %124 = vector.broadcast %cst_43 : f32 to vector<16x1xf32>
    %125 = arith.maximumf %123, %124 : vector<16x1xf32>
    %126 = vector.broadcast %116 : vector<16x1xf32> to vector<16x32xf32>
    %127 = arith.subf %112, %126 : vector<16x32xf32>
    %cst_44 = arith.constant 9.99999974E-6 : f32
    %128 = vector.broadcast %cst_44 : f32 to vector<16x1xf32>
    %129 = arith.addf %125, %128 : vector<16x1xf32>
    %130 = math.rsqrt %129 : vector<16x1xf32>
    %131 = vector.broadcast %130 : vector<16x1xf32> to vector<16x32xf32>
    %132 = arith.mulf %127, %131 : vector<16x32xf32>
    %133 = vector.extract_strided_slice %6 {offsets = [0, 0], sizes = [1, 32], strides = [1, 1]} : vector<4x32xf32> to vector<1x32xf32>
    %134 = vector.shape_cast %133 : vector<1x32xf32> to vector<32xf32>
    %135 = vector.shape_cast %134 : vector<32xf32> to vector<1x32xf32>
    %136 = vector.broadcast %135 : vector<1x32xf32> to vector<16x32xf32>
    %137 = arith.mulf %132, %136 : vector<16x32xf32>
    %138 = vector.extract_strided_slice %8 {offsets = [0, 0], sizes = [1, 32], strides = [1, 1]} : vector<4x32xf32> to vector<1x32xf32>
    %139 = vector.shape_cast %138 : vector<1x32xf32> to vector<32xf32>
    %140 = vector.shape_cast %139 : vector<32xf32> to vector<1x32xf32>
    %141 = vector.broadcast %140 : vector<1x32xf32> to vector<16x32xf32>
    %142 = arith.addf %137, %141 : vector<16x32xf32>
    %143 = arith.truncf %142 : vector<16x32xf32> to vector<16x32xbf16>
    %c0_45 = arith.constant 0 : index
    %c0_46 = arith.constant 0 : index
    %c0_47 = arith.constant 0 : index
    %144 = vector.load %arg7[%c0_45, %c0_46, %c0_47] : memref<1x32x32xbf16, #tpu.memory_space<vmem>>, vector<1x32x32xbf16>
    %145 = vector.shape_cast %144 : vector<1x32x32xbf16> to vector<32x32xbf16>
    %cst_48 = arith.constant dense<0.000000e+00> : vector<16x32xf32>
    %146 = tpu.matmul %143, %145, %cst_48 {dimension_numbers = #tpu.dot_dimension_numbers<[1], [0], [0], [1], [0, 0, 1, 1], [], []>} : vector<16x32xbf16>, vector<32x32xbf16>, vector<16x32xf32> -> vector<16x32xf32>
    %c0_49 = arith.constant 0 : index
    %c0_50 = arith.constant 0 : index
    %c0_51 = arith.constant 0 : index
    %147 = vector.load %arg8[%c0_49, %c0_50, %c0_51] : memref<1x1x32xf32, #tpu.memory_space<vmem>>, vector<1x1x32xf32>
    %148 = vector.shape_cast %147 : vector<1x1x32xf32> to vector<1x32xf32>
    %149 = vector.broadcast %148 : vector<1x32xf32> to vector<16x32xf32>
    %150 = arith.addf %146, %149 : vector<16x32xf32>
    %c0_52 = arith.constant 0 : index
    %c0_53 = arith.constant 0 : index
    %c0_54 = arith.constant 0 : index
    %151 = vector.load %arg9[%c0_52, %c0_53, %c0_54] : memref<1x32x64xbf16, #tpu.memory_space<vmem>>, vector<1x32x64xbf16>
    %152 = vector.shape_cast %151 : vector<1x32x64xbf16> to vector<32x64xbf16>
    %cst_55 = arith.constant dense<0.000000e+00> : vector<32x64xf32>
    %153 = tpu.matmul %4, %152, %cst_55 {dimension_numbers = #tpu.dot_dimension_numbers<[1], [0], [0], [1], [0, 0, 1, 1], [], []>} : vector<32x32xbf16>, vector<32x64xbf16>, vector<32x64xf32> -> vector<32x64xf32>
    %c0_56 = arith.constant 0 : index
    %c0_57 = arith.constant 0 : index
    %c0_58 = arith.constant 0 : index
    %154 = vector.load %arg10[%c0_56, %c0_57, %c0_58] : memref<1x1x64xf32, #tpu.memory_space<vmem>>, vector<1x1x64xf32>
    %155 = vector.shape_cast %154 : vector<1x1x64xf32> to vector<1x64xf32>
    %156 = vector.broadcast %155 : vector<1x64xf32> to vector<32x64xf32>
    %157 = arith.addf %153, %156 : vector<32x64xf32>
    %158 = vector.extract_strided_slice %157 {offsets = [0, 0], sizes = [32, 32], strides = [1, 1]} : vector<32x64xf32> to vector<32x32xf32>
    %159 = vector.extract_strided_slice %157 {offsets = [0, 32], sizes = [32, 32], strides = [1, 1]} : vector<32x64xf32> to vector<32x32xf32>
    %c0_59 = arith.constant 0 : index
    %c0_60 = arith.constant 0 : index
    %c0_61 = arith.constant 0 : index
    %160 = vector.load %arg11[%c0_59, %c0_60, %c0_61] : memref<1x32x32xbf16, #tpu.memory_space<vmem>>, vector<1x32x32xbf16>
    %161 = vector.shape_cast %160 : vector<1x32x32xbf16> to vector<32x32xbf16>
    %c0_62 = arith.constant 0 : index
    %c0_63 = arith.constant 0 : index
    %c0_64 = arith.constant 0 : index
    %162 = vector.load %arg12[%c0_62, %c0_63, %c0_64] : memref<1x1x32xf32, #tpu.memory_space<vmem>>, vector<1x1x32xf32>
    %163 = vector.shape_cast %162 : vector<1x1x32xf32> to vector<1x32xf32>
    %164 = vector.shape_cast %150 : vector<16x32xf32> to vector<2x8x32xf32>
    %165 = vector.shape_cast %158 : vector<32x32xf32> to vector<2x16x32xf32>
    %166 = vector.shape_cast %159 : vector<32x32xf32> to vector<2x16x32xf32>
    %167 = vector.extract_strided_slice %164 {offsets = [0, 0, 0], sizes = [2, 8, 8], strides = [1, 1, 1]} : vector<2x8x32xf32> to vector<2x8x8xf32>
    %168 = arith.truncf %167 : vector<2x8x8xf32> to vector<2x8x8xbf16>
    %169 = vector.extract_strided_slice %165 {offsets = [0, 0, 0], sizes = [2, 16, 8], strides = [1, 1, 1]} : vector<2x16x32xf32> to vector<2x16x8xf32>
    %170 = arith.truncf %169 : vector<2x16x8xf32> to vector<2x16x8xbf16>
    %171 = vector.extract_strided_slice %166 {offsets = [0, 0, 0], sizes = [2, 16, 8], strides = [1, 1, 1]} : vector<2x16x32xf32> to vector<2x16x8xf32>
    %172 = arith.truncf %171 : vector<2x16x8xf32> to vector<2x16x8xbf16>
    %cst_65 = arith.constant dense<0.000000e+00> : vector<2x8x16xf32>
    %173 = tpu.matmul %168, %170, %cst_65 {dimension_numbers = #tpu.dot_dimension_numbers<[2], [2], [1], [1], [0, 0, 0, 1, 1, 1], [0], [0]>} : vector<2x8x8xbf16>, vector<2x16x8xbf16>, vector<2x8x16xf32> -> vector<2x8x16xf32>
    %cst_66 = arith.constant dense<0xFF800000> : vector<2x8xf32>
    %174 = vector.multi_reduction <maximumf>, %173, %cst_66 [2] : vector<2x8x16xf32> to vector<2x8xf32>
    %175 = vector.shape_cast %174 : vector<2x8xf32> to vector<2x8x1xf32>
    %176 = vector.broadcast %175 : vector<2x8x1xf32> to vector<2x8x16xf32>
    %177 = arith.subf %173, %176 : vector<2x8x16xf32>
    %178 = math.exp %177 : vector<2x8x16xf32>
    %cst_67 = arith.constant dense<0.000000e+00> : vector<2x8xf32>
    %179 = vector.multi_reduction <add>, %178, %cst_67 [2] : vector<2x8x16xf32> to vector<2x8xf32>
    %180 = vector.shape_cast %179 : vector<2x8xf32> to vector<2x8x1xf32>
    %181 = tpu.reciprocal %180 {approx = true} : vector<2x8x1xf32> -> vector<2x8x1xf32>
    %182 = vector.broadcast %181 : vector<2x8x1xf32> to vector<2x8x16xf32>
    %183 = arith.mulf %178, %182 : vector<2x8x16xf32>
    %184 = arith.truncf %183 : vector<2x8x16xf32> to vector<2x8x16xbf16>
    %cst_68 = arith.constant dense<0.000000e+00> : vector<2x8x8xf32>
    %185 = tpu.matmul %184, %172, %cst_68 {dimension_numbers = #tpu.dot_dimension_numbers<[2], [1], [1], [2], [0, 0, 0, 1, 1, 2], [0], [0]>} : vector<2x8x16xbf16>, vector<2x16x8xbf16>, vector<2x8x8xf32> -> vector<2x8x8xf32>
    %186 = arith.truncf %185 : vector<2x8x8xf32> to vector<2x8x8xbf16>
    %187 = vector.extract_strided_slice %164 {offsets = [0, 0, 8], sizes = [2, 8, 8], strides = [1, 1, 1]} : vector<2x8x32xf32> to vector<2x8x8xf32>
    %188 = arith.truncf %187 : vector<2x8x8xf32> to vector<2x8x8xbf16>
    %189 = vector.extract_strided_slice %165 {offsets = [0, 0, 8], sizes = [2, 16, 8], strides = [1, 1, 1]} : vector<2x16x32xf32> to vector<2x16x8xf32>
    %190 = arith.truncf %189 : vector<2x16x8xf32> to vector<2x16x8xbf16>
    %191 = vector.extract_strided_slice %166 {offsets = [0, 0, 8], sizes = [2, 16, 8], strides = [1, 1, 1]} : vector<2x16x32xf32> to vector<2x16x8xf32>
    %192 = arith.truncf %191 : vector<2x16x8xf32> to vector<2x16x8xbf16>
    %cst_69 = arith.constant dense<0.000000e+00> : vector<2x8x16xf32>
    %193 = tpu.matmul %188, %190, %cst_69 {dimension_numbers = #tpu.dot_dimension_numbers<[2], [2], [1], [1], [0, 0, 0, 1, 1, 1], [0], [0]>} : vector<2x8x8xbf16>, vector<2x16x8xbf16>, vector<2x8x16xf32> -> vector<2x8x16xf32>
    %cst_70 = arith.constant dense<0xFF800000> : vector<2x8xf32>
    %194 = vector.multi_reduction <maximumf>, %193, %cst_70 [2] : vector<2x8x16xf32> to vector<2x8xf32>
    %195 = vector.shape_cast %194 : vector<2x8xf32> to vector<2x8x1xf32>
    %196 = vector.broadcast %195 : vector<2x8x1xf32> to vector<2x8x16xf32>
    %197 = arith.subf %193, %196 : vector<2x8x16xf32>
    %198 = math.exp %197 : vector<2x8x16xf32>
    %cst_71 = arith.constant dense<0.000000e+00> : vector<2x8xf32>
    %199 = vector.multi_reduction <add>, %198, %cst_71 [2] : vector<2x8x16xf32> to vector<2x8xf32>
    %200 = vector.shape_cast %199 : vector<2x8xf32> to vector<2x8x1xf32>
    %201 = tpu.reciprocal %200 {approx = true} : vector<2x8x1xf32> -> vector<2x8x1xf32>
    %202 = vector.broadcast %201 : vector<2x8x1xf32> to vector<2x8x16xf32>
    %203 = arith.mulf %198, %202 : vector<2x8x16xf32>
    %204 = arith.truncf %203 : vector<2x8x16xf32> to vector<2x8x16xbf16>
    %cst_72 = arith.constant dense<0.000000e+00> : vector<2x8x8xf32>
    %205 = tpu.matmul %204, %192, %cst_72 {dimension_numbers = #tpu.dot_dimension_numbers<[2], [1], [1], [2], [0, 0, 0, 1, 1, 2], [0], [0]>} : vector<2x8x16xbf16>, vector<2x16x8xbf16>, vector<2x8x8xf32> -> vector<2x8x8xf32>
    %206 = arith.truncf %205 : vector<2x8x8xf32> to vector<2x8x8xbf16>
    %207 = vector.extract_strided_slice %164 {offsets = [0, 0, 16], sizes = [2, 8, 8], strides = [1, 1, 1]} : vector<2x8x32xf32> to vector<2x8x8xf32>
    %208 = arith.truncf %207 : vector<2x8x8xf32> to vector<2x8x8xbf16>
    %209 = vector.extract_strided_slice %165 {offsets = [0, 0, 16], sizes = [2, 16, 8], strides = [1, 1, 1]} : vector<2x16x32xf32> to vector<2x16x8xf32>
    %210 = arith.truncf %209 : vector<2x16x8xf32> to vector<2x16x8xbf16>
    %211 = vector.extract_strided_slice %166 {offsets = [0, 0, 16], sizes = [2, 16, 8], strides = [1, 1, 1]} : vector<2x16x32xf32> to vector<2x16x8xf32>
    %212 = arith.truncf %211 : vector<2x16x8xf32> to vector<2x16x8xbf16>
    %cst_73 = arith.constant dense<0.000000e+00> : vector<2x8x16xf32>
    %213 = tpu.matmul %208, %210, %cst_73 {dimension_numbers = #tpu.dot_dimension_numbers<[2], [2], [1], [1], [0, 0, 0, 1, 1, 1], [0], [0]>} : vector<2x8x8xbf16>, vector<2x16x8xbf16>, vector<2x8x16xf32> -> vector<2x8x16xf32>
    %cst_74 = arith.constant dense<0xFF800000> : vector<2x8xf32>
    %214 = vector.multi_reduction <maximumf>, %213, %cst_74 [2] : vector<2x8x16xf32> to vector<2x8xf32>
    %215 = vector.shape_cast %214 : vector<2x8xf32> to vector<2x8x1xf32>
    %216 = vector.broadcast %215 : vector<2x8x1xf32> to vector<2x8x16xf32>
    %217 = arith.subf %213, %216 : vector<2x8x16xf32>
    %218 = math.exp %217 : vector<2x8x16xf32>
    %cst_75 = arith.constant dense<0.000000e+00> : vector<2x8xf32>
    %219 = vector.multi_reduction <add>, %218, %cst_75 [2] : vector<2x8x16xf32> to vector<2x8xf32>
    %220 = vector.shape_cast %219 : vector<2x8xf32> to vector<2x8x1xf32>
    %221 = tpu.reciprocal %220 {approx = true} : vector<2x8x1xf32> -> vector<2x8x1xf32>
    %222 = vector.broadcast %221 : vector<2x8x1xf32> to vector<2x8x16xf32>
    %223 = arith.mulf %218, %222 : vector<2x8x16xf32>
    %224 = arith.truncf %223 : vector<2x8x16xf32> to vector<2x8x16xbf16>
    %cst_76 = arith.constant dense<0.000000e+00> : vector<2x8x8xf32>
    %225 = tpu.matmul %224, %212, %cst_76 {dimension_numbers = #tpu.dot_dimension_numbers<[2], [1], [1], [2], [0, 0, 0, 1, 1, 2], [0], [0]>} : vector<2x8x16xbf16>, vector<2x16x8xbf16>, vector<2x8x8xf32> -> vector<2x8x8xf32>
    %226 = arith.truncf %225 : vector<2x8x8xf32> to vector<2x8x8xbf16>
    %227 = vector.extract_strided_slice %164 {offsets = [0, 0, 24], sizes = [2, 8, 8], strides = [1, 1, 1]} : vector<2x8x32xf32> to vector<2x8x8xf32>
    %228 = arith.truncf %227 : vector<2x8x8xf32> to vector<2x8x8xbf16>
    %229 = vector.extract_strided_slice %165 {offsets = [0, 0, 24], sizes = [2, 16, 8], strides = [1, 1, 1]} : vector<2x16x32xf32> to vector<2x16x8xf32>
    %230 = arith.truncf %229 : vector<2x16x8xf32> to vector<2x16x8xbf16>
    %231 = vector.extract_strided_slice %166 {offsets = [0, 0, 24], sizes = [2, 16, 8], strides = [1, 1, 1]} : vector<2x16x32xf32> to vector<2x16x8xf32>
    %232 = arith.truncf %231 : vector<2x16x8xf32> to vector<2x16x8xbf16>
    %cst_77 = arith.constant dense<0.000000e+00> : vector<2x8x16xf32>
    %233 = tpu.matmul %228, %230, %cst_77 {dimension_numbers = #tpu.dot_dimension_numbers<[2], [2], [1], [1], [0, 0, 0, 1, 1, 1], [0], [0]>} : vector<2x8x8xbf16>, vector<2x16x8xbf16>, vector<2x8x16xf32> -> vector<2x8x16xf32>
    %cst_78 = arith.constant dense<0xFF800000> : vector<2x8xf32>
    %234 = vector.multi_reduction <maximumf>, %233, %cst_78 [2] : vector<2x8x16xf32> to vector<2x8xf32>
    %235 = vector.shape_cast %234 : vector<2x8xf32> to vector<2x8x1xf32>
    %236 = vector.broadcast %235 : vector<2x8x1xf32> to vector<2x8x16xf32>
    %237 = arith.subf %233, %236 : vector<2x8x16xf32>
    %238 = math.exp %237 : vector<2x8x16xf32>
    %cst_79 = arith.constant dense<0.000000e+00> : vector<2x8xf32>
    %239 = vector.multi_reduction <add>, %238, %cst_79 [2] : vector<2x8x16xf32> to vector<2x8xf32>
    %240 = vector.shape_cast %239 : vector<2x8xf32> to vector<2x8x1xf32>
    %241 = tpu.reciprocal %240 {approx = true} : vector<2x8x1xf32> -> vector<2x8x1xf32>
    %242 = vector.broadcast %241 : vector<2x8x1xf32> to vector<2x8x16xf32>
    %243 = arith.mulf %238, %242 : vector<2x8x16xf32>
    %244 = arith.truncf %243 : vector<2x8x16xf32> to vector<2x8x16xbf16>
    %cst_80 = arith.constant dense<0.000000e+00> : vector<2x8x8xf32>
    %245 = tpu.matmul %244, %232, %cst_80 {dimension_numbers = #tpu.dot_dimension_numbers<[2], [1], [1], [2], [0, 0, 0, 1, 1, 2], [0], [0]>} : vector<2x8x16xbf16>, vector<2x16x8xbf16>, vector<2x8x8xf32> -> vector<2x8x8xf32>
    %246 = arith.truncf %245 : vector<2x8x8xf32> to vector<2x8x8xbf16>
    %247 = tpu.concatenate %186, %206, %226, %246 in 2 : vector<2x8x8xbf16>, vector<2x8x8xbf16>, vector<2x8x8xbf16>, vector<2x8x8xbf16> -> vector<2x8x32xbf16>
    %248 = vector.shape_cast %247 : vector<2x8x32xbf16> to vector<16x32xbf16>
    %cst_81 = arith.constant dense<0.000000e+00> : vector<16x32xf32>
    %249 = tpu.matmul %248, %161, %cst_81 {dimension_numbers = #tpu.dot_dimension_numbers<[1], [0], [0], [1], [0, 0, 1, 1], [], []>} : vector<16x32xbf16>, vector<32x32xbf16>, vector<16x32xf32> -> vector<16x32xf32>
    %250 = vector.broadcast %163 : vector<1x32xf32> to vector<16x32xf32>
    %251 = arith.addf %249, %250 : vector<16x32xf32>
    %252 = arith.addf %142, %251 : vector<16x32xf32>
    %cst_82 = arith.constant dense<0.000000e+00> : vector<16xf32>
    %253 = vector.multi_reduction <add>, %252, %cst_82 [1] : vector<16x32xf32> to vector<16xf32>
    %254 = vector.shape_cast %253 : vector<16xf32> to vector<16x1xf32>
    %cst_83 = arith.constant 3.200000e+01 : f32
    %255 = vector.broadcast %cst_83 : f32 to vector<16x1xf32>
    %256 = arith.divf %254, %255 : vector<16x1xf32>
    %257 = arith.mulf %252, %252 : vector<16x32xf32>
    %cst_84 = arith.constant dense<0.000000e+00> : vector<16xf32>
    %258 = vector.multi_reduction <add>, %257, %cst_84 [1] : vector<16x32xf32> to vector<16xf32>
    %259 = vector.shape_cast %258 : vector<16xf32> to vector<16x1xf32>
    %cst_85 = arith.constant 3.200000e+01 : f32
    %260 = vector.broadcast %cst_85 : f32 to vector<16x1xf32>
    %261 = arith.divf %259, %260 : vector<16x1xf32>
    %262 = arith.mulf %256, %256 : vector<16x1xf32>
    %263 = arith.subf %261, %262 : vector<16x1xf32>
    %cst_86 = arith.constant 0.000000e+00 : f32
    %264 = vector.broadcast %cst_86 : f32 to vector<16x1xf32>
    %265 = arith.maximumf %263, %264 : vector<16x1xf32>
    %266 = vector.broadcast %256 : vector<16x1xf32> to vector<16x32xf32>
    %267 = arith.subf %252, %266 : vector<16x32xf32>
    %cst_87 = arith.constant 9.99999974E-6 : f32
    %268 = vector.broadcast %cst_87 : f32 to vector<16x1xf32>
    %269 = arith.addf %265, %268 : vector<16x1xf32>
    %270 = math.rsqrt %269 : vector<16x1xf32>
    %271 = vector.broadcast %270 : vector<16x1xf32> to vector<16x32xf32>
    %272 = arith.mulf %267, %271 : vector<16x32xf32>
    %273 = vector.extract_strided_slice %6 {offsets = [1, 0], sizes = [1, 32], strides = [1, 1]} : vector<4x32xf32> to vector<1x32xf32>
    %274 = vector.shape_cast %273 : vector<1x32xf32> to vector<32xf32>
    %275 = vector.shape_cast %274 : vector<32xf32> to vector<1x32xf32>
    %276 = vector.broadcast %275 : vector<1x32xf32> to vector<16x32xf32>
    %277 = arith.mulf %272, %276 : vector<16x32xf32>
    %278 = vector.extract_strided_slice %8 {offsets = [1, 0], sizes = [1, 32], strides = [1, 1]} : vector<4x32xf32> to vector<1x32xf32>
    %279 = vector.shape_cast %278 : vector<1x32xf32> to vector<32xf32>
    %280 = vector.shape_cast %279 : vector<32xf32> to vector<1x32xf32>
    %281 = vector.broadcast %280 : vector<1x32xf32> to vector<16x32xf32>
    %282 = arith.addf %277, %281 : vector<16x32xf32>
    %283 = arith.truncf %282 : vector<16x32xf32> to vector<16x32xbf16>
    %c0_88 = arith.constant 0 : index
    %c0_89 = arith.constant 0 : index
    %c0_90 = arith.constant 0 : index
    %284 = vector.load %arg13[%c0_88, %c0_89, %c0_90] : memref<1x32x64xbf16, #tpu.memory_space<vmem>>, vector<1x32x64xbf16>
    %285 = vector.shape_cast %284 : vector<1x32x64xbf16> to vector<32x64xbf16>
    %cst_91 = arith.constant dense<0.000000e+00> : vector<16x64xf32>
    %286 = tpu.matmul %283, %285, %cst_91 {dimension_numbers = #tpu.dot_dimension_numbers<[1], [0], [0], [1], [0, 0, 1, 1], [], []>} : vector<16x32xbf16>, vector<32x64xbf16>, vector<16x64xf32> -> vector<16x64xf32>
    %c0_92 = arith.constant 0 : index
    %c0_93 = arith.constant 0 : index
    %c0_94 = arith.constant 0 : index
    %287 = vector.load %arg14[%c0_92, %c0_93, %c0_94] : memref<1x1x64xf32, #tpu.memory_space<vmem>>, vector<1x1x64xf32>
    %288 = vector.shape_cast %287 : vector<1x1x64xf32> to vector<1x64xf32>
    %289 = vector.broadcast %288 : vector<1x64xf32> to vector<16x64xf32>
    %290 = arith.addf %286, %289 : vector<16x64xf32>
    %cst_95 = arith.constant 0.000000e+00 : f32
    %291 = vector.broadcast %cst_95 : f32 to vector<16x64xf32>
    %292 = arith.maximumf %290, %291 : vector<16x64xf32>
    %293 = arith.truncf %292 : vector<16x64xf32> to vector<16x64xbf16>
    %c0_96 = arith.constant 0 : index
    %c0_97 = arith.constant 0 : index
    %c0_98 = arith.constant 0 : index
    %294 = vector.load %arg15[%c0_96, %c0_97, %c0_98] : memref<1x64x32xbf16, #tpu.memory_space<vmem>>, vector<1x64x32xbf16>
    %295 = vector.shape_cast %294 : vector<1x64x32xbf16> to vector<64x32xbf16>
    %cst_99 = arith.constant dense<0.000000e+00> : vector<16x32xf32>
    %296 = tpu.matmul %293, %295, %cst_99 {dimension_numbers = #tpu.dot_dimension_numbers<[1], [0], [0], [1], [0, 0, 1, 1], [], []>} : vector<16x64xbf16>, vector<64x32xbf16>, vector<16x32xf32> -> vector<16x32xf32>
    %c0_100 = arith.constant 0 : index
    %c0_101 = arith.constant 0 : index
    %c0_102 = arith.constant 0 : index
    %297 = vector.load %arg16[%c0_100, %c0_101, %c0_102] : memref<1x1x32xf32, #tpu.memory_space<vmem>>, vector<1x1x32xf32>
    %298 = vector.shape_cast %297 : vector<1x1x32xf32> to vector<1x32xf32>
    %299 = vector.broadcast %298 : vector<1x32xf32> to vector<16x32xf32>
    %300 = arith.addf %296, %299 : vector<16x32xf32>
    %301 = arith.addf %282, %300 : vector<16x32xf32>
    %cst_103 = arith.constant dense<0.000000e+00> : vector<16xf32>
    %302 = vector.multi_reduction <add>, %301, %cst_103 [1] : vector<16x32xf32> to vector<16xf32>
    %303 = vector.shape_cast %302 : vector<16xf32> to vector<16x1xf32>
    %cst_104 = arith.constant 3.200000e+01 : f32
    %304 = vector.broadcast %cst_104 : f32 to vector<16x1xf32>
    %305 = arith.divf %303, %304 : vector<16x1xf32>
    %306 = arith.mulf %301, %301 : vector<16x32xf32>
    %cst_105 = arith.constant dense<0.000000e+00> : vector<16xf32>
    %307 = vector.multi_reduction <add>, %306, %cst_105 [1] : vector<16x32xf32> to vector<16xf32>
    %308 = vector.shape_cast %307 : vector<16xf32> to vector<16x1xf32>
    %cst_106 = arith.constant 3.200000e+01 : f32
    %309 = vector.broadcast %cst_106 : f32 to vector<16x1xf32>
    %310 = arith.divf %308, %309 : vector<16x1xf32>
    %311 = arith.mulf %305, %305 : vector<16x1xf32>
    %312 = arith.subf %310, %311 : vector<16x1xf32>
    %cst_107 = arith.constant 0.000000e+00 : f32
    %313 = vector.broadcast %cst_107 : f32 to vector<16x1xf32>
    %314 = arith.maximumf %312, %313 : vector<16x1xf32>
    %315 = vector.broadcast %305 : vector<16x1xf32> to vector<16x32xf32>
    %316 = arith.subf %301, %315 : vector<16x32xf32>
    %cst_108 = arith.constant 9.99999974E-6 : f32
    %317 = vector.broadcast %cst_108 : f32 to vector<16x1xf32>
    %318 = arith.addf %314, %317 : vector<16x1xf32>
    %319 = math.rsqrt %318 : vector<16x1xf32>
    %320 = vector.broadcast %319 : vector<16x1xf32> to vector<16x32xf32>
    %321 = arith.mulf %316, %320 : vector<16x32xf32>
    %322 = vector.extract_strided_slice %6 {offsets = [2, 0], sizes = [1, 32], strides = [1, 1]} : vector<4x32xf32> to vector<1x32xf32>
    %323 = vector.shape_cast %322 : vector<1x32xf32> to vector<32xf32>
    %324 = vector.shape_cast %323 : vector<32xf32> to vector<1x32xf32>
    %325 = vector.broadcast %324 : vector<1x32xf32> to vector<16x32xf32>
    %326 = arith.mulf %321, %325 : vector<16x32xf32>
    %327 = vector.extract_strided_slice %8 {offsets = [2, 0], sizes = [1, 32], strides = [1, 1]} : vector<4x32xf32> to vector<1x32xf32>
    %328 = vector.shape_cast %327 : vector<1x32xf32> to vector<32xf32>
    %329 = vector.shape_cast %328 : vector<32xf32> to vector<1x32xf32>
    %330 = vector.broadcast %329 : vector<1x32xf32> to vector<16x32xf32>
    %331 = arith.addf %326, %330 : vector<16x32xf32>
    %c0_109 = arith.constant 0 : index
    %c0_110 = arith.constant 0 : index
    %332 = vector.load %arg20[%c0_109, %c0_110] : memref<16x32xf32, #tpu.memory_space<vmem>>, vector<16x32xf32>
    tpu.vector_store %arg20[%c0_109, %c0_110], %331 {strides = array<i32>} : memref<16x32xf32, #tpu.memory_space<vmem>>, vector<16x32xf32>,
    %c1_i32 = arith.constant 1 : i32
    %333 = arith.cmpi eq, %arg0, %c1_i32 : i32
    %334 = arith.extui %333 : i1 to i32
    %c0_i32_111 = arith.constant 0 : i32
    %335 = arith.cmpi ne, %334, %c0_i32_111 : i32
    scf.if %335 {
      %cst_112 = arith.constant dense<0.000000e+00> : vector<16xf32>
      %336 = vector.multi_reduction <add>, %331, %cst_112 [1] : vector<16x32xf32> to vector<16xf32>
      %337 = vector.shape_cast %336 : vector<16xf32> to vector<16x1xf32>
      %cst_113 = arith.constant 3.200000e+01 : f32
      %338 = vector.broadcast %cst_113 : f32 to vector<16x1xf32>
      %339 = arith.divf %337, %338 : vector<16x1xf32>
      %340 = arith.mulf %331, %331 : vector<16x32xf32>
      %cst_114 = arith.constant dense<0.000000e+00> : vector<16xf32>
      %341 = vector.multi_reduction <add>, %340, %cst_114 [1] : vector<16x32xf32> to vector<16xf32>
      %342 = vector.shape_cast %341 : vector<16xf32> to vector<16x1xf32>
      %cst_115 = arith.constant 3.200000e+01 : f32
      %343 = vector.broadcast %cst_115 : f32 to vector<16x1xf32>
      %344 = arith.divf %342, %343 : vector<16x1xf32>
      %345 = arith.mulf %339, %339 : vector<16x1xf32>
      %346 = arith.subf %344, %345 : vector<16x1xf32>
      %cst_116 = arith.constant 0.000000e+00 : f32
      %347 = vector.broadcast %cst_116 : f32 to vector<16x1xf32>
      %348 = arith.maximumf %346, %347 : vector<16x1xf32>
      %349 = vector.broadcast %339 : vector<16x1xf32> to vector<16x32xf32>
      %350 = arith.subf %331, %349 : vector<16x32xf32>
      %cst_117 = arith.constant 9.99999974E-6 : f32
      %351 = vector.broadcast %cst_117 : f32 to vector<16x1xf32>
      %352 = arith.addf %348, %351 : vector<16x1xf32>
      %353 = math.rsqrt %352 : vector<16x1xf32>
      %354 = vector.broadcast %353 : vector<16x1xf32> to vector<16x32xf32>
      %355 = arith.mulf %350, %354 : vector<16x32xf32>
      %356 = vector.extract_strided_slice %6 {offsets = [3, 0], sizes = [1, 32], strides = [1, 1]} : vector<4x32xf32> to vector<1x32xf32>
      %357 = vector.shape_cast %356 : vector<1x32xf32> to vector<32xf32>
      %358 = vector.shape_cast %357 : vector<32xf32> to vector<1x32xf32>
      %359 = vector.broadcast %358 : vector<1x32xf32> to vector<16x32xf32>
      %360 = arith.mulf %355, %359 : vector<16x32xf32>
      %361 = vector.extract_strided_slice %8 {offsets = [3, 0], sizes = [1, 32], strides = [1, 1]} : vector<4x32xf32> to vector<1x32xf32>
      %362 = vector.shape_cast %361 : vector<1x32xf32> to vector<32xf32>
      %363 = vector.shape_cast %362 : vector<32xf32> to vector<1x32xf32>
      %364 = vector.broadcast %363 : vector<1x32xf32> to vector<16x32xf32>
      %365 = arith.addf %360, %364 : vector<16x32xf32>
      %c0_118 = arith.constant 0 : index
      %c0_119 = arith.constant 0 : index
      %366 = vector.load %arg19[%c0_118, %c0_119] : memref<16x32xf32, #tpu.memory_space<vmem>>, vector<16x32xf32>
      tpu.vector_store %arg19[%c0_118, %c0_119], %365 {strides = array<i32>} : memref<16x32xf32, #tpu.memory_space<vmem>>, vector<16x32xf32>,
    } else {
    }
    return
  }
  func.func @transform_0(%arg0: i32) -> (i32, i32) {
    %c0_i32 = arith.constant 0 : i32
    %c0_i32_0 = arith.constant 0 : i32
    %c0_i32_1 = arith.constant 0 : i32
    return %c0_i32, %c0_i32_0 : i32, i32
  }
  func.func @transform_1(%arg0: i32) -> (i32, i32) {
    %c0_i32 = arith.constant 0 : i32
    %c0_i32_0 = arith.constant 0 : i32
    %c0_i32_1 = arith.constant 0 : i32
    return %c0_i32, %c0_i32_0 : i32, i32
  }
  func.func @transform_2(%arg0: i32) -> (i32, i32, i32) {
    %c0_i32 = arith.constant 0 : i32
    %c0_i32_0 = arith.constant 0 : i32
    %c0_i32_1 = arith.constant 0 : i32
    return %arg0, %c0_i32, %c0_i32_0 : i32, i32, i32
  }
  func.func @transform_3(%arg0: i32) -> (i32, i32, i32) {
    %c0_i32 = arith.constant 0 : i32
    %c0_i32_0 = arith.constant 0 : i32
    %c0_i32_1 = arith.constant 0 : i32
    return %arg0, %c0_i32, %c0_i32_0 : i32, i32, i32
  }
  func.func @transform_4(%arg0: i32) -> (i32, i32, i32) {
    %c0_i32 = arith.constant 0 : i32
    %c0_i32_0 = arith.constant 0 : i32
    %c0_i32_1 = arith.constant 0 : i32
    return %arg0, %c0_i32, %c0_i32_0 : i32, i32, i32
  }
  func.func @transform_5(%arg0: i32) -> (i32, i32, i32) {
    %c0_i32 = arith.constant 0 : i32
    %c0_i32_0 = arith.constant 0 : i32
    %c0_i32_1 = arith.constant 0 : i32
    return %arg0, %c0_i32, %c0_i32_0 : i32, i32, i32
  }
  func.func @transform_6(%arg0: i32) -> (i32, i32, i32) {
    %c0_i32 = arith.constant 0 : i32
    %c0_i32_0 = arith.constant 0 : i32
    %c0_i32_1 = arith.constant 0 : i32
    return %arg0, %c0_i32, %c0_i32_0 : i32, i32, i32
  }
  func.func @transform_7(%arg0: i32) -> (i32, i32, i32) {
    %c0_i32 = arith.constant 0 : i32
    %c0_i32_0 = arith.constant 0 : i32
    %c0_i32_1 = arith.constant 0 : i32
    return %arg0, %c0_i32, %c0_i32_0 : i32, i32, i32
  }
  func.func @transform_8(%arg0: i32) -> (i32, i32, i32) {
    %c0_i32 = arith.constant 0 : i32
    %c0_i32_0 = arith.constant 0 : i32
    %c0_i32_1 = arith.constant 0 : i32
    return %arg0, %c0_i32, %c0_i32_0 : i32, i32, i32
  }
  func.func @transform_9(%arg0: i32) -> (i32, i32, i32) {
    %c0_i32 = arith.constant 0 : i32
    %c0_i32_0 = arith.constant 0 : i32
    %c0_i32_1 = arith.constant 0 : i32
    return %arg0, %c0_i32, %c0_i32_0 : i32, i32, i32
  }
  func.func @transform_10(%arg0: i32) -> (i32, i32, i32) {
    %c0_i32 = arith.constant 0 : i32
    %c0_i32_0 = arith.constant 0 : i32
    %c0_i32_1 = arith.constant 0 : i32
    return %arg0, %c0_i32, %c0_i32_0 : i32, i32, i32
  }
  func.func @transform_11(%arg0: i32) -> (i32, i32, i32) {
    %c0_i32 = arith.constant 0 : i32
    %c0_i32_0 = arith.constant 0 : i32
    %c0_i32_1 = arith.constant 0 : i32
    return %arg0, %c0_i32, %c0_i32_0 : i32, i32, i32
  }
  func.func @transform_12(%arg0: i32) -> (i32, i32, i32) {
    %c0_i32 = arith.constant 0 : i32
    %c0_i32_0 = arith.constant 0 : i32
    %c0_i32_1 = arith.constant 0 : i32
    return %arg0, %c0_i32, %c0_i32_0 : i32, i32, i32
  }
  func.func @transform_13(%arg0: i32) -> (i32, i32, i32) {
    %c0_i32 = arith.constant 0 : i32
    %c0_i32_0 = arith.constant 0 : i32
    %c0_i32_1 = arith.constant 0 : i32
    return %arg0, %c0_i32, %c0_i32_0 : i32, i32, i32
  }
  func.func @transform_14(%arg0: i32) -> (i32, i32, i32) {
    %c0_i32 = arith.constant 0 : i32
    %c0_i32_0 = arith.constant 0 : i32
    %c0_i32_1 = arith.constant 0 : i32
    return %arg0, %c0_i32, %c0_i32_0 : i32, i32, i32
  }
  func.func @transform_15(%arg0: i32) -> (i32, i32, i32) {
    %c0_i32 = arith.constant 0 : i32
    %c0_i32_0 = arith.constant 0 : i32
    %c0_i32_1 = arith.constant 0 : i32
    return %arg0, %c0_i32, %c0_i32_0 : i32, i32, i32
  }
  func.func @transform_16(%arg0: i32) -> (i32, i32, i32) {
    %c0_i32 = arith.constant 0 : i32
    %c0_i32_0 = arith.constant 0 : i32
    %c0_i32_1 = arith.constant 0 : i32
    return %arg0, %c0_i32, %c0_i32_0 : i32, i32, i32
  }
  func.func @transform_17(%arg0: i32) -> (i32, i32, i32) {
    %c0_i32 = arith.constant 0 : i32
    %c0_i32_0 = arith.constant 0 : i32
    %c0_i32_1 = arith.constant 0 : i32
    return %arg0, %c0_i32, %c0_i32_0 : i32, i32, i32
  }
  func.func @transform_18(%arg0: i32) -> (i32, i32) {
    %c0_i32 = arith.constant 0 : i32
    %c0_i32_0 = arith.constant 0 : i32
    %c0_i32_1 = arith.constant 0 : i32
    return %c0_i32, %c0_i32_0 : i32, i32
  }
}

</mosaic_0001>

<llo_original>
// kernel: tpu_custom_call.1
$region0: #{tpu_custom_call.1}
  #allocation0 [shape = 'u32[]', space=smem, size = 0x4, offset = 0x4, fixed_abs, tag = 'smem constant byte address 0x4 - core index']
  #allocation1 [shape = 'u32[72,128]{1,0:T(1,128)}', space=vmem, size = 0x9000, scoped, tag = 'internal scratch']
  #allocation2 [shape = 'f32[16,32]{1,0:T(8,128)}', space=vmem, size = 0x2000, scoped, tag = 'scratch operand']
  %s0 = inlined_call_operand.hbm [shape: f32[16,32], index: 0, kind: input, shape index: {}]
  %s1 = inlined_call_operand.hbm [shape: bf16[32,32], index: 1, kind: input, shape index: {}]
  %s2 = inlined_call_operand.vmem [shape: bf16[2,32,96], index: 2, kind: input, shape index: {}]
  %s3 = inlined_call_operand.hbm [shape: f32[2,1,96], index: 3, kind: input, shape index: {}]
  %s4 = inlined_call_operand.vmem [shape: bf16[2,32,32], index: 4, kind: input, shape index: {}]
  %s5 = inlined_call_operand.hbm [shape: f32[2,1,32], index: 5, kind: input, shape index: {}]
  %s6 = inlined_call_operand.vmem [shape: bf16[2,32,32], index: 6, kind: input, shape index: {}]
  %s7 = inlined_call_operand.hbm [shape: f32[2,1,32], index: 7, kind: input, shape index: {}]
  %s8 = inlined_call_operand.hbm [shape: bf16[2,32,64], index: 8, kind: input, shape index: {}]
  %s9 = inlined_call_operand.hbm [shape: f32[2,1,64], index: 9, kind: input, shape index: {}]
  %s10 = inlined_call_operand.hbm [shape: bf16[2,32,32], index: 10, kind: input, shape index: {}]
  %s11 = inlined_call_operand.hbm [shape: f32[2,1,32], index: 11, kind: input, shape index: {}]
  %s12 = inlined_call_operand.hbm [shape: bf16[2,32,64], index: 12, kind: input, shape index: {}]
  %s13 = inlined_call_operand.vmem [shape: f32[2,1,64], index: 13, kind: input, shape index: {}]
  %s14 = inlined_call_operand.vmem [shape: bf16[2,64,32], index: 14, kind: input, shape index: {}]
  %s15 = inlined_call_operand.vmem [shape: f32[2,1,32], index: 15, kind: input, shape index: {}]
  %s16 = inlined_call_operand.vmem [shape: f32[2,4,32], index: 16, kind: input, shape index: {}]
  %s17 = inlined_call_operand.hbm [shape: f32[2,4,32], index: 17, kind: input, shape index: {}]
  %s18 = inlined_call_operand.hbm [shape: f32[16,32], index: 18, kind: output, shape index: {}]
  %s19 = sld [smem:[#allocation0]]
  $region157: #{tpu_custom_call.1} parent=0
    _
  %s21 = ssub.s32 1, %s19
  %s22 = scalar_select 0, %s21, %s19
  $region1: #{tpu_custom_call.1} parent=0
    #allocation3 [shape = 'u8[8192]{0}', space=vmem, size = 0x2000, scoped, tag = 'input window, operand 0, single buffered']
    #allocation4 [shape = 's32[2]{0}', space=sflag, size = 0x8, scoped, tag = 'scoped memory for tpu_custom_call.1']
    #allocation5 [shape = 's32[2]{0}', space=sflag, size = 0x8, scoped, tag = 'scoped memory for tpu_custom_call.1']
    #allocation6 [shape = 'u8[8192]{0}', space=vmem, size = 0x2000, scoped, tag = 'input window, operand 1, single buffered']
    #allocation7 [shape = 's32[1]{0}', space=sflag, size = 0x4, scoped, tag = 'scoped memory for tpu_custom_call.1']
    #allocation8 [shape = 'u8[1024]{0}', space=vmem, size = 0x400, scoped, tag = 'input window, operand 3']
    #allocation9 [shape = 'u8[1024]{0}', space=vmem, size = 0x400, scoped, tag = 'input window, operand 5']
    #allocation10 [shape = 'u8[1024]{0}', space=vmem, size = 0x400, scoped, tag = 'input window, operand 7']
    #allocation11 [shape = 'u8[16384]{0}', space=vmem, size = 0x4000, scoped, tag = 'input window, operand 8']
    #allocation12 [shape = 'u8[1024]{0}', space=vmem, size = 0x400, scoped, tag = 'input window, operand 9']
    #allocation13 [shape = 'u8[16384]{0}', space=vmem, size = 0x4000, scoped, tag = 'input window, operand 10']
    #allocation14 [shape = 'u8[1024]{0}', space=vmem, size = 0x400, scoped, tag = 'input window, operand 11']
    #allocation15 [shape = 'u8[16384]{0}', space=vmem, size = 0x4000, scoped, tag = 'input window, operand 12']
    #allocation16 [shape = 'u8[4096]{0}', space=vmem, size = 0x1000, scoped, tag = 'input window, operand 17']
    #allocation17 [shape = 'u8[8192]{0}', space=vmem, size = 0x2000, scoped, tag = 'output window, operand 0, single buffered']
    %23 = vsyncpa [#allocation4], 0
    %24 = vsyncpa [#allocation7], 0
    %25 = vsyncpa [#allocation5], 0
    loop: start=0, step=1, limit=4
    $region2: #{tpu_custom_call.1} parent=1 // loop_pre_header
      _
    $region3: #{tpu_custom_call.1} parent=1 // loop_header
      %s27 = sphi 0, %s31
      %p28 = scmp.ge.s32.totalorder %s27, 4
      %s35 = sphi 0, %s35
      %s37 = sphi 0, %s35
      %s38 = sphi 0, %s37
      %s52 = sphi 0, %s38
      %s56 = sphi 0, %s56
      %s58 = sphi 0, %s56
      %s59 = sphi 0, %s58
      %s73 = sphi 0, %s59
      %s79 = sphi 0, %s81
      %s82 = sphi 0, %s79
      %s83 = sphi 0, %s82
      %s99 = sphi 0, %s83
      %s105 = sphi 0, %s107
      %s108 = sphi 0, %s105
      %s109 = sphi 0, %s108
      %s125 = sphi 0, %s109
      %s131 = sphi 0, %s133
      %s134 = sphi 0, %s131
      %s135 = sphi 0, %s134
      %s151 = sphi 0, %s135
      %s157 = sphi 0, %s159
      %s160 = sphi 0, %s157
      %s161 = sphi 0, %s160
      %s177 = sphi 0, %s161
      %s183 = sphi 0, %s185
      %s186 = sphi 0, %s183
      %s187 = sphi 0, %s186
      %s203 = sphi 0, %s187
      %s209 = sphi 0, %s211
      %s212 = sphi 0, %s209
      %s213 = sphi 0, %s212
      %s229 = sphi 0, %s213
      %s235 = sphi 0, %s237
      %s238 = sphi 0, %s235
      %s239 = sphi 0, %s238
      %s255 = sphi 0, %s239
      %s261 = sphi 0, %s263
      %s264 = sphi 0, %s261
      %s265 = sphi 0, %s264
      %s281 = sphi 0, %s265
      %s287 = sphi 0, %s289
      %s290 = sphi 0, %s287
      %s291 = sphi 0, %s290
      %s307 = sphi 0, %s291
      %s313 = sphi 0, %s315
      %s316 = sphi 0, %s313
      %s317 = sphi 0, %s316
      %s333 = sphi 0, %s317
      %s339 = sphi 0, %s341
      %s342 = sphi 0, %s339
      %s343 = sphi 0, %s342
      %s359 = sphi 0, %s343
      %s365 = sphi 0, %s367
      %s368 = sphi 0, %s365
      %s369 = sphi 0, %s368
      %s385 = sphi 0, %s369
      %s391 = sphi 0, %s393
      %s394 = sphi 0, %s391
      %s395 = sphi 0, %s394
      %s411 = sphi 0, %s395
      %s417 = sphi 0, %s419
      %s420 = sphi 0, %s417
      %s421 = sphi 0, %s420
      %s437 = sphi 0, %s421
      %s443 = sphi 0, %s445
      %s446 = sphi 0, %s443
      %s447 = sphi 0, %s446
      %s463 = sphi 0, %s447
      %s469 = sphi 0, %s471
      %s472 = sphi 0, %s469
      %s473 = sphi 0, %s472
      %s489 = sphi 0, %s473
      %s493 = sphi 0, %s493
      %s495 = sphi 0, %s493
      %s496 = sphi 0, %s495
      %s510 = sphi 0, %s496
    $region4: #{tpu_custom_call.1} parent=1 // loop_header_branch
      %30 = sbr.rel (%p28) target = $region8
    $region5: #{tpu_custom_call.1} parent=1 // loop_body
      %s32 = ssub.s32 %s27, 1
      %s33 = ssub.s32 %s27, 2
      %s34 = sadd.s32 %s27, 1
      %s36 = sadd.s32 %s35, 1
      %p39 = scmp.eq.s32.totalorder %s27, 1
      %p40 = scmp.ne.s32.totalorder %s35, %s37
      %p41 = scmp.eq.s32.totalorder %s27, 0
      %p42 = por %p40, %p41
      %p43 = scmp.ne.s32.totalorder %s35, %s37
      %p44 = scmp.eq.s32.totalorder %s32, 1
      %p45 = por %p43, %p44
      %p46 = scmp.ne.s32.totalorder %s37, %s38
      %p47 = scmp.eq.s32.totalorder %s32, 0
      %p48 = por %p46, %p47
      %p49 = scmp.ne.s32.totalorder %s37, %s38
      %p50 = scmp.eq.s32.totalorder %s33, 1
      %p51 = por %p49, %p50
      %p53 = scmp.ne.s32.totalorder %s38, %s52
      %p54 = scmp.eq.s32.totalorder %s33, 0
      %p55 = por %p53, %p54
      %s57 = sadd.s32 %s56, 1
      %p60 = scmp.eq.s32.totalorder %s27, 1
      %p61 = scmp.ne.s32.totalorder %s56, %s58
      %p62 = scmp.eq.s32.totalorder %s27, 0
      %p63 = por %p61, %p62
      %p64 = scmp.ne.s32.totalorder %s56, %s58
      %p65 = scmp.eq.s32.totalorder %s32, 1
      %p66 = por %p64, %p65
      %p67 = scmp.ne.s32.totalorder %s58, %s59
      %p68 = scmp.eq.s32.totalorder %s32, 0
      %p69 = por %p67, %p68
      %p70 = scmp.ne.s32.totalorder %s58, %s59
      %p71 = scmp.eq.s32.totalorder %s33, 1
      %p72 = por %p70, %p71
      %p74 = scmp.ne.s32.totalorder %s59, %s73
      %p75 = scmp.eq.s32.totalorder %s33, 0
      %p76 = por %p74, %p75
      %s77 = ssub.s32 %s27, %s34
      %p78 = scmp.eq.s32.totalorder %s77, 0
      %s80 = sadd.s32 %s79, 1
      %s81 = scalar_select %p78, %s79, %s80
      %p84 = pneg %p78
      %p85 = scmp.eq.s32.totalorder %s27, 1
      %p86 = por %p84, %p85
      %p87 = scmp.ne.s32.totalorder %s79, %s82
      %p88 = scmp.eq.s32.totalorder %s27, 0
      %p89 = por %p87, %p88
      %p90 = scmp.ne.s32.totalorder %s79, %s82
      %p91 = scmp.eq.s32.totalorder %s32, 1
      %p92 = por %p90, %p91
      %p93 = scmp.ne.s32.totalorder %s82, %s83
      %p94 = scmp.eq.s32.totalorder %s32, 0
      %p95 = por %p93, %p94
      %p96 = scmp.ne.s32.totalorder %s82, %s83
      %p97 = scmp.eq.s32.totalorder %s33, 1
      %p98 = por %p96, %p97
      %p100 = scmp.ne.s32.totalorder %s83, %s99
      %p101 = scmp.eq.s32.totalorder %s33, 0
      %p102 = por %p100, %p101
      %s103 = ssub.s32 %s27, %s34
      %p104 = scmp.eq.s32.totalorder %s103, 0
      %s106 = sadd.s32 %s105, 1
      %s107 = scalar_select %p104, %s105, %s106
      %p110 = pneg %p104
      %p111 = scmp.eq.s32.totalorder %s27, 1
      %p112 = por %p110, %p111
      %p113 = scmp.ne.s32.totalorder %s105, %s108
      %p114 = scmp.eq.s32.totalorder %s27, 0
      %p115 = por %p113, %p114
      %p116 = scmp.ne.s32.totalorder %s105, %s108
      %p117 = scmp.eq.s32.totalorder %s32, 1
      %p118 = por %p116, %p117
      %p119 = scmp.ne.s32.totalorder %s108, %s109
      %p120 = scmp.eq.s32.totalorder %s32, 0
      %p121 = por %p119, %p120
      %p122 = scmp.ne.s32.totalorder %s108, %s109
      %p123 = scmp.eq.s32.totalorder %s33, 1
      %p124 = por %p122, %p123
      %p126 = scmp.ne.s32.totalorder %s109, %s125
      %p127 = scmp.eq.s32.totalorder %s33, 0
      %p128 = por %p126, %p127
      %s129 = ssub.s32 %s27, %s34
      %p130 = scmp.eq.s32.totalorder %s129, 0
      %s132 = sadd.s32 %s131, 1
      %s133 = scalar_select %p130, %s131, %s132
      %p136 = pneg %p130
      %p137 = scmp.eq.s32.totalorder %s27, 1
      %p138 = por %p136, %p137
      %p139 = scmp.ne.s32.totalorder %s131, %s134
      %p140 = scmp.eq.s32.totalorder %s27, 0
      %p141 = por %p139, %p140
      %p142 = scmp.ne.s32.totalorder %s131, %s134
      %p143 = scmp.eq.s32.totalorder %s32, 1
      %p144 = por %p142, %p143
      %p145 = scmp.ne.s32.totalorder %s134, %s135
      %p146 = scmp.eq.s32.totalorder %s32, 0
      %p147 = por %p145, %p146
      %p148 = scmp.ne.s32.totalorder %s134, %s135
      %p149 = scmp.eq.s32.totalorder %s33, 1
      %p150 = por %p148, %p149
      %p152 = scmp.ne.s32.totalorder %s135, %s151
      %p153 = scmp.eq.s32.totalorder %s33, 0
      %p154 = por %p152, %p153
      %s155 = ssub.s32 %s27, %s34
      %p156 = scmp.eq.s32.totalorder %s155, 0
      %s158 = sadd.s32 %s157, 1
      %s159 = scalar_select %p156, %s157, %s158
      %p162 = pneg %p156
      %p163 = scmp.eq.s32.totalorder %s27, 1
      %p164 = por %p162, %p163
      %p165 = scmp.ne.s32.totalorder %s157, %s160
      %p166 = scmp.eq.s32.totalorder %s27, 0
      %p167 = por %p165, %p166
      %p168 = scmp.ne.s32.totalorder %s157, %s160
      %p169 = scmp.eq.s32.totalorder %s32, 1
      %p170 = por %p168, %p169
      %p171 = scmp.ne.s32.totalorder %s160, %s161
      %p172 = scmp.eq.s32.totalorder %s32, 0
      %p173 = por %p171, %p172
      %p174 = scmp.ne.s32.totalorder %s160, %s161
      %p175 = scmp.eq.s32.totalorder %s33, 1
      %p176 = por %p174, %p175
      %p178 = scmp.ne.s32.totalorder %s161, %s177
      %p179 = scmp.eq.s32.totalorder %s33, 0
      %p180 = por %p178, %p179
      %s181 = ssub.s32 %s27, %s34
      %p182 = scmp.eq.s32.totalorder %s181, 0
      %s184 = sadd.s32 %s183, 1
      %s185 = scalar_select %p182, %s183, %s184
      %p188 = pneg %p182
      %p189 = scmp.eq.s32.totalorder %s27, 1
      %p190 = por %p188, %p189
      %p191 = scmp.ne.s32.totalorder %s183, %s186
      %p192 = scmp.eq.s32.totalorder %s27, 0
      %p193 = por %p191, %p192
      %p194 = scmp.ne.s32.totalorder %s183, %s186
      %p195 = scmp.eq.s32.totalorder %s32, 1
      %p196 = por %p194, %p195
      %p197 = scmp.ne.s32.totalorder %s186, %s187
      %p198 = scmp.eq.s32.totalorder %s32, 0
      %p199 = por %p197, %p198
      %p200 = scmp.ne.s32.totalorder %s186, %s187
      %p201 = scmp.eq.s32.totalorder %s33, 1
      %p202 = por %p200, %p201
      %p204 = scmp.ne.s32.totalorder %s187, %s203
      %p205 = scmp.eq.s32.totalorder %s33, 0
      %p206 = por %p204, %p205
      %s207 = ssub.s32 %s27, %s34
      %p208 = scmp.eq.s32.totalorder %s207, 0
      %s210 = sadd.s32 %s209, 1
      %s211 = scalar_select %p208, %s209, %s210
      %p214 = pneg %p208
      %p215 = scmp.eq.s32.totalorder %s27, 1
      %p216 = por %p214, %p215
      %p217 = scmp.ne.s32.totalorder %s209, %s212
      %p218 = scmp.eq.s32.totalorder %s27, 0
      %p219 = por %p217, %p218
      %p220 = scmp.ne.s32.totalorder %s209, %s212
      %p221 = scmp.eq.s32.totalorder %s32, 1
      %p222 = por %p220, %p221
      %p223 = scmp.ne.s32.totalorder %s212, %s213
      %p224 = scmp.eq.s32.totalorder %s32, 0
      %p225 = por %p223, %p224
      %p226 = scmp.ne.s32.totalorder %s212, %s213
      %p227 = scmp.eq.s32.totalorder %s33, 1
      %p228 = por %p226, %p227
      %p230 = scmp.ne.s32.totalorder %s213, %s229
      %p231 = scmp.eq.s32.totalorder %s33, 0
      %p232 = por %p230, %p231
      %s233 = ssub.s32 %s27, %s34
      %p234 = scmp.eq.s32.totalorder %s233, 0
      %s236 = sadd.s32 %s235, 1
      %s237 = scalar_select %p234, %s235, %s236
      %p240 = pneg %p234
      %p241 = scmp.eq.s32.totalorder %s27, 1
      %p242 = por %p240, %p241
      %p243 = scmp.ne.s32.totalorder %s235, %s238
      %p244 = scmp.eq.s32.totalorder %s27, 0
      %p245 = por %p243, %p244
      %p246 = scmp.ne.s32.totalorder %s235, %s238
      %p247 = scmp.eq.s32.totalorder %s32, 1
      %p248 = por %p246, %p247
      %p249 = scmp.ne.s32.totalorder %s238, %s239
      %p250 = scmp.eq.s32.totalorder %s32, 0
      %p251 = por %p249, %p250
      %p252 = scmp.ne.s32.totalorder %s238, %s239
      %p253 = scmp.eq.s32.totalorder %s33, 1
      %p254 = por %p252, %p253
      %p256 = scmp.ne.s32.totalorder %s239, %s255
      %p257 = scmp.eq.s32.totalorder %s33, 0
      %p258 = por %p256, %p257
      %s259 = ssub.s32 %s27, %s34
      %p260 = scmp.eq.s32.totalorder %s259, 0
      %s262 = sadd.s32 %s261, 1
      %s263 = scalar_select %p260, %s261, %s262
      %p266 = pneg %p260
      %p267 = scmp.eq.s32.totalorder %s27, 1
      %p268 = por %p266, %p267
      %p269 = scmp.ne.s32.totalorder %s261, %s264
      %p270 = scmp.eq.s32.totalorder %s27, 0
      %p271 = por %p269, %p270
      %p272 = scmp.ne.s32.totalorder %s261, %s264
      %p273 = scmp.eq.s32.totalorder %s32, 1
      %p274 = por %p272, %p273
      %p275 = scmp.ne.s32.totalorder %s264, %s265
      %p276 = scmp.eq.s32.totalorder %s32, 0
      %p277 = por %p275, %p276
      %p278 = scmp.ne.s32.totalorder %s264, %s265
      %p279 = scmp.eq.s32.totalorder %s33, 1
      %p280 = por %p278, %p279
      %p282 = scmp.ne.s32.totalorder %s265, %s281
      %p283 = scmp.eq.s32.totalorder %s33, 0
      %p284 = por %p282, %p283
      %s285 = ssub.s32 %s27, %s34
      %p286 = scmp.eq.s32.totalorder %s285, 0
      %s288 = sadd.s32 %s287, 1
      %s289 = scalar_select %p286, %s287, %s288
      %p292 = pneg %p286
      %p293 = scmp.eq.s32.totalorder %s27, 1
      %p294 = por %p292, %p293
      %p295 = scmp.ne.s32.totalorder %s287, %s290
      %p296 = scmp.eq.s32.totalorder %s27, 0
      %p297 = por %p295, %p296
      %p298 = scmp.ne.s32.totalorder %s287, %s290
      %p299 = scmp.eq.s32.totalorder %s32, 1
      %p300 = por %p298, %p299
      %p301 = scmp.ne.s32.totalorder %s290, %s291
      %p302 = scmp.eq.s32.totalorder %s32, 0
      %p303 = por %p301, %p302
      %p304 = scmp.ne.s32.totalorder %s290, %s291
      %p305 = scmp.eq.s32.totalorder %s33, 1
      %p306 = por %p304, %p305
      %p308 = scmp.ne.s32.totalorder %s291, %s307
      %p309 = scmp.eq.s32.totalorder %s33, 0
      %p310 = por %p308, %p309
      %s311 = ssub.s32 %s27, %s34
      %p312 = scmp.eq.s32.totalorder %s311, 0
      %s314 = sadd.s32 %s313, 1
      %s315 = scalar_select %p312, %s313, %s314
      %p318 = pneg %p312
      %p319 = scmp.eq.s32.totalorder %s27, 1
      %p320 = por %p318, %p319
      %p321 = scmp.ne.s32.totalorder %s313, %s316
      %p322 = scmp.eq.s32.totalorder %s27, 0
      %p323 = por %p321, %p322
      %p324 = scmp.ne.s32.totalorder %s313, %s316
      %p325 = scmp.eq.s32.totalorder %s32, 1
      %p326 = por %p324, %p325
      %p327 = scmp.ne.s32.totalorder %s316, %s317
      %p328 = scmp.eq.s32.totalorder %s32, 0
      %p329 = por %p327, %p328
      %p330 = scmp.ne.s32.totalorder %s316, %s317
      %p331 = scmp.eq.s32.totalorder %s33, 1
      %p332 = por %p330, %p331
      %p334 = scmp.ne.s32.totalorder %s317, %s333
      %p335 = scmp.eq.s32.totalorder %s33, 0
      %p336 = por %p334, %p335
      %s337 = ssub.s32 %s27, %s34
      %p338 = scmp.eq.s32.totalorder %s337, 0
      %s340 = sadd.s32 %s339, 1
      %s341 = scalar_select %p338, %s339, %s340
      %p344 = pneg %p338
      %p345 = scmp.eq.s32.totalorder %s27, 1
      %p346 = por %p344, %p345
      %p347 = scmp.ne.s32.totalorder %s339, %s342
      %p348 = scmp.eq.s32.totalorder %s27, 0
      %p349 = por %p347, %p348
      %p350 = scmp.ne.s32.totalorder %s339, %s342
      %p351 = scmp.eq.s32.totalorder %s32, 1
      %p352 = por %p350, %p351
      %p353 = scmp.ne.s32.totalorder %s342, %s343
      %p354 = scmp.eq.s32.totalorder %s32, 0
      %p355 = por %p353, %p354
      %p356 = scmp.ne.s32.totalorder %s342, %s343
      %p357 = scmp.eq.s32.totalorder %s33, 1
      %p358 = por %p356, %p357
      %p360 = scmp.ne.s32.totalorder %s343, %s359
      %p361 = scmp.eq.s32.totalorder %s33, 0
      %p362 = por %p360, %p361
      %s363 = ssub.s32 %s27, %s34
      %p364 = scmp.eq.s32.totalorder %s363, 0
      %s366 = sadd.s32 %s365, 1
      %s367 = scalar_select %p364, %s365, %s366
      %p370 = pneg %p364
      %p371 = scmp.eq.s32.totalorder %s27, 1
      %p372 = por %p370, %p371
      %p373 = scmp.ne.s32.totalorder %s365, %s368
      %p374 = scmp.eq.s32.totalorder %s27, 0
      %p375 = por %p373, %p374
      %p376 = scmp.ne.s32.totalorder %s365, %s368
      %p377 = scmp.eq.s32.totalorder %s32, 1
      %p378 = por %p376, %p377
      %p379 = scmp.ne.s32.totalorder %s368, %s369
      %p380 = scmp.eq.s32.totalorder %s32, 0
      %p381 = por %p379, %p380
      %p382 = scmp.ne.s32.totalorder %s368, %s369
      %p383 = scmp.eq.s32.totalorder %s33, 1
      %p384 = por %p382, %p383
      %p386 = scmp.ne.s32.totalorder %s369, %s385
      %p387 = scmp.eq.s32.totalorder %s33, 0
      %p388 = por %p386, %p387
      %s389 = ssub.s32 %s27, %s34
      %p390 = scmp.eq.s32.totalorder %s389, 0
      %s392 = sadd.s32 %s391, 1
      %s393 = scalar_select %p390, %s391, %s392
      %p396 = pneg %p390
      %p397 = scmp.eq.s32.totalorder %s27, 1
      %p398 = por %p396, %p397
      %p399 = scmp.ne.s32.totalorder %s391, %s394
      %p400 = scmp.eq.s32.totalorder %s27, 0
      %p401 = por %p399, %p400
      %p402 = scmp.ne.s32.totalorder %s391, %s394
      %p403 = scmp.eq.s32.totalorder %s32, 1
      %p404 = por %p402, %p403
      %p405 = scmp.ne.s32.totalorder %s394, %s395
      %p406 = scmp.eq.s32.totalorder %s32, 0
      %p407 = por %p405, %p406
      %p408 = scmp.ne.s32.totalorder %s394, %s395
      %p409 = scmp.eq.s32.totalorder %s33, 1
      %p410 = por %p408, %p409
      %p412 = scmp.ne.s32.totalorder %s395, %s411
      %p413 = scmp.eq.s32.totalorder %s33, 0
      %p414 = por %p412, %p413
      %s415 = ssub.s32 %s27, %s34
      %p416 = scmp.eq.s32.totalorder %s415, 0
      %s418 = sadd.s32 %s417, 1
      %s419 = scalar_select %p416, %s417, %s418
      %p422 = pneg %p416
      %p423 = scmp.eq.s32.totalorder %s27, 1
      %p424 = por %p422, %p423
      %p425 = scmp.ne.s32.totalorder %s417, %s420
      %p426 = scmp.eq.s32.totalorder %s27, 0
      %p427 = por %p425, %p426
      %p428 = scmp.ne.s32.totalorder %s417, %s420
      %p429 = scmp.eq.s32.totalorder %s32, 1
      %p430 = por %p428, %p429
      %p431 = scmp.ne.s32.totalorder %s420, %s421
      %p432 = scmp.eq.s32.totalorder %s32, 0
      %p433 = por %p431, %p432
      %p434 = scmp.ne.s32.totalorder %s420, %s421
      %p435 = scmp.eq.s32.totalorder %s33, 1
      %p436 = por %p434, %p435
      %p438 = scmp.ne.s32.totalorder %s421, %s437
      %p439 = scmp.eq.s32.totalorder %s33, 0
      %p440 = por %p438, %p439
      %s441 = ssub.s32 %s27, %s34
      %p442 = scmp.eq.s32.totalorder %s441, 0
      %s444 = sadd.s32 %s443, 1
      %s445 = scalar_select %p442, %s443, %s444
      %p448 = pneg %p442
      %p449 = scmp.eq.s32.totalorder %s27, 1
      %p450 = por %p448, %p449
      %p451 = scmp.ne.s32.totalorder %s443, %s446
      %p452 = scmp.eq.s32.totalorder %s27, 0
      %p453 = por %p451, %p452
      %p454 = scmp.ne.s32.totalorder %s443, %s446
      %p455 = scmp.eq.s32.totalorder %s32, 1
      %p456 = por %p454, %p455
      %p457 = scmp.ne.s32.totalorder %s446, %s447
      %p458 = scmp.eq.s32.totalorder %s32, 0
      %p459 = por %p457, %p458
      %p460 = scmp.ne.s32.totalorder %s446, %s447
      %p461 = scmp.eq.s32.totalorder %s33, 1
      %p462 = por %p460, %p461
      %p464 = scmp.ne.s32.totalorder %s447, %s463
      %p465 = scmp.eq.s32.totalorder %s33, 0
      %p466 = por %p464, %p465
      %s467 = ssub.s32 %s27, %s34
      %p468 = scmp.eq.s32.totalorder %s467, 0
      %s470 = sadd.s32 %s469, 1
      %s471 = scalar_select %p468, %s469, %s470
      %p474 = pneg %p468
      %p475 = scmp.eq.s32.totalorder %s27, 1
      %p476 = por %p474, %p475
      %p477 = scmp.ne.s32.totalorder %s469, %s472
      %p478 = scmp.eq.s32.totalorder %s27, 0
      %p479 = por %p477, %p478
      %p480 = scmp.ne.s32.totalorder %s469, %s472
      %p481 = scmp.eq.s32.totalorder %s32, 1
      %p482 = por %p480, %p481
      %p483 = scmp.ne.s32.totalorder %s472, %s473
      %p484 = scmp.eq.s32.totalorder %s32, 0
      %p485 = por %p483, %p484
      %p486 = scmp.ne.s32.totalorder %s472, %s473
      %p487 = scmp.eq.s32.totalorder %s33, 1
      %p488 = por %p486, %p487
      %p490 = scmp.ne.s32.totalorder %s473, %s489
      %p491 = scmp.eq.s32.totalorder %s33, 0
      %p492 = por %p490, %p491
      %s494 = sadd.s32 %s493, 1
      %p497 = scmp.eq.s32.totalorder %s27, 1
      %p498 = scmp.ne.s32.totalorder %s493, %s495
      %p499 = scmp.eq.s32.totalorder %s27, 0
      %p500 = por %p498, %p499
      %p501 = scmp.ne.s32.totalorder %s493, %s495
      %p502 = scmp.eq.s32.totalorder %s32, 1
      %p503 = por %p501, %p502
      %p504 = scmp.ne.s32.totalorder %s495, %s496
      %p505 = scmp.eq.s32.totalorder %s32, 0
      %p506 = por %p504, %p505
      %p507 = scmp.ne.s32.totalorder %s495, %s496
      %p508 = scmp.eq.s32.totalorder %s33, 1
      %p509 = por %p507, %p508
      %p511 = scmp.ne.s32.totalorder %s496, %s510
      %p512 = scmp.eq.s32.totalorder %s33, 0
      %p513 = por %p511, %p512
      %p514 = scmp.le.s32.totalorder 1, %s27
      %p515 = scmp.lt.s32.totalorder %s27, 3
      %p516 = pnand %p514, %p515
      %p517 = pneg %p516
      // Predicated region
      $region9: #{tpu_custom_call.1} parent=5 // pred_check
        _
      $region10: #{tpu_custom_call.1} parent=5 // pred_check_branch
        %519 = sbr.rel (%p516) target = $region12
      $region11: #{tpu_custom_call.1} parent=5 // pred_region
        %s520 = ssub.s32 %s27, 1
        // Predicated region
        $region13: #{tpu_custom_call.1} parent=11 // pred_check
          %p521 = pneg %p48
        $region14: #{tpu_custom_call.1} parent=11 // pred_check_branch
          %523 = sbr.rel (%p521) target = $region16
        $region15: #{tpu_custom_call.1} parent=11 // pred_region
          %525 = vsyncadd [#allocation4], 0
          %s526 = sshll.u32 %s0, 4
          %s527 = int_to_ptr.hbm [resolvable:$true] %s526
          %s528 = sshll.u32 [#allocation3], 4
          %s529 = int_to_ptr.vmem [resolvable:$true] %s528
          %534 = dma.hbm_to_vmem [thread:$0]  %s527, 256, %s529, [#allocation4], 128, 128, 8
        $region16: #{tpu_custom_call.1} parent=11 // pred_fallthru
          _
        // Predicated region
        $region17: #{tpu_custom_call.1} parent=11 // pred_check
          %p535 = pneg %p69
        $region18: #{tpu_custom_call.1} parent=11 // pred_check_branch
          %537 = sbr.rel (%p535) target = $region20
        $region19: #{tpu_custom_call.1} parent=11 // pred_region
          %539 = vsyncadd [#allocation7], 0
          %s540 = sshll.u32 %s1, 4
          %s541 = int_to_ptr.hbm [resolvable:$true] %s540
          %s542 = sshll.u32 [#allocation6], 4
          %s543 = int_to_ptr.vmem [resolvable:$true] %s542
          %548 = dma.hbm_to_vmem [thread:$0]  %s541, 256, %s543, [#allocation7], 64, 64, 4
        $region20: #{tpu_custom_call.1} parent=11 // pred_fallthru
          _
      $region12: #{tpu_custom_call.1} parent=5 // pred_fallthru
        _
      %p549 = scmp.lt.s32.totalorder %s27, 2
      // Predicated region
      $region21: #{tpu_custom_call.1} parent=5 // pred_check
        %p550 = pneg %p549
      $region22: #{tpu_custom_call.1} parent=5 // pred_check_branch
        %552 = sbr.rel (%p550) target = $region24
      $region23: #{tpu_custom_call.1} parent=5 // pred_region
        // Predicated region
        $region25: #{tpu_custom_call.1} parent=23 // pred_check
          %p553 = pneg %p89
        $region26: #{tpu_custom_call.1} parent=23 // pred_check_branch
          %555 = sbr.rel (%p553) target = $region28
        $region27: #{tpu_custom_call.1} parent=23 // pred_region
          %p556 = scmp.lt.s32.totalorder %s27, 1
          %s557 = scalar_select %p556, %s27, 1
          %s558 = smul.addr %s557, 4
          %s559 = smul.addr %s558, 4
          %s560 = scalar_lea.vmem %s2, %s559
        $region28: #{tpu_custom_call.1} parent=23 // pred_fallthru
          _
        // Predicated region
        $region29: #{tpu_custom_call.1} parent=23 // pred_check
          %p561 = pneg %p115
        $region30: #{tpu_custom_call.1} parent=23 // pred_check_branch
          %563 = sbr.rel (%p561) target = $region32
        $region31: #{tpu_custom_call.1} parent=23 // pred_region
          %s564 = sand.u32 %s27, 1
          %s565 = scalar_lea.sflag [#allocation4], %s564
          %s566 = sand.u32 %s105, 1
          %s567 = scalar_lea.vmem [#allocation8], %s566
          %569 = vsyncadd %s565, 0
          %s570 = scalar_lea.hbm %s3, %s27
          %s572 = sshll.u32 %s570, 4
          %s573 = int_to_ptr.hbm [resolvable:$true] %s572
          %s574 = sshll.u32 %s567, 4
          %s575 = int_to_ptr.vmem [resolvable:$true] %s574
          %577 = dma.hbm_to_vmem [thread:$0]  %s573, 16, %s575, %s565
        $region32: #{tpu_custom_call.1} parent=23 // pred_fallthru
          _
        // Predicated region
        $region33: #{tpu_custom_call.1} parent=23 // pred_check
          %p578 = pneg %p141
        $region34: #{tpu_custom_call.1} parent=23 // pred_check_branch
          %580 = sbr.rel (%p578) target = $region36
        $region35: #{tpu_custom_call.1} parent=23 // pred_region
          %p581 = scmp.lt.s32.totalorder %s27, 1
          %s582 = scalar_select %p581, %s27, 1
          %s583 = smul.addr %s582, 4
          %s584 = smul.addr %s583, 4
          %s585 = scalar_lea.vmem %s4, %s584
        $region36: #{tpu_custom_call.1} parent=23 // pred_fallthru
          _
        // Predicated region
        $region37: #{tpu_custom_call.1} parent=23 // pred_check
          %p586 = pneg %p167
        $region38: #{tpu_custom_call.1} parent=23 // pred_check_branch
          %588 = sbr.rel (%p586) target = $region40
        $region39: #{tpu_custom_call.1} parent=23 // pred_region
          %s589 = sand.u32 %s27, 1
          %s590 = scalar_lea.sflag [#allocation4], %s589
          %s591 = sand.u32 %s157, 1
          %s592 = scalar_lea.vmem [#allocation9], %s591
          %594 = vsyncadd %s590, 0
          %s595 = scalar_lea.hbm %s5, %s27
          %s597 = sshll.u32 %s595, 4
          %s598 = int_to_ptr.hbm [resolvable:$true] %s597
          %s599 = sshll.u32 %s592, 4
          %s600 = int_to_ptr.vmem [resolvable:$true] %s599
          %602 = dma.hbm_to_vmem [thread:$0]  %s598, 16, %s600, %s590
        $region40: #{tpu_custom_call.1} parent=23 // pred_fallthru
          _
        // Predicated region
        $region41: #{tpu_custom_call.1} parent=23 // pred_check
          %p603 = pneg %p193
        $region42: #{tpu_custom_call.1} parent=23 // pred_check_branch
          %605 = sbr.rel (%p603) target = $region44
        $region43: #{tpu_custom_call.1} parent=23 // pred_region
          %p606 = scmp.lt.s32.totalorder %s27, 1
          %s607 = scalar_select %p606, %s27, 1
          %s608 = smul.addr %s607, 4
          %s609 = smul.addr %s608, 4
          %s610 = scalar_lea.vmem %s6, %s609
        $region44: #{tpu_custom_call.1} parent=23 // pred_fallthru
          _
        // Predicated region
        $region45: #{tpu_custom_call.1} parent=23 // pred_check
          %p611 = pneg %p219
        $region46: #{tpu_custom_call.1} parent=23 // pred_check_branch
          %613 = sbr.rel (%p611) target = $region48
        $region47: #{tpu_custom_call.1} parent=23 // pred_region
          %s614 = sand.u32 %s27, 1
          %s615 = scalar_lea.sflag [#allocation4], %s614
          %s616 = sand.u32 %s209, 1
          %s617 = scalar_lea.vmem [#allocation10], %s616
          %619 = vsyncadd %s615, 0
          %s620 = scalar_lea.hbm %s7, %s27
          %s622 = sshll.u32 %s620, 4
          %s623 = int_to_ptr.hbm [resolvable:$true] %s622
          %s624 = sshll.u32 %s617, 4
          %s625 = int_to_ptr.vmem [resolvable:$true] %s624
          %627 = dma.hbm_to_vmem [thread:$0]  %s623, 16, %s625, %s615
        $region48: #{tpu_custom_call.1} parent=23 // pred_fallthru
          _
        // Predicated region
        $region49: #{tpu_custom_call.1} parent=23 // pred_check
          %p628 = pneg %p245
        $region50: #{tpu_custom_call.1} parent=23 // pred_check_branch
          %630 = sbr.rel (%p628) target = $region52
        $region51: #{tpu_custom_call.1} parent=23 // pred_region
          %s631 = sand.u32 %s27, 1
          %s632 = scalar_lea.sflag [#allocation4], %s631
          %s633 = sand.u32 %s235, 1
          %s634 = smul.addr %s633, 16
          %s635 = scalar_lea.vmem [#allocation11], %s634
          %637 = vsyncadd %s632, 0
          %s638 = smul.addr %s27, 4
          %s639 = smul.addr %s638, 4
          %s640 = scalar_lea.hbm %s8, %s639
          %s641 = sshll.u32 %s640, 4
          %s642 = int_to_ptr.hbm [resolvable:$true] %s641
          %s643 = sshll.u32 %s635, 4
          %s644 = int_to_ptr.vmem [resolvable:$true] %s643
          %649 = dma.hbm_to_vmem [thread:$0]  %s642, 256, %s644, %s632, 64, 64, 4
        $region52: #{tpu_custom_call.1} parent=23 // pred_fallthru
          _
        // Predicated region
        $region53: #{tpu_custom_call.1} parent=23 // pred_check
          %p650 = pneg %p271
        $region54: #{tpu_custom_call.1} parent=23 // pred_check_branch
          %652 = sbr.rel (%p650) target = $region56
        $region55: #{tpu_custom_call.1} parent=23 // pred_region
          %s653 = sand.u32 %s27, 1
          %s654 = scalar_lea.sflag [#allocation4], %s653
          %s655 = sand.u32 %s261, 1
          %s656 = scalar_lea.vmem [#allocation12], %s655
          %658 = vsyncadd %s654, 0
          %s659 = scalar_lea.hbm %s9, %s27
          %s661 = sshll.u32 %s659, 4
          %s662 = int_to_ptr.hbm [resolvable:$true] %s661
          %s663 = sshll.u32 %s656, 4
          %s664 = int_to_ptr.vmem [resolvable:$true] %s663
          %666 = dma.hbm_to_vmem [thread:$0]  %s662, 16, %s664, %s654
        $region56: #{tpu_custom_call.1} parent=23 // pred_fallthru
          _
        // Predicated region
        $region57: #{tpu_custom_call.1} parent=23 // pred_check
          %p667 = pneg %p297
        $region58: #{tpu_custom_call.1} parent=23 // pred_check_branch
          %669 = sbr.rel (%p667) target = $region60
        $region59: #{tpu_custom_call.1} parent=23 // pred_region
          %s670 = sand.u32 %s27, 1
          %s671 = scalar_lea.sflag [#allocation4], %s670
          %s672 = sand.u32 %s287, 1
          %s673 = smul.addr %s672, 16
          %s674 = scalar_lea.vmem [#allocation13], %s673
          %676 = vsyncadd %s671, 0
          %s677 = smul.addr %s27, 4
          %s678 = smul.addr %s677, 4
          %s679 = scalar_lea.hbm %s10, %s678
          %s680 = sshll.u32 %s679, 4
          %s681 = int_to_ptr.hbm [resolvable:$true] %s680
          %s682 = sshll.u32 %s674, 4
          %s683 = int_to_ptr.vmem [resolvable:$true] %s682
          %688 = dma.hbm_to_vmem [thread:$0]  %s681, 256, %s683, %s671, 64, 64, 4
        $region60: #{tpu_custom_call.1} parent=23 // pred_fallthru
          _
        // Predicated region
        $region61: #{tpu_custom_call.1} parent=23 // pred_check
          %p689 = pneg %p323
        $region62: #{tpu_custom_call.1} parent=23 // pred_check_branch
          %691 = sbr.rel (%p689) target = $region64
        $region63: #{tpu_custom_call.1} parent=23 // pred_region
          %s692 = sand.u32 %s27, 1
          %s693 = scalar_lea.sflag [#allocation4], %s692
          %s694 = sand.u32 %s313, 1
          %s695 = scalar_lea.vmem [#allocation14], %s694
          %697 = vsyncadd %s693, 0
          %s698 = scalar_lea.hbm %s11, %s27
          %s700 = sshll.u32 %s698, 4
          %s701 = int_to_ptr.hbm [resolvable:$true] %s700
          %s702 = sshll.u32 %s695, 4
          %s703 = int_to_ptr.vmem [resolvable:$true] %s702
          %705 = dma.hbm_to_vmem [thread:$0]  %s701, 16, %s703, %s693
        $region64: #{tpu_custom_call.1} parent=23 // pred_fallthru
          _
        // Predicated region
        $region65: #{tpu_custom_call.1} parent=23 // pred_check
          %p706 = pneg %p349
        $region66: #{tpu_custom_call.1} parent=23 // pred_check_branch
          %708 = sbr.rel (%p706) target = $region68
        $region67: #{tpu_custom_call.1} parent=23 // pred_region
          %s709 = sand.u32 %s27, 1
          %s710 = scalar_lea.sflag [#allocation4], %s709
          %s711 = sand.u32 %s339, 1
          %s712 = smul.addr %s711, 16
          %s713 = scalar_lea.vmem [#allocation15], %s712
          %715 = vsyncadd %s710, 0
          %s716 = smul.addr %s27, 4
          %s717 = smul.addr %s716, 4
          %s718 = scalar_lea.hbm %s12, %s717
          %s719 = sshll.u32 %s718, 4
          %s720 = int_to_ptr.hbm [resolvable:$true] %s719
          %s721 = sshll.u32 %s713, 4
          %s722 = int_to_ptr.vmem [resolvable:$true] %s721
          %727 = dma.hbm_to_vmem [thread:$0]  %s720, 256, %s722, %s710, 64, 64, 4
        $region68: #{tpu_custom_call.1} parent=23 // pred_fallthru
          _
        // Predicated region
        $region69: #{tpu_custom_call.1} parent=23 // pred_check
          %p728 = pneg %p375
        $region70: #{tpu_custom_call.1} parent=23 // pred_check_branch
          %730 = sbr.rel (%p728) target = $region72
        $region71: #{tpu_custom_call.1} parent=23 // pred_region
          %p731 = scmp.lt.s32.totalorder %s27, 1
          %s732 = scalar_select %p731, %s27, 1
          %s733 = scalar_lea.vmem %s13, %s732
        $region72: #{tpu_custom_call.1} parent=23 // pred_fallthru
          _
        // Predicated region
        $region73: #{tpu_custom_call.1} parent=23 // pred_check
          %p734 = pneg %p401
        $region74: #{tpu_custom_call.1} parent=23 // pred_check_branch
          %736 = sbr.rel (%p734) target = $region76
        $region75: #{tpu_custom_call.1} parent=23 // pred_region
          %p737 = scmp.lt.s32.totalorder %s27, 1
          %s738 = scalar_select %p737, %s27, 1
          %s739 = smul.addr %s738, 8
          %s740 = smul.addr %s739, 4
          %s741 = scalar_lea.vmem %s14, %s740
        $region76: #{tpu_custom_call.1} parent=23 // pred_fallthru
          _
        // Predicated region
        $region77: #{tpu_custom_call.1} parent=23 // pred_check
          %p742 = pneg %p427
        $region78: #{tpu_custom_call.1} parent=23 // pred_check_branch
          %744 = sbr.rel (%p742) target = $region80
        $region79: #{tpu_custom_call.1} parent=23 // pred_region
          %p745 = scmp.lt.s32.totalorder %s27, 1
          %s746 = scalar_select %p745, %s27, 1
          %s747 = scalar_lea.vmem %s15, %s746
        $region80: #{tpu_custom_call.1} parent=23 // pred_fallthru
          _
        // Predicated region
        $region81: #{tpu_custom_call.1} parent=23 // pred_check
          %p748 = pneg %p453
        $region82: #{tpu_custom_call.1} parent=23 // pred_check_branch
          %750 = sbr.rel (%p748) target = $region84
        $region83: #{tpu_custom_call.1} parent=23 // pred_region
          %p751 = scmp.lt.s32.totalorder %s27, 1
          %s752 = scalar_select %p751, %s27, 1
          %s753 = smul.addr %s752, 4
          %s754 = scalar_lea.vmem %s16, %s753
        $region84: #{tpu_custom_call.1} parent=23 // pred_fallthru
          _
        // Predicated region
        $region85: #{tpu_custom_call.1} parent=23 // pred_check
          %p755 = pneg %p479
        $region86: #{tpu_custom_call.1} parent=23 // pred_check_branch
          %757 = sbr.rel (%p755) target = $region88
        $region87: #{tpu_custom_call.1} parent=23 // pred_region
          %s758 = sand.u32 %s27, 1
          %s759 = scalar_lea.sflag [#allocation4], %s758
          %s760 = sand.u32 %s469, 1
          %s761 = smul.addr %s760, 4
          %s762 = scalar_lea.vmem [#allocation16], %s761
          %764 = vsyncadd %s759, 0
          %s765 = smul.addr %s27, 4
          %s766 = scalar_lea.hbm %s17, %s765
          %s768 = sshll.u32 %s766, 4
          %s769 = int_to_ptr.hbm [resolvable:$true] %s768
          %s770 = sshll.u32 %s762, 4
          %s771 = int_to_ptr.vmem [resolvable:$true] %s770
          %773 = dma.hbm_to_vmem [thread:$0]  %s769, 64, %s771, %s759
        $region88: #{tpu_custom_call.1} parent=23 // pred_fallthru
          _
      $region24: #{tpu_custom_call.1} parent=5 // pred_fallthru
        _
      %p774 = scmp.le.s32.totalorder 1, %s27
      %p775 = scmp.lt.s32.totalorder %s27, 3
      %p776 = pnand %p774, %p775
      %p777 = pneg %p776
      // Predicated region
      $region89: #{tpu_custom_call.1} parent=5 // pred_check
        _
      $region90: #{tpu_custom_call.1} parent=5 // pred_check_branch
        %779 = sbr.rel (%p776) target = $region92
      $region91: #{tpu_custom_call.1} parent=5 // pred_region
        %s780 = ssub.s32 %s27, 1
        // Predicated region
        $region93: #{tpu_custom_call.1} parent=91 // pred_check
          %p781 = pneg %p48
        $region94: #{tpu_custom_call.1} parent=91 // pred_check_branch
          %783 = sbr.rel (%p781) target = $region96
        $region95: #{tpu_custom_call.1} parent=91 // pred_region
          %785 = dma.done [#allocation4], 256
        $region96: #{tpu_custom_call.1} parent=91 // pred_fallthru
          _
        // Predicated region
        $region97: #{tpu_custom_call.1} parent=91 // pred_check
          %p786 = pneg %p69
        $region98: #{tpu_custom_call.1} parent=91 // pred_check_branch
          %788 = sbr.rel (%p786) target = $region100
        $region99: #{tpu_custom_call.1} parent=91 // pred_region
          %790 = dma.done [#allocation7], 256
        $region100: #{tpu_custom_call.1} parent=91 // pred_fallthru
          _
        %s791 = sand.u32 %s32, 1
        %s792 = scalar_lea.sflag [#allocation4], %s791
        %s793 = sand.u32 %s108, 1
        %s794 = scalar_lea.vmem [#allocation8], %s793
        // Predicated region
        $region101: #{tpu_custom_call.1} parent=91 // pred_check
          %p795 = pneg %p121
        $region102: #{tpu_custom_call.1} parent=91 // pred_check_branch
          %797 = sbr.rel (%p795) target = $region104
        $region103: #{tpu_custom_call.1} parent=91 // pred_region
          %799 = dma.done %s792, 16
        $region104: #{tpu_custom_call.1} parent=91 // pred_fallthru
          _
        %s800 = sand.u32 %s32, 1
        %s801 = scalar_lea.sflag [#allocation4], %s800
        %s802 = sand.u32 %s160, 1
        %s803 = scalar_lea.vmem [#allocation9], %s802
        // Predicated region
        $region105: #{tpu_custom_call.1} parent=91 // pred_check
          %p804 = pneg %p173
        $region106: #{tpu_custom_call.1} parent=91 // pred_check_branch
          %806 = sbr.rel (%p804) target = $region108
        $region107: #{tpu_custom_call.1} parent=91 // pred_region
          %808 = dma.done %s801, 16
        $region108: #{tpu_custom_call.1} parent=91 // pred_fallthru
          _
        %s809 = sand.u32 %s32, 1
        %s810 = scalar_lea.sflag [#allocation4], %s809
        %s811 = sand.u32 %s212, 1
        %s812 = scalar_lea.vmem [#allocation10], %s811
        // Predicated region
        $region109: #{tpu_custom_call.1} parent=91 // pred_check
          %p813 = pneg %p225
        $region110: #{tpu_custom_call.1} parent=91 // pred_check_branch
          %815 = sbr.rel (%p813) target = $region112
        $region111: #{tpu_custom_call.1} parent=91 // pred_region
          %817 = dma.done %s810, 16
        $region112: #{tpu_custom_call.1} parent=91 // pred_fallthru
          _
        %s818 = sand.u32 %s32, 1
        %s819 = scalar_lea.sflag [#allocation4], %s818
        %s820 = sand.u32 %s238, 1
        %s821 = smul.addr %s820, 16
        %s822 = scalar_lea.vmem [#allocation11], %s821
        // Predicated region
        $region113: #{tpu_custom_call.1} parent=91 // pred_check
          %p823 = pneg %p251
        $region114: #{tpu_custom_call.1} parent=91 // pred_check_branch
          %825 = sbr.rel (%p823) target = $region116
        $region115: #{tpu_custom_call.1} parent=91 // pred_region
          %827 = dma.done %s819, 256
        $region116: #{tpu_custom_call.1} parent=91 // pred_fallthru
          _
        %s828 = sand.u32 %s32, 1
        %s829 = scalar_lea.sflag [#allocation4], %s828
        %s830 = sand.u32 %s264, 1
        %s831 = scalar_lea.vmem [#allocation12], %s830
        // Predicated region
        $region117: #{tpu_custom_call.1} parent=91 // pred_check
          %p832 = pneg %p277
        $region118: #{tpu_custom_call.1} parent=91 // pred_check_branch
          %834 = sbr.rel (%p832) target = $region120
        $region119: #{tpu_custom_call.1} parent=91 // pred_region
          %836 = dma.done %s829, 16
        $region120: #{tpu_custom_call.1} parent=91 // pred_fallthru
          _
        %s837 = sand.u32 %s32, 1
        %s838 = scalar_lea.sflag [#allocation4], %s837
        %s839 = sand.u32 %s290, 1
        %s840 = smul.addr %s839, 16
        %s841 = scalar_lea.vmem [#allocation13], %s840
        // Predicated region
        $region121: #{tpu_custom_call.1} parent=91 // pred_check
          %p842 = pneg %p303
        $region122: #{tpu_custom_call.1} parent=91 // pred_check_branch
          %844 = sbr.rel (%p842) target = $region124
        $region123: #{tpu_custom_call.1} parent=91 // pred_region
          %846 = dma.done %s838, 256
        $region124: #{tpu_custom_call.1} parent=91 // pred_fallthru
          _
        %s847 = sand.u32 %s32, 1
        %s848 = scalar_lea.sflag [#allocation4], %s847
        %s849 = sand.u32 %s316, 1
        %s850 = scalar_lea.vmem [#allocation14], %s849
        // Predicated region
        $region125: #{tpu_custom_call.1} parent=91 // pred_check
          %p851 = pneg %p329
        $region126: #{tpu_custom_call.1} parent=91 // pred_check_branch
          %853 = sbr.rel (%p851) target = $region128
        $region127: #{tpu_custom_call.1} parent=91 // pred_region
          %855 = dma.done %s848, 16
        $region128: #{tpu_custom_call.1} parent=91 // pred_fallthru
          _
        %s856 = sand.u32 %s32, 1
        %s857 = scalar_lea.sflag [#allocation4], %s856
        %s858 = sand.u32 %s342, 1
        %s859 = smul.addr %s858, 16
        %s860 = scalar_lea.vmem [#allocation15], %s859
        // Predicated region
        $region129: #{tpu_custom_call.1} parent=91 // pred_check
          %p861 = pneg %p355
        $region130: #{tpu_custom_call.1} parent=91 // pred_check_branch
          %863 = sbr.rel (%p861) target = $region132
        $region131: #{tpu_custom_call.1} parent=91 // pred_region
          %865 = dma.done %s857, 256
        $region132: #{tpu_custom_call.1} parent=91 // pred_fallthru
          _
        %s866 = sand.u32 %s32, 1
        %s867 = scalar_lea.sflag [#allocation4], %s866
        %s868 = sand.u32 %s472, 1
        %s869 = smul.addr %s868, 4
        %s870 = scalar_lea.vmem [#allocation16], %s869
        // Predicated region
        $region133: #{tpu_custom_call.1} parent=91 // pred_check
          %p871 = pneg %p485
        $region134: #{tpu_custom_call.1} parent=91 // pred_check_branch
          %873 = sbr.rel (%p871) target = $region136
        $region135: #{tpu_custom_call.1} parent=91 // pred_region
          %875 = dma.done %s867, 64
        $region136: #{tpu_custom_call.1} parent=91 // pred_fallthru
          _
        %p876 = pneg %p48
        %p877 = pneg %p45
        %p878 = pneg %p69
        %p879 = pneg %p66
        %p880 = scmp.lt.s32.totalorder %s32, 1
        %s881 = scalar_select %p880, %s32, 1
        %s882 = smul.addr %s881, 4
        %s883 = smul.addr %s882, 4
        %s884 = scalar_lea.vmem %s2, %s883
        %p885 = pneg %p95
        %p886 = pneg %p92
        %s887 = sand.u32 %s32, 1
        %s888 = scalar_lea.sflag [#allocation4], %s887
        %s889 = sand.u32 %s108, 1
        %s890 = scalar_lea.vmem [#allocation8], %s889
        %p891 = pneg %p121
        %p892 = pneg %p118
        %p893 = scmp.lt.s32.totalorder %s32, 1
        %s894 = scalar_select %p893, %s32, 1
        %s895 = smul.addr %s894, 4
        %s896 = smul.addr %s895, 4
        %s897 = scalar_lea.vmem %s4, %s896
        %p898 = pneg %p147
        %p899 = pneg %p144
        %s900 = sand.u32 %s32, 1
        %s901 = scalar_lea.sflag [#allocation4], %s900
        %s902 = sand.u32 %s160, 1
        %s903 = scalar_lea.vmem [#allocation9], %s902
        %p904 = pneg %p173
        %p905 = pneg %p170
        %p906 = scmp.lt.s32.totalorder %s32, 1
        %s907 = scalar_select %p906, %s32, 1
        %s908 = smul.addr %s907, 4
        %s909 = smul.addr %s908, 4
        %s910 = scalar_lea.vmem %s6, %s909
        %p911 = pneg %p199
        %p912 = pneg %p196
        %s913 = sand.u32 %s32, 1
        %s914 = scalar_lea.sflag [#allocation4], %s913
        %s915 = sand.u32 %s212, 1
        %s916 = scalar_lea.vmem [#allocation10], %s915
        %p917 = pneg %p225
        %p918 = pneg %p222
        %s919 = sand.u32 %s32, 1
        %s920 = scalar_lea.sflag [#allocation4], %s919
        %s921 = sand.u32 %s238, 1
        %s922 = smul.addr %s921, 16
        %s923 = scalar_lea.vmem [#allocation11], %s922
        %p924 = pneg %p251
        %p925 = pneg %p248
        %s926 = sand.u32 %s32, 1
        %s927 = scalar_lea.sflag [#allocation4], %s926
        %s928 = sand.u32 %s264, 1
        %s929 = scalar_lea.vmem [#allocation12], %s928
        %p930 = pneg %p277
        %p931 = pneg %p274
        %s932 = sand.u32 %s32, 1
        %s933 = scalar_lea.sflag [#allocation4], %s932
        %s934 = sand.u32 %s290, 1
        %s935 = smul.addr %s934, 16
        %s936 = scalar_lea.vmem [#allocation13], %s935
        %p937 = pneg %p303
        %p938 = pneg %p300
        %s939 = sand.u32 %s32, 1
        %s940 = scalar_lea.sflag [#allocation4], %s939
        %s941 = sand.u32 %s316, 1
        %s942 = scalar_lea.vmem [#allocation14], %s941
        %p943 = pneg %p329
        %p944 = pneg %p326
        %s945 = sand.u32 %s32, 1
        %s946 = scalar_lea.sflag [#allocation4], %s945
        %s947 = sand.u32 %s342, 1
        %s948 = smul.addr %s947, 16
        %s949 = scalar_lea.vmem [#allocation15], %s948
        %p950 = pneg %p355
        %p951 = pneg %p352
        %p952 = scmp.lt.s32.totalorder %s32, 1
        %s953 = scalar_select %p952, %s32, 1
        %s954 = scalar_lea.vmem %s13, %s953
        %p955 = pneg %p381
        %p956 = pneg %p378
        %p957 = scmp.lt.s32.totalorder %s32, 1
        %s958 = scalar_select %p957, %s32, 1
        %s959 = smul.addr %s958, 8
        %s960 = smul.addr %s959, 4
        %s961 = scalar_lea.vmem %s14, %s960
        %p962 = pneg %p407
        %p963 = pneg %p404
        %p964 = scmp.lt.s32.totalorder %s32, 1
        %s965 = scalar_select %p964, %s32, 1
        %s966 = scalar_lea.vmem %s15, %s965
        %p967 = pneg %p433
        %p968 = pneg %p430
        %p969 = scmp.lt.s32.totalorder %s32, 1
        %s970 = scalar_select %p969, %s32, 1
        %s971 = smul.addr %s970, 4
        %s972 = scalar_lea.vmem %s16, %s971
        %p973 = pneg %p459
        %p974 = pneg %p456
        %s975 = sand.u32 %s32, 1
        %s976 = scalar_lea.sflag [#allocation4], %s975
        %s977 = sand.u32 %s472, 1
        %s978 = smul.addr %s977, 4
        %s979 = scalar_lea.vmem [#allocation16], %s978
        %p980 = pneg %p485
        %p981 = pneg %p482
        %p982 = pneg %p506
        %p983 = pneg %p503
        %p984 = scmp.lt.s32.totalorder %s32, 1
        %s985 = scalar_select %p984, %s32, 1
        %s986 = smul.addr %s985, 4
        %s987 = smul.addr %s986, 4
        %s988 = scalar_lea.vmem %s2, %s987
        %p989 = scmp.lt.s32.totalorder %s32, 1
        %s990 = scalar_select %p989, %s32, 1
        %s991 = smul.addr %s990, 4
        %s992 = smul.addr %s991, 4
        %s993 = scalar_lea.vmem %s4, %s992
        %p994 = scmp.lt.s32.totalorder %s32, 1
        %s995 = scalar_select %p994, %s32, 1
        %s996 = smul.addr %s995, 4
        %s997 = smul.addr %s996, 4
        %s998 = scalar_lea.vmem %s6, %s997
        %p999 = scmp.lt.s32.totalorder %s32, 1
        %s1000 = scalar_select %p999, %s32, 1
        %s1001 = scalar_lea.vmem %s13, %s1000
        %p1002 = scmp.lt.s32.totalorder %s32, 1
        %s1003 = scalar_select %p1002, %s32, 1
        %s1004 = smul.addr %s1003, 8
        %s1005 = smul.addr %s1004, 4
        %s1006 = scalar_lea.vmem %s14, %s1005
        %p1007 = scmp.lt.s32.totalorder %s32, 1
        %s1008 = scalar_select %p1007, %s32, 1
        %s1009 = scalar_lea.vmem %s15, %s1008
        %p1010 = scmp.lt.s32.totalorder %s32, 1
        %s1011 = scalar_select %p1010, %s32, 1
        %s1012 = smul.addr %s1011, 4
        %s1013 = scalar_lea.vmem %s16, %s1012
        %p1015 = scmp.eq.s32.totalorder %s32, 0
        // Predicated region
        $region137: #{tpu_custom_call.1} parent=91 // pred_check
          %p1016 = pneg %p1015
        $region138: #{tpu_custom_call.1} parent=91 // pred_check_branch
          %1018 = sbr.rel (%p1016) target = $region140
        $region139: #{tpu_custom_call.1} parent=91 // pred_region
          %v1019 = vld [vmem:[#allocation3] sm:$0xff]
          %v1020 = vld [vmem:[#allocation3 + $0x8] sm:$0xff]
          %vm1021 = vcmask 261120
          %1022 = vst.msk [vmem:[#allocation2] sm:$0xff] %vm1021, %v1019
          %1023 = vst.msk [vmem:[#allocation2 + $0x8] sm:$0xff] %vm1021, %v1020
        $region140: #{tpu_custom_call.1} parent=91 // pred_fallthru
          _
        %v1024 = vld [vmem:[#allocation2] sm:$0xff]
        %v1025 = vld [vmem:[#allocation2 + $0x8] sm:$0xff]
        %v1026 = vld [vmem:[#allocation6] sm:$0xf]
        %v1027 = vld [vmem:[#allocation6 + $0x4] sm:$0xf]
        %v1028 = vld [vmem:[#allocation6 + $0x8] sm:$0xf]
        %v1029 = vld [vmem:[#allocation6 + $0xc] sm:$0xf]
        %v1030 = vld [vmem:[%s1013] sm:$0xf]
        %v1031 = vld [vmem:[%s870] sm:$0xf]
        %v1032 = vpack.c.bf16 %v1025, %v1024
        %v1033 = vld [vmem:[%s988] sm:$0xf]
        %v1034 = vld [vmem:[%s988 + $0x4] sm:$0xf]
        %v1035 = vld [vmem:[%s988 + $0x8] sm:$0xf]
        %v1036 = vld [vmem:[%s988 + $0xc] sm:$0xf]
        %v1037 = vld [vmem:[%s794] sm:$0x1]
        %v1039 = vperm.slane %v1037, 0
        %v1045 = vunpack.c.l.b16 %v1033
        %v1046 = vunpack.c.l.b16 %v1034
        %v1047 = vunpack.c.l.b16 %v1035
        %v1048 = vunpack.c.l.b16 %v1036
        %v1049 = vpack.c.b16 %v1046, %v1045
        %v1050 = vpack.c.b16 %v1048, %v1047
        %vm1053 = vcmask 261120
        %v1055 = vsel %vm1053, %v1032, 0
        %1057 = vmatpush.bf16.msra.mxu0 0
        %1058 = vmatpush.bf16.msra.mxu0 0
        %1059 = vmatpush.bf16.msra.mxu0 0
        %1060 = vmatpush.bf16.msra.mxu0 0
        %1061 = vmatpush.bf16.msra.mxu0 0
        %1062 = vmatpush.bf16.msra.mxu0 0
        %1063 = vmatpush.bf16.msra.mxu0 %v1050
        %1064 = vmatpush.bf16.msra.mxu0 %v1049
        %1065 = vmatmul.bf16.gmra.mxu0 %v1055
        %v1066 = vpop.f32.mrf.mxu0
        %v1067 = vadd.f32 %v1039, %v1066
        %v1068 = vpop.f32.mrf.mxu0
        %v1069 = vadd.f32 %v1039, %v1068
        %1070 = vdwg.mxu0
        %v1071 = vld [vmem:[%s993] sm:$0xf]
        %v1072 = vld [vmem:[%s993 + $0x4] sm:$0xf]
        %v1073 = vld [vmem:[%s993 + $0x8] sm:$0xf]
        %v1074 = vld [vmem:[%s993 + $0xc] sm:$0xf]
        %v1075 = vld [vmem:[%s803] sm:$0x1]
        %v1076 = vpack.c.bf16 %v1067, %v1067
        %v1077 = vpack.c.bf16 %v1069, %v1069
        %v1079 = vunpack.c.l.b16 %v1076
        %v1080 = vpack.c.b16 %v1079, %v1079
        %1081 = vrot.lane.b32.xlu0 %v1080, 96
        %v1082 = vpop.permute.xlu0 %1081
        %vm1083 = vcmask 64512
        %v1085 = vsel %vm1083, %v1076, 0
        %v1088 = vsel %vm1083, %v1082, 0
        %1090 = vmatpush.bf16.xpose.msra.mxu0 0
        %1091 = vmatpush.bf16.xpose.msra.mxu0 0
        %1092 = vmatpush.bf16.xpose.msra.mxu0 0
        %1093 = vmatpush.bf16.xpose.msra.mxu0 0
        %1094 = vmatpush.bf16.xpose.msra.mxu0 0
        %1095 = vmatpush.bf16.xpose.msra.mxu0 0
        %1096 = vmatpush.bf16.xpose.msra.mxu0 0
        %1097 = vmatpush.bf16.xpose.msra.mxu0 %v1088
        %1098 = vmatmul.bf16.gmra.mxu0 %v1085
        %v1099 = vpop.f32.mrf.mxu0
        %v1100 = vadd.f32 0.0, %v1099
        %v1101 = vpop.f32.mrf.mxu0
        %1102 = vdwg.mxu0
        %v1104 = vunpack.c.l.b16 %v1077
        %v1105 = vpack.c.b16 %v1104, %v1104
        %1106 = vrot.lane.b32.xlu0 %v1105, 96
        %v1107 = vpop.permute.xlu0 %1106
        %v1109 = vsel %vm1083, %v1077, 0
        %v1112 = vsel %vm1083, %v1107, 0
        %1114 = vmatpush.bf16.xpose.msra.mxu0 0
        %1115 = vmatpush.bf16.xpose.msra.mxu0 0
        %1116 = vmatpush.bf16.xpose.msra.mxu0 0
        %1117 = vmatpush.bf16.xpose.msra.mxu0 0
        %1118 = vmatpush.bf16.xpose.msra.mxu0 0
        %1119 = vmatpush.bf16.xpose.msra.mxu0 0
        %1120 = vmatpush.bf16.xpose.msra.mxu0 0
        %1121 = vmatpush.bf16.xpose.msra.mxu0 %v1112
        %1122 = vmatmul.bf16.gmra.mxu0 %v1109
        %v1123 = vpop.f32.mrf.mxu0
        %v1124 = vadd.f32 0.0, %v1123
        %v1125 = vpop.f32.mrf.mxu0
        %1126 = vdwg.mxu0
        %v1127 = vsel %vm1083, %v1100, -inf
        %1128 = vmax.xlane.f32.xlu0 %v1127
        %v1129 = vpop.xlane.xlu0 %1128
        %v1130 = vsel %vm1083, %v1124, -inf
        %1131 = vmax.xlane.f32.xlu0 %v1130
        %v1132 = vpop.xlane.xlu0 %1131
        %v1133 = vsub.f32 %v1100, %v1129
        %v1134 = vsub.f32 %v1124, %v1132
        %v1135 = vmul.f32 %v1133, 1.442695
        %v1136 = vpow.pop %v1135
        %v1137 = vmul.f32 %v1134, 1.442695
        %v1138 = vpow.pop %v1137
        %v1139 = vsel %vm1083, %v1136, 0.0
        %1140 = vadd.xlane.f32.xlu0 %v1139
        %v1141 = vpop.xlane.xlu0 %1140
        %v1142 = vsel %vm1083, %v1138, 0.0
        %1143 = vadd.xlane.f32.xlu0 %v1142
        %v1144 = vpop.xlane.xlu0 %1143
        %v1145 = vrcp.pop %v1141
        %v1146 = vrcp.pop %v1144
        %v1147 = vmul.f32 %v1136, %v1145
        %v1148 = vmul.f32 %v1138, %v1146
        %v1149 = vpack.c.bf16 %v1147, %v1147
        %v1150 = vpack.c.bf16 %v1148, %v1148
        %1151 = vrot.lane.b32.xlu0 %v1080, 64
        %v1152 = vpop.permute.xlu0 %1151
        %v1154 = vsel %vm1083, %v1149, 0
        %vm1156 = vcmask 1043456
        %v1158 = vsel %vm1156, %v1152, 0
        %1160 = vmatpush.bf16.msra.mxu0 0
        %1161 = vmatpush.bf16.msra.mxu0 0
        %1162 = vmatpush.bf16.msra.mxu0 0
        %1163 = vmatpush.bf16.msra.mxu0 0
        %1164 = vmatpush.bf16.msra.mxu0 0
        %1165 = vmatpush.bf16.msra.mxu0 0
        %1166 = vmatpush.bf16.msra.mxu0 0
        %1167 = vmatpush.bf16.msra.mxu0 %v1158
        %1168 = vmatmul.bf16.gmra.mxu0 %v1154
        %v1169 = vpop.f32.mrf.mxu0
        %v1170 = vadd.f32 0.0, %v1169
        %v1171 = vpop.f32.mrf.mxu0
        %1172 = vdwg.mxu0
        %1173 = vrot.lane.b32.xlu0 %v1105, 64
        %v1174 = vpop.permute.xlu0 %1173
        %v1176 = vsel %vm1083, %v1150, 0
        %v1179 = vsel %vm1156, %v1174, 0
        %1181 = vmatpush.bf16.msra.mxu0 0
        %1182 = vmatpush.bf16.msra.mxu0 0
        %1183 = vmatpush.bf16.msra.mxu0 0
        %1184 = vmatpush.bf16.msra.mxu0 0
        %1185 = vmatpush.bf16.msra.mxu0 0
        %1186 = vmatpush.bf16.msra.mxu0 0
        %1187 = vmatpush.bf16.msra.mxu0 0
        %1188 = vmatpush.bf16.msra.mxu0 %v1179
        %1189 = vmatmul.bf16.gmra.mxu0 %v1176
        %v1190 = vpop.f32.mrf.mxu0
        %v1191 = vadd.f32 0.0, %v1190
        %v1192 = vpop.f32.mrf.mxu0
        %1193 = vdwg.mxu0
        %v1194 = vpack.c.bf16 %v1170, %v1170
        %v1195 = vpack.c.bf16 %v1191, %v1191
        %1196 = vrot.lane.b32.xlu0 %v1080, 120
        %v1197 = vpop.permute.xlu0 %1196
        %1198 = vrot.lane.b32.xlu0 %v1080, 88
        %v1199 = vpop.permute.xlu0 %1198
        %v1201 = vsel %vm1083, %v1197, 0
        %v1204 = vsel %vm1083, %v1199, 0
        %1206 = vmatpush.bf16.xpose.msra.mxu0 0
        %1207 = vmatpush.bf16.xpose.msra.mxu0 0
        %1208 = vmatpush.bf16.xpose.msra.mxu0 0
        %1209 = vmatpush.bf16.xpose.msra.mxu0 0
        %1210 = vmatpush.bf16.xpose.msra.mxu0 0
        %1211 = vmatpush.bf16.xpose.msra.mxu0 0
        %1212 = vmatpush.bf16.xpose.msra.mxu0 0
        %1213 = vmatpush.bf16.xpose.msra.mxu0 %v1204
        %1214 = vmatmul.bf16.gmra.mxu0 %v1201
        %v1215 = vpop.f32.mrf.mxu0
        %v1216 = vadd.f32 0.0, %v1215
        %v1217 = vpop.f32.mrf.mxu0
        %1218 = vdwg.mxu0
        %1219 = vrot.lane.b32.xlu0 %v1105, 120
        %v1220 = vpop.permute.xlu0 %1219
        %1221 = vrot.lane.b32.xlu0 %v1105, 88
        %v1222 = vpop.permute.xlu0 %1221
        %v1224 = vsel %vm1083, %v1220, 0
        %v1227 = vsel %vm1083, %v1222, 0
        %1229 = vmatpush.bf16.xpose.msra.mxu0 0
        %1230 = vmatpush.bf16.xpose.msra.mxu0 0
        %1231 = vmatpush.bf16.xpose.msra.mxu0 0
        %1232 = vmatpush.bf16.xpose.msra.mxu0 0
        %1233 = vmatpush.bf16.xpose.msra.mxu0 0
        %1234 = vmatpush.bf16.xpose.msra.mxu0 0
        %1235 = vmatpush.bf16.xpose.msra.mxu0 0
        %1236 = vmatpush.bf16.xpose.msra.mxu0 %v1227
        %1237 = vmatmul.bf16.gmra.mxu0 %v1224
        %v1238 = vpop.f32.mrf.mxu0
        %v1239 = vadd.f32 0.0, %v1238
        %v1240 = vpop.f32.mrf.mxu0
        %1241 = vdwg.mxu0
        %v1242 = vsel %vm1083, %v1216, -inf
        %1243 = vmax.xlane.f32.xlu0 %v1242
        %v1244 = vpop.xlane.xlu0 %1243
        %v1245 = vsel %vm1083, %v1239, -inf
        %1246 = vmax.xlane.f32.xlu0 %v1245
        %v1247 = vpop.xlane.xlu0 %1246
        %v1248 = vsub.f32 %v1216, %v1244
        %v1249 = vsub.f32 %v1239, %v1247
        %v1250 = vmul.f32 %v1248, 1.442695
        %v1251 = vpow.pop %v1250
        %v1252 = vmul.f32 %v1249, 1.442695
        %v1253 = vpow.pop %v1252
        %v1254 = vsel %vm1083, %v1251, 0.0
        %1255 = vadd.xlane.f32.xlu0 %v1254
        %v1256 = vpop.xlane.xlu0 %1255
        %v1257 = vsel %vm1083, %v1253, 0.0
        %1258 = vadd.xlane.f32.xlu0 %v1257
        %v1259 = vpop.xlane.xlu0 %1258
        %v1260 = vrcp.pop %v1256
        %v1261 = vrcp.pop %v1259
        %v1262 = vmul.f32 %v1251, %v1260
        %v1263 = vmul.f32 %v1253, %v1261
        %v1264 = vpack.c.bf16 %v1262, %v1262
        %v1265 = vpack.c.bf16 %v1263, %v1263
        %1266 = vrot.lane.b32.xlu0 %v1080, 56
        %v1267 = vpop.permute.xlu0 %1266
        %v1269 = vsel %vm1083, %v1264, 0
        %v1272 = vsel %vm1156, %v1267, 0
        %1274 = vmatpush.bf16.msra.mxu0 0
        %1275 = vmatpush.bf16.msra.mxu0 0
        %1276 = vmatpush.bf16.msra.mxu0 0
        %1277 = vmatpush.bf16.msra.mxu0 0
        %1278 = vmatpush.bf16.msra.mxu0 0
        %1279 = vmatpush.bf16.msra.mxu0 0
        %1280 = vmatpush.bf16.msra.mxu0 0
        %1281 = vmatpush.bf16.msra.mxu0 %v1272
        %1282 = vmatmul.bf16.gmra.mxu0 %v1269
        %v1283 = vpop.f32.mrf.mxu0
        %v1284 = vadd.f32 0.0, %v1283
        %v1285 = vpop.f32.mrf.mxu0
        %1286 = vdwg.mxu0
        %1287 = vrot.lane.b32.xlu0 %v1105, 56
        %v1288 = vpop.permute.xlu0 %1287
        %v1290 = vsel %vm1083, %v1265, 0
        %v1293 = vsel %vm1156, %v1288, 0
        %1295 = vmatpush.bf16.msra.mxu0 0
        %1296 = vmatpush.bf16.msra.mxu0 0
        %1297 = vmatpush.bf16.msra.mxu0 0
        %1298 = vmatpush.bf16.msra.mxu0 0
        %1299 = vmatpush.bf16.msra.mxu0 0
        %1300 = vmatpush.bf16.msra.mxu0 0
        %1301 = vmatpush.bf16.msra.mxu0 0
        %1302 = vmatpush.bf16.msra.mxu0 %v1293
        %1303 = vmatmul.bf16.gmra.mxu0 %v1290
        %v1304 = vpop.f32.mrf.mxu0
        %v1305 = vadd.f32 0.0, %v1304
        %v1306 = vpop.f32.mrf.mxu0
        %1307 = vdwg.mxu0
        %v1308 = vpack.c.bf16 %v1284, %v1284
        %v1309 = vpack.c.bf16 %v1305, %v1305
        %1310 = vrot.lane.b32.xlu0 %v1080, 112
        %v1311 = vpop.permute.xlu0 %1310
        %1312 = vrot.lane.b32.xlu0 %v1080, 80
        %v1313 = vpop.permute.xlu0 %1312
        %v1315 = vsel %vm1083, %v1311, 0
        %v1318 = vsel %vm1083, %v1313, 0
        %1320 = vmatpush.bf16.xpose.msra.mxu0 0
        %1321 = vmatpush.bf16.xpose.msra.mxu0 0
        %1322 = vmatpush.bf16.xpose.msra.mxu0 0
        %1323 = vmatpush.bf16.xpose.msra.mxu0 0
        %1324 = vmatpush.bf16.xpose.msra.mxu0 0
        %1325 = vmatpush.bf16.xpose.msra.mxu0 0
        %1326 = vmatpush.bf16.xpose.msra.mxu0 0
        %1327 = vmatpush.bf16.xpose.msra.mxu0 %v1318
        %1328 = vmatmul.bf16.gmra.mxu0 %v1315
        %v1329 = vpop.f32.mrf.mxu0
        %v1330 = vadd.f32 0.0, %v1329
        %v1331 = vpop.f32.mrf.mxu0
        %1332 = vdwg.mxu0
        %1333 = vrot.lane.b32.xlu0 %v1105, 112
        %v1334 = vpop.permute.xlu0 %1333
        %1335 = vrot.lane.b32.xlu0 %v1105, 80
        %v1336 = vpop.permute.xlu0 %1335
        %v1338 = vsel %vm1083, %v1334, 0
        %v1341 = vsel %vm1083, %v1336, 0
        %1343 = vmatpush.bf16.xpose.msra.mxu0 0
        %1344 = vmatpush.bf16.xpose.msra.mxu0 0
        %1345 = vmatpush.bf16.xpose.msra.mxu0 0
        %1346 = vmatpush.bf16.xpose.msra.mxu0 0
        %1347 = vmatpush.bf16.xpose.msra.mxu0 0
        %1348 = vmatpush.bf16.xpose.msra.mxu0 0
        %1349 = vmatpush.bf16.xpose.msra.mxu0 0
        %1350 = vmatpush.bf16.xpose.msra.mxu0 %v1341
        %1351 = vmatmul.bf16.gmra.mxu0 %v1338
        %v1352 = vpop.f32.mrf.mxu0
        %v1353 = vadd.f32 0.0, %v1352
        %v1354 = vpop.f32.mrf.mxu0
        %1355 = vdwg.mxu0
        %v1356 = vsel %vm1083, %v1330, -inf
        %1357 = vmax.xlane.f32.xlu0 %v1356
        %v1358 = vpop.xlane.xlu0 %1357
        %v1359 = vsel %vm1083, %v1353, -inf
        %1360 = vmax.xlane.f32.xlu0 %v1359
        %v1361 = vpop.xlane.xlu0 %1360
        %v1362 = vsub.f32 %v1330, %v1358
        %v1363 = vsub.f32 %v1353, %v1361
        %v1364 = vmul.f32 %v1362, 1.442695
        %v1365 = vpow.pop %v1364
        %v1366 = vmul.f32 %v1363, 1.442695
        %v1367 = vpow.pop %v1366
        %v1368 = vsel %vm1083, %v1365, 0.0
        %1369 = vadd.xlane.f32.xlu0 %v1368
        %v1370 = vpop.xlane.xlu0 %1369
        %v1371 = vsel %vm1083, %v1367, 0.0
        %1372 = vadd.xlane.f32.xlu0 %v1371
        %v1373 = vpop.xlane.xlu0 %1372
        %v1374 = vrcp.pop %v1370
        %v1375 = vrcp.pop %v1373
        %v1376 = vmul.f32 %v1365, %v1374
        %v1377 = vmul.f32 %v1367, %v1375
        %v1378 = vpack.c.bf16 %v1376, %v1376
        %v1379 = vpack.c.bf16 %v1377, %v1377
        %1380 = vrot.lane.b32.xlu0 %v1080, 48
        %v1381 = vpop.permute.xlu0 %1380
        %v1383 = vsel %vm1083, %v1378, 0
        %v1386 = vsel %vm1156, %v1381, 0
        %1388 = vmatpush.bf16.msra.mxu0 0
        %1389 = vmatpush.bf16.msra.mxu0 0
        %1390 = vmatpush.bf16.msra.mxu0 0
        %1391 = vmatpush.bf16.msra.mxu0 0
        %1392 = vmatpush.bf16.msra.mxu0 0
        %1393 = vmatpush.bf16.msra.mxu0 0
        %1394 = vmatpush.bf16.msra.mxu0 0
        %1395 = vmatpush.bf16.msra.mxu0 %v1386
        %1396 = vmatmul.bf16.gmra.mxu0 %v1383
        %v1397 = vpop.f32.mrf.mxu0
        %v1398 = vadd.f32 0.0, %v1397
        %v1399 = vpop.f32.mrf.mxu0
        %1400 = vdwg.mxu0
        %1401 = vrot.lane.b32.xlu0 %v1105, 48
        %v1402 = vpop.permute.xlu0 %1401
        %v1404 = vsel %vm1083, %v1379, 0
        %v1407 = vsel %vm1156, %v1402, 0
        %1409 = vmatpush.bf16.msra.mxu0 0
        %1410 = vmatpush.bf16.msra.mxu0 0
        %1411 = vmatpush.bf16.msra.mxu0 0
        %1412 = vmatpush.bf16.msra.mxu0 0
        %1413 = vmatpush.bf16.msra.mxu0 0
        %1414 = vmatpush.bf16.msra.mxu0 0
        %1415 = vmatpush.bf16.msra.mxu0 0
        %1416 = vmatpush.bf16.msra.mxu0 %v1407
        %1417 = vmatmul.bf16.gmra.mxu0 %v1404
        %v1418 = vpop.f32.mrf.mxu0
        %v1419 = vadd.f32 0.0, %v1418
        %v1420 = vpop.f32.mrf.mxu0
        %1421 = vdwg.mxu0
        %v1422 = vpack.c.bf16 %v1398, %v1398
        %v1423 = vpack.c.bf16 %v1419, %v1419
        %1424 = vrot.lane.b32.xlu0 %v1080, 104
        %v1425 = vpop.permute.xlu0 %1424
        %1426 = vrot.lane.b32.xlu0 %v1080, 72
        %v1427 = vpop.permute.xlu0 %1426
        %v1429 = vsel %vm1083, %v1425, 0
        %v1432 = vsel %vm1083, %v1427, 0
        %1434 = vmatpush.bf16.xpose.msra.mxu0 0
        %1435 = vmatpush.bf16.xpose.msra.mxu0 0
        %1436 = vmatpush.bf16.xpose.msra.mxu0 0
        %1437 = vmatpush.bf16.xpose.msra.mxu0 0
        %1438 = vmatpush.bf16.xpose.msra.mxu0 0
        %1439 = vmatpush.bf16.xpose.msra.mxu0 0
        %1440 = vmatpush.bf16.xpose.msra.mxu0 0
        %1441 = vmatpush.bf16.xpose.msra.mxu0 %v1432
        %1442 = vmatmul.bf16.gmra.mxu0 %v1429
        %v1443 = vpop.f32.mrf.mxu0
        %v1444 = vadd.f32 0.0, %v1443
        %v1445 = vpop.f32.mrf.mxu0
        %1446 = vdwg.mxu0
        %1447 = vrot.lane.b32.xlu0 %v1105, 104
        %v1448 = vpop.permute.xlu0 %1447
        %1449 = vrot.lane.b32.xlu0 %v1105, 72
        %v1450 = vpop.permute.xlu0 %1449
        %v1452 = vsel %vm1083, %v1448, 0
        %v1455 = vsel %vm1083, %v1450, 0
        %1457 = vmatpush.bf16.xpose.msra.mxu0 0
        %1458 = vmatpush.bf16.xpose.msra.mxu0 0
        %1459 = vmatpush.bf16.xpose.msra.mxu0 0
        %1460 = vmatpush.bf16.xpose.msra.mxu0 0
        %1461 = vmatpush.bf16.xpose.msra.mxu0 0
        %1462 = vmatpush.bf16.xpose.msra.mxu0 0
        %1463 = vmatpush.bf16.xpose.msra.mxu0 0
        %1464 = vmatpush.bf16.xpose.msra.mxu0 %v1455
        %1465 = vmatmul.bf16.gmra.mxu0 %v1452
        %v1466 = vpop.f32.mrf.mxu0
        %v1467 = vadd.f32 0.0, %v1466
        %v1468 = vpop.f32.mrf.mxu0
        %1469 = vdwg.mxu0
        %v1470 = vsel %vm1083, %v1444, -inf
        %1471 = vmax.xlane.f32.xlu0 %v1470
        %v1472 = vpop.xlane.xlu0 %1471
        %v1473 = vsel %vm1083, %v1467, -inf
        %1474 = vmax.xlane.f32.xlu0 %v1473
        %v1475 = vpop.xlane.xlu0 %1474
        %v1476 = vsub.f32 %v1444, %v1472
        %v1477 = vsub.f32 %v1467, %v1475
        %v1478 = vmul.f32 %v1476, 1.442695
        %v1479 = vpow.pop %v1478
        %v1480 = vmul.f32 %v1477, 1.442695
        %v1481 = vpow.pop %v1480
        %v1482 = vsel %vm1083, %v1479, 0.0
        %1483 = vadd.xlane.f32.xlu0 %v1482
        %v1484 = vpop.xlane.xlu0 %1483
        %v1485 = vsel %vm1083, %v1481, 0.0
        %1486 = vadd.xlane.f32.xlu0 %v1485
        %v1487 = vpop.xlane.xlu0 %1486
        %v1488 = vrcp.pop %v1484
        %v1489 = vrcp.pop %v1487
        %v1490 = vmul.f32 %v1479, %v1488
        %v1491 = vmul.f32 %v1481, %v1489
        %v1492 = vpack.c.bf16 %v1490, %v1490
        %v1493 = vpack.c.bf16 %v1491, %v1491
        %1494 = vrot.lane.b32.xlu0 %v1080, 40
        %v1495 = vpop.permute.xlu0 %1494
        %v1497 = vsel %vm1083, %v1492, 0
        %v1500 = vsel %vm1156, %v1495, 0
        %1502 = vmatpush.bf16.msra.mxu0 0
        %1503 = vmatpush.bf16.msra.mxu0 0
        %1504 = vmatpush.bf16.msra.mxu0 0
        %1505 = vmatpush.bf16.msra.mxu0 0
        %1506 = vmatpush.bf16.msra.mxu0 0
        %1507 = vmatpush.bf16.msra.mxu0 0
        %1508 = vmatpush.bf16.msra.mxu0 0
        %1509 = vmatpush.bf16.msra.mxu0 %v1500
        %1510 = vmatmul.bf16.gmra.mxu0 %v1497
        %v1511 = vpop.f32.mrf.mxu0
        %v1512 = vadd.f32 0.0, %v1511
        %v1513 = vpop.f32.mrf.mxu0
        %1514 = vdwg.mxu0
        %1515 = vrot.lane.b32.xlu0 %v1105, 40
        %v1516 = vpop.permute.xlu0 %1515
        %v1518 = vsel %vm1083, %v1493, 0
        %v1521 = vsel %vm1156, %v1516, 0
        %1523 = vmatpush.bf16.msra.mxu0 0
        %1524 = vmatpush.bf16.msra.mxu0 0
        %1525 = vmatpush.bf16.msra.mxu0 0
        %1526 = vmatpush.bf16.msra.mxu0 0
        %1527 = vmatpush.bf16.msra.mxu0 0
        %1528 = vmatpush.bf16.msra.mxu0 0
        %1529 = vmatpush.bf16.msra.mxu0 0
        %1530 = vmatpush.bf16.msra.mxu0 %v1521
        %1531 = vmatmul.bf16.gmra.mxu0 %v1518
        %v1532 = vpop.f32.mrf.mxu0
        %v1533 = vadd.f32 0.0, %v1532
        %v1534 = vpop.f32.mrf.mxu0
        %1535 = vdwg.mxu0
        %v1536 = vpack.c.bf16 %v1512, %v1512
        %v1537 = vpack.c.bf16 %v1533, %v1533
        %v1540 = vunpack.c.l.b16 %v1308
        %v1541 = vunpack.c.l.b16 %v1309
        %v1542 = vpack.c.b16 %v1540, %v1540
        %v1543 = vpack.c.b16 %v1541, %v1541
        %1544 = vrot.lane.b32.xlu0 %v1542, 8
        %v1545 = vpop.permute.xlu0 %1544
        %1546 = vrot.lane.b32.xlu0 %v1543, 8
        %v1547 = vpop.permute.xlu0 %1546
        %v1550 = vunpack.c.l.b16 %v1422
        %v1551 = vunpack.c.l.b16 %v1423
        %v1552 = vpack.c.b16 %v1550, %v1550
        %v1553 = vpack.c.b16 %v1551, %v1551
        %1554 = vrot.lane.b32.xlu0 %v1552, 16
        %v1555 = vpop.permute.xlu0 %1554
        %1556 = vrot.lane.b32.xlu0 %v1553, 16
        %v1557 = vpop.permute.xlu0 %1556
        %v1560 = vunpack.c.l.b16 %v1536
        %v1561 = vunpack.c.l.b16 %v1537
        %v1562 = vpack.c.b16 %v1560, %v1560
        %v1563 = vpack.c.b16 %v1561, %v1561
        %1564 = vrot.lane.b32.xlu0 %v1562, 24
        %v1565 = vpop.permute.xlu0 %1564
        %1566 = vrot.lane.b32.xlu0 %v1563, 24
        %v1567 = vpop.permute.xlu0 %1566
        %v1570 = vsel %vm1083, %v1194, %v1545
        %v1573 = vsel %vm1083, %v1195, %v1547
        %vm1574 = vcmask 130048
        %v1576 = vsel %vm1574, %v1570, %v1555
        %v1578 = vsel %vm1574, %v1573, %v1557
        %vm1579 = vcmask 195584
        %v1581 = vsel %vm1579, %v1576, %v1565
        %v1583 = vsel %vm1579, %v1578, %v1567
        %v1585 = vperm.slane %v1075, 0
        %v1589 = vunpack.c.l.b16 %v1581
        %v1590 = vunpack.c.l.b16 %v1583
        %v1591 = vpack.c.b16 %v1590, %v1589
        %v1596 = vunpack.c.l.b16 %v1071
        %v1597 = vunpack.c.l.b16 %v1072
        %v1598 = vunpack.c.l.b16 %v1073
        %v1599 = vunpack.c.l.b16 %v1074
        %v1600 = vpack.c.b16 %v1597, %v1596
        %v1601 = vpack.c.b16 %v1599, %v1598
        %v1605 = vsel %vm1053, %v1591, 0
        %1607 = vmatpush.bf16.msra.mxu0 0
        %1608 = vmatpush.bf16.msra.mxu0 0
        %1609 = vmatpush.bf16.msra.mxu0 0
        %1610 = vmatpush.bf16.msra.mxu0 0
        %1611 = vmatpush.bf16.msra.mxu0 0
        %1612 = vmatpush.bf16.msra.mxu0 0
        %1613 = vmatpush.bf16.msra.mxu0 %v1601
        %1614 = vmatpush.bf16.msra.mxu0 %v1600
        %1615 = vmatmul.bf16.gmra.mxu0 %v1605
        %v1616 = vpop.f32.mrf.mxu0
        %v1617 = vadd.f32 %v1585, %v1616
        %v1618 = vpop.f32.mrf.mxu0
        %v1619 = vadd.f32 %v1585, %v1618
        %1620 = vdwg.mxu0
        %v1621 = vadd.f32 %v1024, %v1617
        %v1622 = vadd.f32 %v1025, %v1619
        %v1623 = vsel %vm1053, %v1621, 0.0
        %1624 = vadd.xlane.f32.xlu0 %v1623
        %v1625 = vpop.xlane.xlu0 %1624
        %v1626 = vsel %vm1053, %v1622, 0.0
        %1627 = vadd.xlane.f32.xlu0 %v1626
        %v1628 = vpop.xlane.xlu0 %1627
        %v1629 = vrcp.pop 32.0
        %v1630 = vmul.f32 32.0, %v1629
        %v1631 = vsub.f32 1.0, %v1630
        %v1632 = vmul.f32 %v1629, %v1631
        %v1633 = vadd.f32 %v1629, %v1632
        %vm1634 = vweird.f32 %v1629
        %v1635 = vsel %vm1634, %v1629, %v1633
        %v1636 = vmul.f32 %v1625, %v1635
        %v1637 = vmul.f32 %v1628, %v1635
        %v1638 = vmul.f32 %v1621, %v1621
        %v1639 = vmul.f32 %v1622, %v1622
        %v1640 = vsel %vm1053, %v1638, 0.0
        %1641 = vadd.xlane.f32.xlu0 %v1640
        %v1642 = vpop.xlane.xlu0 %1641
        %v1643 = vsel %vm1053, %v1639, 0.0
        %1644 = vadd.xlane.f32.xlu0 %v1643
        %v1645 = vpop.xlane.xlu0 %1644
        %v1646 = vmul.f32 %v1642, %v1635
        %v1647 = vmul.f32 %v1645, %v1635
        %v1648 = vmul.f32 %v1636, %v1636
        %v1649 = vmul.f32 %v1637, %v1637
        %v1650 = vsub.f32 %v1646, %v1648
        %v1651 = vsub.f32 %v1647, %v1649
        %v1652 = vmax.f32 %v1650, 0.0
        %v1653 = vmax.f32 %v1651, 0.0
        %v1654 = vsub.f32 %v1621, %v1636
        %v1655 = vsub.f32 %v1622, %v1637
        %v1656 = vadd.f32 %v1652, 1e-05
        %v1657 = vadd.f32 %v1653, 1e-05
        %v1658 = vrsqrt.pop %v1656
        %v1659 = vmul.f32 %v1658, %v1656
        %v1660 = vmul.f32 %v1659, %v1658
        %v1661 = vmul.f32 0.5, %v1660
        %v1662 = vsub.f32 1.5, %v1661
        %v1663 = vmul.f32 %v1658, %v1662
        %vm1664 = vweird.f32 %v1656
        %vm1665 = vweird.f32 %v1658
        %vm1666 = vmor %vm1664, %vm1665
        %v1667 = vsel %vm1666, %v1658, %v1663
        %v1668 = vrsqrt.pop %v1657
        %v1669 = vmul.f32 %v1668, %v1657
        %v1670 = vmul.f32 %v1669, %v1668
        %v1671 = vmul.f32 0.5, %v1670
        %v1672 = vsub.f32 1.5, %v1671
        %v1673 = vmul.f32 %v1668, %v1672
        %vm1674 = vweird.f32 %v1657
        %vm1675 = vweird.f32 %v1668
        %vm1676 = vmor %vm1674, %vm1675
        %v1677 = vsel %vm1676, %v1668, %v1673
        %v1678 = vmul.f32 %v1654, %v1667
        %v1679 = vmul.f32 %v1655, %v1677
        %v1680 = vperm.slane %v1030, 0
        %v1681 = vmul.f32 %v1678, %v1680
        %v1682 = vmul.f32 %v1679, %v1680
        %v1683 = vperm.slane %v1031, 0
        %v1684 = vadd.f32 %v1681, %v1683
        %v1685 = vadd.f32 %v1682, %v1683
        %v1686 = vpack.c.bf16 %v1685, %v1684
        %v1687 = vld [vmem:[%s998] sm:$0xf]
        %v1688 = vld [vmem:[%s998 + $0x4] sm:$0xf]
        %v1689 = vld [vmem:[%s998 + $0x8] sm:$0xf]
        %v1690 = vld [vmem:[%s998 + $0xc] sm:$0xf]
        %v1691 = vld [vmem:[%s812] sm:$0x1]
        %v1693 = vperm.slane %v1691, 0
        %v1699 = vunpack.c.l.b16 %v1687
        %v1700 = vunpack.c.l.b16 %v1688
        %v1701 = vunpack.c.l.b16 %v1689
        %v1702 = vunpack.c.l.b16 %v1690
        %v1703 = vpack.c.b16 %v1700, %v1699
        %v1704 = vpack.c.b16 %v1702, %v1701
        %v1708 = vsel %vm1053, %v1686, 0
        %1710 = vmatpush.bf16.msra.mxu0 0
        %1711 = vmatpush.bf16.msra.mxu0 0
        %1712 = vmatpush.bf16.msra.mxu0 0
        %1713 = vmatpush.bf16.msra.mxu0 0
        %1714 = vmatpush.bf16.msra.mxu0 0
        %1715 = vmatpush.bf16.msra.mxu0 0
        %1716 = vmatpush.bf16.msra.mxu0 %v1704
        %1717 = vmatpush.bf16.msra.mxu0 %v1703
        %1718 = vmatmul.bf16.gmra.mxu0 %v1708
        %v1719 = vpop.f32.mrf.mxu0
        %v1720 = vadd.f32 %v1693, %v1719
        %v1721 = vpop.f32.mrf.mxu0
        %v1722 = vadd.f32 %v1693, %v1721
        %1723 = vdwg.mxu0
        %v1724 = vld [vmem:[%s822] sm:$0xf]
        %v1725 = vld [vmem:[%s822 + $0x4] sm:$0xf]
        %v1726 = vld [vmem:[%s822 + $0x8] sm:$0xf]
        %v1727 = vld [vmem:[%s822 + $0xc] sm:$0xf]
        %v1728 = vld [vmem:[%s831] sm:$0x1]
        %v1730 = vperm.slane %v1728, 0
        %v1736 = vunpack.c.l.b16 %v1026
        %v1737 = vunpack.c.l.b16 %v1027
        %v1738 = vunpack.c.l.b16 %v1028
        %v1739 = vunpack.c.l.b16 %v1029
        %v1740 = vpack.c.b16 %v1737, %v1736
        %v1741 = vpack.c.b16 %v1739, %v1738
        %v1746 = vunpack.c.l.b16 %v1724
        %v1747 = vunpack.c.l.b16 %v1725
        %v1748 = vunpack.c.l.b16 %v1726
        %v1749 = vunpack.c.l.b16 %v1727
        %v1750 = vpack.c.b16 %v1747, %v1746
        %v1751 = vpack.c.b16 %v1749, %v1748
        %v1755 = vsel %vm1053, %v1740, 0
        %v1758 = vsel %vm1053, %v1741, 0
        %1760 = vmatpush.bf16.msra.mxu0 0
        %1761 = vmatpush.bf16.msra.mxu0 0
        %1762 = vmatpush.bf16.msra.mxu0 0
        %1763 = vmatpush.bf16.msra.mxu0 0
        %1764 = vmatpush.bf16.msra.mxu0 0
        %1765 = vmatpush.bf16.msra.mxu0 0
        %1766 = vmatpush.bf16.msra.mxu0 %v1751
        %1767 = vmatpush.bf16.msra.mxu0 %v1750
        %1768 = vmatmul.bf16.gmra.mxu0 %v1755
        %v1769 = vpop.f32.mrf.mxu0
        %v1770 = vadd.f32 %v1730, %v1769
        %v1771 = vpop.f32.mrf.mxu0
        %v1772 = vadd.f32 %v1730, %v1771
        %1773 = vmatmul.bf16.gmra.mxu0 %v1758
        %v1774 = vpop.f32.mrf.mxu0
        %v1775 = vadd.f32 %v1730, %v1774
        %v1776 = vpop.f32.mrf.mxu0
        %v1777 = vadd.f32 %v1730, %v1776
        %1778 = vdwg.mxu0
        %v1779 = vld [vmem:[%s841] sm:$0xf]
        %v1780 = vld [vmem:[%s841 + $0x4] sm:$0xf]
        %v1781 = vld [vmem:[%s841 + $0x8] sm:$0xf]
        %v1782 = vld [vmem:[%s841 + $0xc] sm:$0xf]
        %v1783 = vld [vmem:[%s850] sm:$0x1]
        %v1784 = vpack.c.bf16 %v1720, %v1720
        %v1785 = vpack.c.bf16 %v1722, %v1722
        %v1786 = vpack.c.bf16 %v1770, %v1770
        %v1787 = vpack.c.bf16 %v1772, %v1772
        %v1788 = vpack.c.bf16 %v1775, %v1775
        %v1789 = vpack.c.bf16 %v1777, %v1777
        %v1792 = vunpack.c.l.b16 %v1786
        %v1793 = vunpack.c.l.b16 %v1787
        %v1794 = vpack.c.b16 %v1793, %v1792
        %v1796 = vsel %vm1083, %v1784, 0
        %v1799 = vsel %vm1083, %v1794, 0
        %1801 = vmatpush.bf16.xpose.msra.mxu0 0
        %1802 = vmatpush.bf16.xpose.msra.mxu0 0
        %1803 = vmatpush.bf16.xpose.msra.mxu0 0
        %1804 = vmatpush.bf16.xpose.msra.mxu0 0
        %1805 = vmatpush.bf16.xpose.msra.mxu0 0
        %1806 = vmatpush.bf16.xpose.msra.mxu0 0
        %1807 = vmatpush.bf16.xpose.msra.mxu0 0
        %1808 = vmatpush.bf16.xpose.msra.mxu0 %v1799
        %1809 = vmatmul.bf16.gmra.mxu0 %v1796
        %v1810 = vpop.f32.mrf.mxu0
        %v1811 = vadd.f32 0.0, %v1810
        %v1812 = vpop.f32.mrf.mxu0
        %1813 = vdwg.mxu0
        %v1816 = vunpack.c.l.b16 %v1788
        %v1817 = vunpack.c.l.b16 %v1789
        %v1818 = vpack.c.b16 %v1817, %v1816
        %v1820 = vsel %vm1083, %v1785, 0
        %v1823 = vsel %vm1083, %v1818, 0
        %1825 = vmatpush.bf16.xpose.msra.mxu0 0
        %1826 = vmatpush.bf16.xpose.msra.mxu0 0
        %1827 = vmatpush.bf16.xpose.msra.mxu0 0
        %1828 = vmatpush.bf16.xpose.msra.mxu0 0
        %1829 = vmatpush.bf16.xpose.msra.mxu0 0
        %1830 = vmatpush.bf16.xpose.msra.mxu0 0
        %1831 = vmatpush.bf16.xpose.msra.mxu0 0
        %1832 = vmatpush.bf16.xpose.msra.mxu0 %v1823
        %1833 = vmatmul.bf16.gmra.mxu0 %v1820
        %v1834 = vpop.f32.mrf.mxu0
        %v1835 = vadd.f32 0.0, %v1834
        %v1836 = vpop.f32.mrf.mxu0
        %1837 = vdwg.mxu0
        %v1838 = vsel %vm1574, %v1811, -inf
        %1839 = vmax.xlane.f32.xlu0 %v1838
        %v1840 = vpop.xlane.xlu0 %1839
        %v1841 = vsel %vm1574, %v1835, -inf
        %1842 = vmax.xlane.f32.xlu0 %v1841
        %v1843 = vpop.xlane.xlu0 %1842
        %v1844 = vsub.f32 %v1811, %v1840
        %v1845 = vsub.f32 %v1835, %v1843
        %v1846 = vmul.f32 %v1844, 1.442695
        %v1847 = vpow.pop %v1846
        %v1848 = vmul.f32 %v1845, 1.442695
        %v1849 = vpow.pop %v1848
        %v1850 = vsel %vm1574, %v1847, 0.0
        %1851 = vadd.xlane.f32.xlu0 %v1850
        %v1852 = vpop.xlane.xlu0 %1851
        %v1853 = vsel %vm1574, %v1849, 0.0
        %1854 = vadd.xlane.f32.xlu0 %v1853
        %v1855 = vpop.xlane.xlu0 %1854
        %v1856 = vrcp.pop %v1852
        %v1857 = vrcp.pop %v1855
        %v1858 = vmul.f32 %v1847, %v1856
        %v1859 = vmul.f32 %v1849, %v1857
        %v1860 = vpack.c.bf16 %v1858, %v1858
        %v1861 = vpack.c.bf16 %v1859, %v1859
        %1862 = vrot.lane.b32.xlu0 %v1794, 96
        %v1863 = vpop.permute.xlu0 %1862
        %v1866 = vsel %vm1574, %v1860, 0
        %1868 = vmatpush.bf16.msra.mxu0 0
        %1869 = vmatpush.bf16.msra.mxu0 0
        %1870 = vmatpush.bf16.msra.mxu0 0
        %1871 = vmatpush.bf16.msra.mxu0 0
        %1872 = vmatpush.bf16.msra.mxu0 0
        %1873 = vmatpush.bf16.msra.mxu0 0
        %1874 = vmatpush.bf16.msra.mxu0 0
        %1875 = vmatpush.bf16.msra.mxu0 %v1863
        %1876 = vmatmul.bf16.gmra.mxu0 %v1866
        %v1877 = vpop.f32.mrf.mxu0
        %v1878 = vadd.f32 0.0, %v1877
        %v1879 = vpop.f32.mrf.mxu0
        %1880 = vdwg.mxu0
        %1881 = vrot.lane.b32.xlu0 %v1818, 96
        %v1882 = vpop.permute.xlu0 %1881
        %v1885 = vsel %vm1574, %v1861, 0
        %1887 = vmatpush.bf16.msra.mxu0 0
        %1888 = vmatpush.bf16.msra.mxu0 0
        %1889 = vmatpush.bf16.msra.mxu0 0
        %1890 = vmatpush.bf16.msra.mxu0 0
        %1891 = vmatpush.bf16.msra.mxu0 0
        %1892 = vmatpush.bf16.msra.mxu0 0
        %1893 = vmatpush.bf16.msra.mxu0 0
        %1894 = vmatpush.bf16.msra.mxu0 %v1882
        %1895 = vmatmul.bf16.gmra.mxu0 %v1885
        %v1896 = vpop.f32.mrf.mxu0
        %v1897 = vadd.f32 0.0, %v1896
        %v1898 = vpop.f32.mrf.mxu0
        %1899 = vdwg.mxu0
        %v1900 = vpack.c.bf16 %v1878, %v1878
        %v1901 = vpack.c.bf16 %v1897, %v1897
        %v1903 = vunpack.c.l.b16 %v1784
        %v1904 = vpack.c.b16 %v1903, %v1903
        %1905 = vrot.lane.b32.xlu0 %v1904, 120
        %v1906 = vpop.permute.xlu0 %1905
        %1907 = vrot.lane.b32.xlu0 %v1794, 120
        %v1908 = vpop.permute.xlu0 %1907
        %v1910 = vsel %vm1083, %v1906, 0
        %v1913 = vsel %vm1083, %v1908, 0
        %1915 = vmatpush.bf16.xpose.msra.mxu0 0
        %1916 = vmatpush.bf16.xpose.msra.mxu0 0
        %1917 = vmatpush.bf16.xpose.msra.mxu0 0
        %1918 = vmatpush.bf16.xpose.msra.mxu0 0
        %1919 = vmatpush.bf16.xpose.msra.mxu0 0
        %1920 = vmatpush.bf16.xpose.msra.mxu0 0
        %1921 = vmatpush.bf16.xpose.msra.mxu0 0
        %1922 = vmatpush.bf16.xpose.msra.mxu0 %v1913
        %1923 = vmatmul.bf16.gmra.mxu0 %v1910
        %v1924 = vpop.f32.mrf.mxu0
        %v1925 = vadd.f32 0.0, %v1924
        %v1926 = vpop.f32.mrf.mxu0
        %1927 = vdwg.mxu0
        %v1929 = vunpack.c.l.b16 %v1785
        %v1930 = vpack.c.b16 %v1929, %v1929
        %1931 = vrot.lane.b32.xlu0 %v1930, 120
        %v1932 = vpop.permute.xlu0 %1931
        %1933 = vrot.lane.b32.xlu0 %v1818, 120
        %v1934 = vpop.permute.xlu0 %1933
        %v1936 = vsel %vm1083, %v1932, 0
        %v1939 = vsel %vm1083, %v1934, 0
        %1941 = vmatpush.bf16.xpose.msra.mxu0 0
        %1942 = vmatpush.bf16.xpose.msra.mxu0 0
        %1943 = vmatpush.bf16.xpose.msra.mxu0 0
        %1944 = vmatpush.bf16.xpose.msra.mxu0 0
        %1945 = vmatpush.bf16.xpose.msra.mxu0 0
        %1946 = vmatpush.bf16.xpose.msra.mxu0 0
        %1947 = vmatpush.bf16.xpose.msra.mxu0 0
        %1948 = vmatpush.bf16.xpose.msra.mxu0 %v1939
        %1949 = vmatmul.bf16.gmra.mxu0 %v1936
        %v1950 = vpop.f32.mrf.mxu0
        %v1951 = vadd.f32 0.0, %v1950
        %v1952 = vpop.f32.mrf.mxu0
        %1953 = vdwg.mxu0
        %v1954 = vsel %vm1574, %v1925, -inf
        %1955 = vmax.xlane.f32.xlu0 %v1954
        %v1956 = vpop.xlane.xlu0 %1955
        %v1957 = vsel %vm1574, %v1951, -inf
        %1958 = vmax.xlane.f32.xlu0 %v1957
        %v1959 = vpop.xlane.xlu0 %1958
        %v1960 = vsub.f32 %v1925, %v1956
        %v1961 = vsub.f32 %v1951, %v1959
        %v1962 = vmul.f32 %v1960, 1.442695
        %v1963 = vpow.pop %v1962
        %v1964 = vmul.f32 %v1961, 1.442695
        %v1965 = vpow.pop %v1964
        %v1966 = vsel %vm1574, %v1963, 0.0
        %1967 = vadd.xlane.f32.xlu0 %v1966
        %v1968 = vpop.xlane.xlu0 %1967
        %v1969 = vsel %vm1574, %v1965, 0.0
        %1970 = vadd.xlane.f32.xlu0 %v1969
        %v1971 = vpop.xlane.xlu0 %1970
        %v1972 = vrcp.pop %v1968
        %v1973 = vrcp.pop %v1971
        %v1974 = vmul.f32 %v1963, %v1972
        %v1975 = vmul.f32 %v1965, %v1973
        %v1976 = vpack.c.bf16 %v1974, %v1974
        %v1977 = vpack.c.bf16 %v1975, %v1975
        %1978 = vrot.lane.b32.xlu0 %v1794, 88
        %v1979 = vpop.permute.xlu0 %1978
        %v1982 = vsel %vm1574, %v1976, 0
        %1984 = vmatpush.bf16.msra.mxu0 0
        %1985 = vmatpush.bf16.msra.mxu0 0
        %1986 = vmatpush.bf16.msra.mxu0 0
        %1987 = vmatpush.bf16.msra.mxu0 0
        %1988 = vmatpush.bf16.msra.mxu0 0
        %1989 = vmatpush.bf16.msra.mxu0 0
        %1990 = vmatpush.bf16.msra.mxu0 0
        %1991 = vmatpush.bf16.msra.mxu0 %v1979
        %1992 = vmatmul.bf16.gmra.mxu0 %v1982
        %v1993 = vpop.f32.mrf.mxu0
        %v1994 = vadd.f32 0.0, %v1993
        %v1995 = vpop.f32.mrf.mxu0
        %1996 = vdwg.mxu0
        %1997 = vrot.lane.b32.xlu0 %v1818, 88
        %v1998 = vpop.permute.xlu0 %1997
        %v2001 = vsel %vm1574, %v1977, 0
        %2003 = vmatpush.bf16.msra.mxu0 0
        %2004 = vmatpush.bf16.msra.mxu0 0
        %2005 = vmatpush.bf16.msra.mxu0 0
        %2006 = vmatpush.bf16.msra.mxu0 0
        %2007 = vmatpush.bf16.msra.mxu0 0
        %2008 = vmatpush.bf16.msra.mxu0 0
        %2009 = vmatpush.bf16.msra.mxu0 0
        %2010 = vmatpush.bf16.msra.mxu0 %v1998
        %2011 = vmatmul.bf16.gmra.mxu0 %v2001
        %v2012 = vpop.f32.mrf.mxu0
        %v2013 = vadd.f32 0.0, %v2012
        %v2014 = vpop.f32.mrf.mxu0
        %2015 = vdwg.mxu0
        %v2016 = vpack.c.bf16 %v1994, %v1994
        %v2017 = vpack.c.bf16 %v2013, %v2013
        %2018 = vrot.lane.b32.xlu0 %v1904, 112
        %v2019 = vpop.permute.xlu0 %2018
        %2020 = vrot.lane.b32.xlu0 %v1794, 112
        %v2021 = vpop.permute.xlu0 %2020
        %v2023 = vsel %vm1083, %v2019, 0
        %v2026 = vsel %vm1083, %v2021, 0
        %2028 = vmatpush.bf16.xpose.msra.mxu0 0
        %2029 = vmatpush.bf16.xpose.msra.mxu0 0
        %2030 = vmatpush.bf16.xpose.msra.mxu0 0
        %2031 = vmatpush.bf16.xpose.msra.mxu0 0
        %2032 = vmatpush.bf16.xpose.msra.mxu0 0
        %2033 = vmatpush.bf16.xpose.msra.mxu0 0
        %2034 = vmatpush.bf16.xpose.msra.mxu0 0
        %2035 = vmatpush.bf16.xpose.msra.mxu0 %v2026
        %2036 = vmatmul.bf16.gmra.mxu0 %v2023
        %v2037 = vpop.f32.mrf.mxu0
        %v2038 = vadd.f32 0.0, %v2037
        %v2039 = vpop.f32.mrf.mxu0
        %2040 = vdwg.mxu0
        %2041 = vrot.lane.b32.xlu0 %v1930, 112
        %v2042 = vpop.permute.xlu0 %2041
        %2043 = vrot.lane.b32.xlu0 %v1818, 112
        %v2044 = vpop.permute.xlu0 %2043
        %v2046 = vsel %vm1083, %v2042, 0
        %v2049 = vsel %vm1083, %v2044, 0
        %2051 = vmatpush.bf16.xpose.msra.mxu0 0
        %2052 = vmatpush.bf16.xpose.msra.mxu0 0
        %2053 = vmatpush.bf16.xpose.msra.mxu0 0
        %2054 = vmatpush.bf16.xpose.msra.mxu0 0
        %2055 = vmatpush.bf16.xpose.msra.mxu0 0
        %2056 = vmatpush.bf16.xpose.msra.mxu0 0
        %2057 = vmatpush.bf16.xpose.msra.mxu0 0
        %2058 = vmatpush.bf16.xpose.msra.mxu0 %v2049
        %2059 = vmatmul.bf16.gmra.mxu0 %v2046
        %v2060 = vpop.f32.mrf.mxu0
        %v2061 = vadd.f32 0.0, %v2060
        %v2062 = vpop.f32.mrf.mxu0
        %2063 = vdwg.mxu0
        %v2064 = vsel %vm1574, %v2038, -inf
        %2065 = vmax.xlane.f32.xlu0 %v2064
        %v2066 = vpop.xlane.xlu0 %2065
        %v2067 = vsel %vm1574, %v2061, -inf
        %2068 = vmax.xlane.f32.xlu0 %v2067
        %v2069 = vpop.xlane.xlu0 %2068
        %v2070 = vsub.f32 %v2038, %v2066
        %v2071 = vsub.f32 %v2061, %v2069
        %v2072 = vmul.f32 %v2070, 1.442695
        %v2073 = vpow.pop %v2072
        %v2074 = vmul.f32 %v2071, 1.442695
        %v2075 = vpow.pop %v2074
        %v2076 = vsel %vm1574, %v2073, 0.0
        %2077 = vadd.xlane.f32.xlu0 %v2076
        %v2078 = vpop.xlane.xlu0 %2077
        %v2079 = vsel %vm1574, %v2075, 0.0
        %2080 = vadd.xlane.f32.xlu0 %v2079
        %v2081 = vpop.xlane.xlu0 %2080
        %v2082 = vrcp.pop %v2078
        %v2083 = vrcp.pop %v2081
        %v2084 = vmul.f32 %v2073, %v2082
        %v2085 = vmul.f32 %v2075, %v2083
        %v2086 = vpack.c.bf16 %v2084, %v2084
        %v2087 = vpack.c.bf16 %v2085, %v2085
        %2088 = vrot.lane.b32.xlu0 %v1794, 80
        %v2089 = vpop.permute.xlu0 %2088
        %v2092 = vsel %vm1574, %v2086, 0
        %2094 = vmatpush.bf16.msra.mxu0 0
        %2095 = vmatpush.bf16.msra.mxu0 0
        %2096 = vmatpush.bf16.msra.mxu0 0
        %2097 = vmatpush.bf16.msra.mxu0 0
        %2098 = vmatpush.bf16.msra.mxu0 0
        %2099 = vmatpush.bf16.msra.mxu0 0
        %2100 = vmatpush.bf16.msra.mxu0 0
        %2101 = vmatpush.bf16.msra.mxu0 %v2089
        %2102 = vmatmul.bf16.gmra.mxu0 %v2092
        %v2103 = vpop.f32.mrf.mxu0
        %v2104 = vadd.f32 0.0, %v2103
        %v2105 = vpop.f32.mrf.mxu0
        %2106 = vdwg.mxu0
        %2107 = vrot.lane.b32.xlu0 %v1818, 80
        %v2108 = vpop.permute.xlu0 %2107
        %v2111 = vsel %vm1574, %v2087, 0
        %2113 = vmatpush.bf16.msra.mxu0 0
        %2114 = vmatpush.bf16.msra.mxu0 0
        %2115 = vmatpush.bf16.msra.mxu0 0
        %2116 = vmatpush.bf16.msra.mxu0 0
        %2117 = vmatpush.bf16.msra.mxu0 0
        %2118 = vmatpush.bf16.msra.mxu0 0
        %2119 = vmatpush.bf16.msra.mxu0 0
        %2120 = vmatpush.bf16.msra.mxu0 %v2108
        %2121 = vmatmul.bf16.gmra.mxu0 %v2111
        %v2122 = vpop.f32.mrf.mxu0
        %v2123 = vadd.f32 0.0, %v2122
        %v2124 = vpop.f32.mrf.mxu0
        %2125 = vdwg.mxu0
        %v2126 = vpack.c.bf16 %v2104, %v2104
        %v2127 = vpack.c.bf16 %v2123, %v2123
        %2128 = vrot.lane.b32.xlu0 %v1904, 104
        %v2129 = vpop.permute.xlu0 %2128
        %2130 = vrot.lane.b32.xlu0 %v1794, 104
        %v2131 = vpop.permute.xlu0 %2130
        %v2133 = vsel %vm1083, %v2129, 0
        %v2136 = vsel %vm1083, %v2131, 0
        %2138 = vmatpush.bf16.xpose.msra.mxu0 0
        %2139 = vmatpush.bf16.xpose.msra.mxu0 0
        %2140 = vmatpush.bf16.xpose.msra.mxu0 0
        %2141 = vmatpush.bf16.xpose.msra.mxu0 0
        %2142 = vmatpush.bf16.xpose.msra.mxu0 0
        %2143 = vmatpush.bf16.xpose.msra.mxu0 0
        %2144 = vmatpush.bf16.xpose.msra.mxu0 0
        %2145 = vmatpush.bf16.xpose.msra.mxu0 %v2136
        %2146 = vmatmul.bf16.gmra.mxu0 %v2133
        %v2147 = vpop.f32.mrf.mxu0
        %v2148 = vadd.f32 0.0, %v2147
        %v2149 = vpop.f32.mrf.mxu0
        %2150 = vdwg.mxu0
        %2151 = vrot.lane.b32.xlu0 %v1930, 104
        %v2152 = vpop.permute.xlu0 %2151
        %2153 = vrot.lane.b32.xlu0 %v1818, 104
        %v2154 = vpop.permute.xlu0 %2153
        %v2156 = vsel %vm1083, %v2152, 0
        %v2159 = vsel %vm1083, %v2154, 0
        %2161 = vmatpush.bf16.xpose.msra.mxu0 0
        %2162 = vmatpush.bf16.xpose.msra.mxu0 0
        %2163 = vmatpush.bf16.xpose.msra.mxu0 0
        %2164 = vmatpush.bf16.xpose.msra.mxu0 0
        %2165 = vmatpush.bf16.xpose.msra.mxu0 0
        %2166 = vmatpush.bf16.xpose.msra.mxu0 0
        %2167 = vmatpush.bf16.xpose.msra.mxu0 0
        %2168 = vmatpush.bf16.xpose.msra.mxu0 %v2159
        %2169 = vmatmul.bf16.gmra.mxu0 %v2156
        %v2170 = vpop.f32.mrf.mxu0
        %v2171 = vadd.f32 0.0, %v2170
        %v2172 = vpop.f32.mrf.mxu0
        %2173 = vdwg.mxu0
        %v2174 = vsel %vm1574, %v2148, -inf
        %2175 = vmax.xlane.f32.xlu0 %v2174
        %v2176 = vpop.xlane.xlu0 %2175
        %v2177 = vsel %vm1574, %v2171, -inf
        %2178 = vmax.xlane.f32.xlu0 %v2177
        %v2179 = vpop.xlane.xlu0 %2178
        %v2180 = vsub.f32 %v2148, %v2176
        %v2181 = vsub.f32 %v2171, %v2179
        %v2182 = vmul.f32 %v2180, 1.442695
        %v2183 = vpow.pop %v2182
        %v2184 = vmul.f32 %v2181, 1.442695
        %v2185 = vpow.pop %v2184
        %v2186 = vsel %vm1574, %v2183, 0.0
        %2187 = vadd.xlane.f32.xlu0 %v2186
        %v2188 = vpop.xlane.xlu0 %2187
        %v2189 = vsel %vm1574, %v2185, 0.0
        %2190 = vadd.xlane.f32.xlu0 %v2189
        %v2191 = vpop.xlane.xlu0 %2190
        %v2192 = vrcp.pop %v2188
        %v2193 = vrcp.pop %v2191
        %v2194 = vmul.f32 %v2183, %v2192
        %v2195 = vmul.f32 %v2185, %v2193
        %v2196 = vpack.c.bf16 %v2194, %v2194
        %v2197 = vpack.c.bf16 %v2195, %v2195
        %2198 = vrot.lane.b32.xlu0 %v1794, 72
        %v2199 = vpop.permute.xlu0 %2198
        %v2202 = vsel %vm1574, %v2196, 0
        %2204 = vmatpush.bf16.msra.mxu0 0
        %2205 = vmatpush.bf16.msra.mxu0 0
        %2206 = vmatpush.bf16.msra.mxu0 0
        %2207 = vmatpush.bf16.msra.mxu0 0
        %2208 = vmatpush.bf16.msra.mxu0 0
        %2209 = vmatpush.bf16.msra.mxu0 0
        %2210 = vmatpush.bf16.msra.mxu0 0
        %2211 = vmatpush.bf16.msra.mxu0 %v2199
        %2212 = vmatmul.bf16.gmra.mxu0 %v2202
        %v2213 = vpop.f32.mrf.mxu0
        %v2214 = vadd.f32 0.0, %v2213
        %v2215 = vpop.f32.mrf.mxu0
        %2216 = vdwg.mxu0
        %2217 = vrot.lane.b32.xlu0 %v1818, 72
        %v2218 = vpop.permute.xlu0 %2217
        %v2221 = vsel %vm1574, %v2197, 0
        %2223 = vmatpush.bf16.msra.mxu0 0
        %2224 = vmatpush.bf16.msra.mxu0 0
        %2225 = vmatpush.bf16.msra.mxu0 0
        %2226 = vmatpush.bf16.msra.mxu0 0
        %2227 = vmatpush.bf16.msra.mxu0 0
        %2228 = vmatpush.bf16.msra.mxu0 0
        %2229 = vmatpush.bf16.msra.mxu0 0
        %2230 = vmatpush.bf16.msra.mxu0 %v2218
        %2231 = vmatmul.bf16.gmra.mxu0 %v2221
        %v2232 = vpop.f32.mrf.mxu0
        %v2233 = vadd.f32 0.0, %v2232
        %v2234 = vpop.f32.mrf.mxu0
        %2235 = vdwg.mxu0
        %v2236 = vpack.c.bf16 %v2214, %v2214
        %v2237 = vpack.c.bf16 %v2233, %v2233
        %v2240 = vunpack.c.l.b16 %v2016
        %v2241 = vunpack.c.l.b16 %v2017
        %v2242 = vpack.c.b16 %v2240, %v2240
        %v2243 = vpack.c.b16 %v2241, %v2241
        %2244 = vrot.lane.b32.xlu0 %v2242, 8
        %v2245 = vpop.permute.xlu0 %2244
        %2246 = vrot.lane.b32.xlu0 %v2243, 8
        %v2247 = vpop.permute.xlu0 %2246
        %v2250 = vunpack.c.l.b16 %v2126
        %v2251 = vunpack.c.l.b16 %v2127
        %v2252 = vpack.c.b16 %v2250, %v2250
        %v2253 = vpack.c.b16 %v2251, %v2251
        %2254 = vrot.lane.b32.xlu0 %v2252, 16
        %v2255 = vpop.permute.xlu0 %2254
        %2256 = vrot.lane.b32.xlu0 %v2253, 16
        %v2257 = vpop.permute.xlu0 %2256
        %v2260 = vunpack.c.l.b16 %v2236
        %v2261 = vunpack.c.l.b16 %v2237
        %v2262 = vpack.c.b16 %v2260, %v2260
        %v2263 = vpack.c.b16 %v2261, %v2261
        %2264 = vrot.lane.b32.xlu0 %v2262, 24
        %v2265 = vpop.permute.xlu0 %2264
        %2266 = vrot.lane.b32.xlu0 %v2263, 24
        %v2267 = vpop.permute.xlu0 %2266
        %v2270 = vsel %vm1083, %v1900, %v2245
        %v2273 = vsel %vm1083, %v1901, %v2247
        %v2275 = vsel %vm1574, %v2270, %v2255
        %v2277 = vsel %vm1574, %v2273, %v2257
        %v2279 = vsel %vm1579, %v2275, %v2265
        %v2281 = vsel %vm1579, %v2277, %v2267
        %v2283 = vperm.slane %v1783, 0
        %v2287 = vunpack.c.l.b16 %v2279
        %v2288 = vunpack.c.l.b16 %v2281
        %v2289 = vpack.c.b16 %v2288, %v2287
        %v2294 = vunpack.c.l.b16 %v1779
        %v2295 = vunpack.c.l.b16 %v1780
        %v2296 = vunpack.c.l.b16 %v1781
        %v2297 = vunpack.c.l.b16 %v1782
        %v2298 = vpack.c.b16 %v2295, %v2294
        %v2299 = vpack.c.b16 %v2297, %v2296
        %v2303 = vsel %vm1053, %v2289, 0
        %2305 = vmatpush.bf16.msra.mxu0 0
        %2306 = vmatpush.bf16.msra.mxu0 0
        %2307 = vmatpush.bf16.msra.mxu0 0
        %2308 = vmatpush.bf16.msra.mxu0 0
        %2309 = vmatpush.bf16.msra.mxu0 0
        %2310 = vmatpush.bf16.msra.mxu0 0
        %2311 = vmatpush.bf16.msra.mxu0 %v2299
        %2312 = vmatpush.bf16.msra.mxu0 %v2298
        %2313 = vmatmul.bf16.gmra.mxu0 %v2303
        %v2314 = vpop.f32.mrf.mxu0
        %v2315 = vadd.f32 %v2283, %v2314
        %v2316 = vpop.f32.mrf.mxu0
        %v2317 = vadd.f32 %v2283, %v2316
        %2318 = vdwg.mxu0
        %v2319 = vadd.f32 %v1684, %v2315
        %v2320 = vadd.f32 %v1685, %v2317
        %v2321 = vsel %vm1053, %v2319, 0.0
        %2322 = vadd.xlane.f32.xlu0 %v2321
        %v2323 = vpop.xlane.xlu0 %2322
        %v2324 = vsel %vm1053, %v2320, 0.0
        %2325 = vadd.xlane.f32.xlu0 %v2324
        %v2326 = vpop.xlane.xlu0 %2325
        %v2327 = vmul.f32 %v2323, %v1635
        %v2328 = vmul.f32 %v2326, %v1635
        %v2329 = vmul.f32 %v2319, %v2319
        %v2330 = vmul.f32 %v2320, %v2320
        %v2331 = vsel %vm1053, %v2329, 0.0
        %2332 = vadd.xlane.f32.xlu0 %v2331
        %v2333 = vpop.xlane.xlu0 %2332
        %v2334 = vsel %vm1053, %v2330, 0.0
        %2335 = vadd.xlane.f32.xlu0 %v2334
        %v2336 = vpop.xlane.xlu0 %2335
        %v2337 = vmul.f32 %v2333, %v1635
        %v2338 = vmul.f32 %v2336, %v1635
        %v2339 = vmul.f32 %v2327, %v2327
        %v2340 = vmul.f32 %v2328, %v2328
        %v2341 = vsub.f32 %v2337, %v2339
        %v2342 = vsub.f32 %v2338, %v2340
        %v2343 = vmax.f32 %v2341, 0.0
        %v2344 = vmax.f32 %v2342, 0.0
        %v2345 = vsub.f32 %v2319, %v2327
        %v2346 = vsub.f32 %v2320, %v2328
        %v2347 = vadd.f32 %v2343, 1e-05
        %v2348 = vadd.f32 %v2344, 1e-05
        %v2349 = vrsqrt.pop %v2347
        %v2350 = vmul.f32 %v2349, %v2347
        %v2351 = vmul.f32 %v2350, %v2349
        %v2352 = vmul.f32 0.5, %v2351
        %v2353 = vsub.f32 1.5, %v2352
        %v2354 = vmul.f32 %v2349, %v2353
        %vm2355 = vweird.f32 %v2347
        %vm2356 = vweird.f32 %v2349
        %vm2357 = vmor %vm2355, %vm2356
        %v2358 = vsel %vm2357, %v2349, %v2354
        %v2359 = vrsqrt.pop %v2348
        %v2360 = vmul.f32 %v2359, %v2348
        %v2361 = vmul.f32 %v2360, %v2359
        %v2362 = vmul.f32 0.5, %v2361
        %v2363 = vsub.f32 1.5, %v2362
        %v2364 = vmul.f32 %v2359, %v2363
        %vm2365 = vweird.f32 %v2348
        %vm2366 = vweird.f32 %v2359
        %vm2367 = vmor %vm2365, %vm2366
        %v2368 = vsel %vm2367, %v2359, %v2364
        %v2369 = vmul.f32 %v2345, %v2358
        %v2370 = vmul.f32 %v2346, %v2368
        %v2371 = vperm.slane %v1030, 1
        %v2372 = vmul.f32 %v2369, %v2371
        %v2373 = vmul.f32 %v2370, %v2371
        %v2374 = vperm.slane %v1031, 1
        %v2375 = vadd.f32 %v2372, %v2374
        %v2376 = vadd.f32 %v2373, %v2374
        %v2377 = vpack.c.bf16 %v2376, %v2375
        %v2378 = vld [vmem:[%s860] sm:$0xf]
        %v2379 = vld [vmem:[%s860 + $0x4] sm:$0xf]
        %v2380 = vld [vmem:[%s860 + $0x8] sm:$0xf]
        %v2381 = vld [vmem:[%s860 + $0xc] sm:$0xf]
        %v2382 = vld [vmem:[%s1001] sm:$0x1]
        %v2384 = vperm.slane %v2382, 0
        %v2390 = vunpack.c.l.b16 %v2378
        %v2391 = vunpack.c.l.b16 %v2379
        %v2392 = vunpack.c.l.b16 %v2380
        %v2393 = vunpack.c.l.b16 %v2381
        %v2394 = vpack.c.b16 %v2391, %v2390
        %v2395 = vpack.c.b16 %v2393, %v2392
        %v2399 = vsel %vm1053, %v2377, 0
        %2401 = vmatpush.bf16.msra.mxu0 0
        %2402 = vmatpush.bf16.msra.mxu0 0
        %2403 = vmatpush.bf16.msra.mxu0 0
        %2404 = vmatpush.bf16.msra.mxu0 0
        %2405 = vmatpush.bf16.msra.mxu0 0
        %2406 = vmatpush.bf16.msra.mxu0 0
        %2407 = vmatpush.bf16.msra.mxu0 %v2395
        %2408 = vmatpush.bf16.msra.mxu0 %v2394
        %2409 = vmatmul.bf16.gmra.mxu0 %v2399
        %v2410 = vpop.f32.mrf.mxu0
        %v2411 = vadd.f32 %v2384, %v2410
        %v2412 = vpop.f32.mrf.mxu0
        %v2413 = vadd.f32 %v2384, %v2412
        %2414 = vdwg.mxu0
        %v2415 = vmax.f32 %v2411, 0.0
        %v2416 = vmax.f32 %v2413, 0.0
        %v2417 = vpack.c.bf16 %v2416, %v2415
        %v2418 = vld [vmem:[%s1006] sm:$0xf]
        %v2419 = vld [vmem:[%s1006 + $0x4] sm:$0xf]
        %v2420 = vld [vmem:[%s1006 + $0x8] sm:$0xf]
        %v2421 = vld [vmem:[%s1006 + $0xc] sm:$0xf]
        %v2422 = vld [vmem:[%s1006 + $0x10] sm:$0xf]
        %v2423 = vld [vmem:[%s1006 + $0x14] sm:$0xf]
        %v2424 = vld [vmem:[%s1006 + $0x18] sm:$0xf]
        %v2425 = vld [vmem:[%s1006 + $0x1c] sm:$0xf]
        %v2426 = vld [vmem:[%s1009] sm:$0x1]
        %v2428 = vperm.slane %v2426, 0
        %v2438 = vunpack.c.l.b16 %v2418
        %v2439 = vunpack.c.l.b16 %v2419
        %v2440 = vunpack.c.l.b16 %v2420
        %v2441 = vunpack.c.l.b16 %v2421
        %v2442 = vunpack.c.l.b16 %v2422
        %v2443 = vunpack.c.l.b16 %v2423
        %v2444 = vunpack.c.l.b16 %v2424
        %v2445 = vunpack.c.l.b16 %v2425
        %v2446 = vpack.c.b16 %v2439, %v2438
        %v2447 = vpack.c.b16 %v2441, %v2440
        %v2448 = vpack.c.b16 %v2443, %v2442
        %v2449 = vpack.c.b16 %v2445, %v2444
        %vm2454 = vcmask 523264
        %v2456 = vsel %vm2454, %v2417, 0
        %2458 = vmatpush.bf16.msra.mxu0 0
        %2459 = vmatpush.bf16.msra.mxu0 0
        %2460 = vmatpush.bf16.msra.mxu0 0
        %2461 = vmatpush.bf16.msra.mxu0 0
        %2462 = vmatpush.bf16.msra.mxu0 %v2449
        %2463 = vmatpush.bf16.msra.mxu0 %v2448
        %2464 = vmatpush.bf16.msra.mxu0 %v2447
        %2465 = vmatpush.bf16.msra.mxu0 %v2446
        %2466 = vmatmul.bf16.gmra.mxu0 %v2456
        %v2467 = vpop.f32.mrf.mxu0
        %v2468 = vadd.f32 %v2428, %v2467
        %v2469 = vpop.f32.mrf.mxu0
        %v2470 = vadd.f32 %v2428, %v2469
        %2471 = vdwg.mxu0
        %v2472 = vadd.f32 %v2375, %v2468
        %v2473 = vadd.f32 %v2376, %v2470
        %v2474 = vsel %vm1053, %v2472, 0.0
        %2475 = vadd.xlane.f32.xlu0 %v2474
        %v2476 = vpop.xlane.xlu0 %2475
        %v2477 = vsel %vm1053, %v2473, 0.0
        %2478 = vadd.xlane.f32.xlu0 %v2477
        %v2479 = vpop.xlane.xlu0 %2478
        %v2480 = vmul.f32 %v2476, %v1635
        %v2481 = vmul.f32 %v2479, %v1635
        %v2482 = vmul.f32 %v2472, %v2472
        %v2483 = vmul.f32 %v2473, %v2473
        %v2484 = vsel %vm1053, %v2482, 0.0
        %2485 = vadd.xlane.f32.xlu0 %v2484
        %v2486 = vpop.xlane.xlu0 %2485
        %v2487 = vsel %vm1053, %v2483, 0.0
        %2488 = vadd.xlane.f32.xlu0 %v2487
        %v2489 = vpop.xlane.xlu0 %2488
        %v2490 = vmul.f32 %v2486, %v1635
        %v2491 = vmul.f32 %v2489, %v1635
        %v2492 = vmul.f32 %v2480, %v2480
        %v2493 = vmul.f32 %v2481, %v2481
        %v2494 = vsub.f32 %v2490, %v2492
        %v2495 = vsub.f32 %v2491, %v2493
        %v2496 = vmax.f32 %v2494, 0.0
        %v2497 = vmax.f32 %v2495, 0.0
        %v2498 = vsub.f32 %v2472, %v2480
        %v2499 = vsub.f32 %v2473, %v2481
        %v2500 = vadd.f32 %v2496, 1e-05
        %v2501 = vadd.f32 %v2497, 1e-05
        %v2502 = vrsqrt.pop %v2500
        %v2503 = vmul.f32 %v2502, %v2500
        %v2504 = vmul.f32 %v2503, %v2502
        %v2505 = vmul.f32 0.5, %v2504
        %v2506 = vsub.f32 1.5, %v2505
        %v2507 = vmul.f32 %v2502, %v2506
        %vm2508 = vweird.f32 %v2500
        %vm2509 = vweird.f32 %v2502
        %vm2510 = vmor %vm2508, %vm2509
        %v2511 = vsel %vm2510, %v2502, %v2507
        %v2512 = vrsqrt.pop %v2501
        %v2513 = vmul.f32 %v2512, %v2501
        %v2514 = vmul.f32 %v2513, %v2512
        %v2515 = vmul.f32 0.5, %v2514
        %v2516 = vsub.f32 1.5, %v2515
        %v2517 = vmul.f32 %v2512, %v2516
        %vm2518 = vweird.f32 %v2501
        %vm2519 = vweird.f32 %v2512
        %vm2520 = vmor %vm2518, %vm2519
        %v2521 = vsel %vm2520, %v2512, %v2517
        %v2522 = vmul.f32 %v2498, %v2511
        %v2523 = vmul.f32 %v2499, %v2521
        %v2524 = vperm.slane %v1030, 2
        %v2525 = vmul.f32 %v2522, %v2524
        %v2526 = vmul.f32 %v2523, %v2524
        %v2527 = vperm.slane %v1031, 2
        %v2528 = vadd.f32 %v2525, %v2527
        %v2529 = vadd.f32 %v2526, %v2527
        %2530 = vst.msk [vmem:[#allocation2] sm:$0xff] %vm1053, %v2528
        %2531 = vst.msk [vmem:[#allocation2 + $0x8] sm:$0xff] %vm1053, %v2529
        %p2532 = scmp.eq.s32.totalorder %s32, 1
        // Predicated region
        $region141: #{tpu_custom_call.1} parent=91 // pred_check
          %p2533 = pneg %p2532
        $region142: #{tpu_custom_call.1} parent=91 // pred_check_branch
          %2535 = sbr.rel (%p2533) target = $region144
        $region143: #{tpu_custom_call.1} parent=91 // pred_region
          %v2536 = vsel %vm1053, %v2528, 0.0
          %2537 = vadd.xlane.f32.xlu0 %v2536
          %v2538 = vpop.xlane.xlu0 %2537
          %v2539 = vsel %vm1053, %v2529, 0.0
          %2540 = vadd.xlane.f32.xlu0 %v2539
          %v2541 = vpop.xlane.xlu0 %2540
          %v2542 = vmul.f32 %v2538, %v1635
          %v2543 = vmul.f32 %v2541, %v1635
          %v2544 = vmul.f32 %v2528, %v2528
          %v2545 = vmul.f32 %v2529, %v2529
          %v2546 = vsel %vm1053, %v2544, 0.0
          %2547 = vadd.xlane.f32.xlu0 %v2546
          %v2548 = vpop.xlane.xlu0 %2547
          %v2549 = vsel %vm1053, %v2545, 0.0
          %2550 = vadd.xlane.f32.xlu0 %v2549
          %v2551 = vpop.xlane.xlu0 %2550
          %v2552 = vmul.f32 %v2548, %v1635
          %v2553 = vmul.f32 %v2551, %v1635
          %v2554 = vmul.f32 %v2542, %v2542
          %v2555 = vmul.f32 %v2543, %v2543
          %v2556 = vsub.f32 %v2552, %v2554
          %v2557 = vsub.f32 %v2553, %v2555
          %v2558 = vmax.f32 %v2556, 0.0
          %v2559 = vmax.f32 %v2557, 0.0
          %v2560 = vsub.f32 %v2528, %v2542
          %v2561 = vsub.f32 %v2529, %v2543
          %v2562 = vadd.f32 %v2558, 1e-05
          %v2563 = vadd.f32 %v2559, 1e-05
          %v2564 = vrsqrt.pop %v2562
          %v2565 = vmul.f32 %v2564, %v2562
          %v2566 = vmul.f32 %v2565, %v2564
          %v2567 = vmul.f32 0.5, %v2566
          %v2568 = vsub.f32 1.5, %v2567
          %v2569 = vmul.f32 %v2564, %v2568
          %vm2570 = vweird.f32 %v2562
          %vm2571 = vweird.f32 %v2564
          %vm2572 = vmor %vm2570, %vm2571
          %v2573 = vsel %vm2572, %v2564, %v2569
          %v2574 = vrsqrt.pop %v2563
          %v2575 = vmul.f32 %v2574, %v2563
          %v2576 = vmul.f32 %v2575, %v2574
          %v2577 = vmul.f32 0.5, %v2576
          %v2578 = vsub.f32 1.5, %v2577
          %v2579 = vmul.f32 %v2574, %v2578
          %vm2580 = vweird.f32 %v2563
          %vm2581 = vweird.f32 %v2574
          %vm2582 = vmor %vm2580, %vm2581
          %v2583 = vsel %vm2582, %v2574, %v2579
          %v2584 = vmul.f32 %v2560, %v2573
          %v2585 = vmul.f32 %v2561, %v2583
          %v2586 = vperm.slane %v1030, 3
          %v2587 = vmul.f32 %v2584, %v2586
          %v2588 = vmul.f32 %v2585, %v2586
          %v2589 = vperm.slane %v1031, 3
          %v2590 = vadd.f32 %v2587, %v2589
          %v2591 = vadd.f32 %v2588, %v2589
          %2592 = vst.msk [vmem:[#allocation17] sm:$0xff] %vm1053, %v2590
          %2593 = vst.msk [vmem:[#allocation17 + $0x8] sm:$0xff] %vm1053, %v2591
        $region144: #{tpu_custom_call.1} parent=91 // pred_fallthru
          _
        // Predicated region
        $region145: #{tpu_custom_call.1} parent=91 // pred_check
          %p2594 = pneg %p503
        $region146: #{tpu_custom_call.1} parent=91 // pred_check_branch
          %2596 = sbr.rel (%p2594) target = $region148
        $region147: #{tpu_custom_call.1} parent=91 // pred_region
          %2598 = vsyncadd [#allocation5], 0
          %s2599 = sshll.u32 [#allocation17], 4
          %s2600 = int_to_ptr.vmem [resolvable:$true] %s2599
          %s2601 = sshll.u32 %s18, 4
          %s2602 = int_to_ptr.hbm [resolvable:$true] %s2601
          %2607 = dma.vmem_to_hbm [thread:$0]  %s2600, 256, %s2602, [#allocation5], 128, 128, 8
        $region148: #{tpu_custom_call.1} parent=91 // pred_fallthru
          _
        // Predicated region
        $region149: #{tpu_custom_call.1} parent=91 // pred_check
          %p2608 = pneg %p503
        $region150: #{tpu_custom_call.1} parent=91 // pred_check_branch
          %2610 = sbr.rel (%p2608) target = $region152
        $region151: #{tpu_custom_call.1} parent=91 // pred_region
          %2612 = dma.done [#allocation5], 256
        $region152: #{tpu_custom_call.1} parent=91 // pred_fallthru
          _
      $region92: #{tpu_custom_call.1} parent=5 // pred_fallthru
        _
      %p2613 = scmp.le.s32.totalorder 2, %s27
      // Predicated region
      $region153: #{tpu_custom_call.1} parent=5 // pred_check
        %p2614 = pneg %p2613
      $region154: #{tpu_custom_call.1} parent=5 // pred_check_branch
        %2616 = sbr.rel (%p2614) target = $region156
      $region155: #{tpu_custom_call.1} parent=5 // pred_region
        %s2617 = ssub.s32 %s27, 2
      $region156: #{tpu_custom_call.1} parent=5 // pred_fallthru
        _
    $region6: #{tpu_custom_call.1} parent=1 // loop_footer
      %s31 = sadd.s32 1, %s27
    $region7: #{tpu_custom_call.1} parent=1 // loop_footer_branch
      %26 = sbr.rel target = $region3
    $region8: #{tpu_custom_call.1} parent=1 // loop_exit
      _
    %2618 = vsyncpa [#allocation4], 1
    %s2619 = scalar_lea.sflag [#allocation4], 1
    %2620 = vsyncpa %s2619, 1
    %2621 = vsyncpa [#allocation7], 1
    %2622 = vsyncpa [#allocation5], 1
    %s2623 = scalar_lea.sflag [#allocation5], 1
    %2624 = vsyncpa %s2623, 1

</llo_original>
